<compile_context>
chip_gen: v7x
topology: tpu7x:2x2x1
jax: 0.10.0
libtpu: 0.0.40
codegen_flags: <defaults>
</compile_context>

<pallas_src>
import functools
import math

import jax
import jax.numpy as jnp
from jax.experimental import pallas as pl
from jax.experimental.pallas import tpu as pltpu


# ---------------------------------------------------------------------------
# Kernel: one (image, H-band) tile per grid step.
# ---------------------------------------------------------------------------
def _conv3x3_tap_kernel(x_ref, halo_ref, w_ref, o_ref, acc_ref, *,
                        wp, activation, negative_slope):
    """Tap-accumulated transposed conv-as-matmul.

    x_ref:    (1, Cin, L)         W-padded rows of this band, spatially
                                  flattened (L = hb * wp); lanes = flat spatial.
    halo_ref: (1, 1, 2, Cin, wp)  row above (index 0) / below (index 1) band.
    w_ref:    (9, Cout, Cin)      per-tap weights, tap index = kh * 3 + kw.
    o_ref:    (1, 1, Cout, L)     channel-major output band (lane-dense).
    acc_ref:  (Cout, L) f32       accumulator scratch.
    """
    L = x_ref.shape[-1]
    hb = L // wp
    f32 = jnp.float32

    def tap(kh, kw):
        return w_ref[kh * 3 + kw]                      # (Cout, Cin)

    # Center row (kh == 1): taps read the band's own rows.  kw == 0 spans the
    # full band and initializes the accumulator (no separate zero pass).
    acc_ref[...] = jnp.dot(tap(1, 0), x_ref[0], preferred_element_type=f32)
    for kw in (1, 2):
        acc_ref[:, :L - kw] += jnp.dot(tap(1, kw), x_ref[0, :, kw:],
                                       preferred_element_type=f32)

    # Row above (kh == 0): output row 0 reads the top halo row; rows 1.. read
    # the band shifted up by one row (offset -wp in the flat layout).
    if hb >= 2:
        for kw in range(3):
            acc_ref[:, wp:] += jnp.dot(tap(0, kw),
                                       x_ref[0, :, kw:kw + L - wp],
                                       preferred_element_type=f32)
    for kw in range(3):
        acc_ref[:, :wp - kw] += jnp.dot(tap(0, kw),
                                        halo_ref[0, 0, 0, :, kw:],
                                        preferred_element_type=f32)

    # Row below (kh == 2): rows 0..hb-2 read the band shifted down by one row;
    # the last row reads the bottom halo row.
    if hb >= 2:
        for kw in range(3):
            acc_ref[:, :L - wp - kw] += jnp.dot(tap(2, kw),
                                                x_ref[0, :, wp + kw:],
                                                preferred_element_type=f32)
    for kw in range(3):
        acc_ref[:, L - wp:L - kw] += jnp.dot(tap(2, kw),
                                             halo_ref[0, 0, 1, :, kw:],
                                             preferred_element_type=f32)

    val = acc_ref[...]
    if activation == "leaky_relu":
        val = jnp.where(val >= 0, val, negative_slope * val)
    elif activation == "sigmoid":
        val = jax.nn.sigmoid(val)
    o_ref[0, 0] = val.astype(o_ref.dtype)


# ---------------------------------------------------------------------------
# VMEM accounting / hardware query.
# ---------------------------------------------------------------------------
def _round_up(a, b):
    return -(-a // b) * b


def _sublane(itemsize):
    return {4: 8, 2: 16, 1: 32}.get(itemsize, 8)


def _vmem_tile_bytes(hb, wp, cin, cout, c_size, o_size):
    """Per-grid-step VMEM working set: counts (sublane, 128-lane) padding of
    every buffer, double-buffering of the pipelined inputs/outputs, the f32
    accumulator scratch and the shifted-slice / MXU-result temporaries."""
    lane = 128
    L = _round_up(hb * wp, lane)
    wpr = _round_up(wp, lane)
    cin_s = _round_up(cin, _sublane(c_size))
    cout_acc = _round_up(cout, 8)
    cout_out = _round_up(cout, _sublane(o_size))
    main = 2 * cin_s * L * c_size                       # band block, 2 buffers
    halo = 2 * 2 * cin_s * wpr * c_size                 # halo rows, 2 buffers
    wgt = 2 * 9 * _round_up(cout, _sublane(c_size)) * _round_up(cin, lane) * c_size
    acc = cout_acc * L * 4                              # f32 accumulator
    outb = 2 * cout_out * L * o_size                    # output block, 2 buffers
    temps = 2 * cin_s * L * c_size + cout_acc * L * 4   # shifted slab + dot result
    return main + halo + wgt + acc + outb + temps


def _vmem_capacity_bytes():
    try:
        return int(pltpu.get_tpu_info().vmem_capacity_bytes)
    except Exception:
        return 64 * 1024 * 1024    # conservative fallback (v7x-sized)


# ---------------------------------------------------------------------------
# Wrapper: PyTorch Conv2d(Cin, Cout, 3, stride=1, padding=1, bias=False)
# followed by LeakyReLU / Sigmoid / identity.  NCHW in, NCHW out.
# ---------------------------------------------------------------------------
def conv2d_3x3_act(x_nchw, weight_oikk, *, activation="leaky_relu",
                   negative_slope=0.1, compute_dtype=jnp.bfloat16,
                   out_dtype=None, block_h=None):
    N, Cin, H, W = x_nchw.shape
    Cout, Cin_w, K, K2 = weight_oikk.shape
    assert Cin == Cin_w and K == 3 and K2 == 3, "DisparityDecoder convs are 3x3"

    out_dtype = jnp.dtype(out_dtype) if out_dtype is not None else jnp.dtype(x_nchw.dtype)
    cdt = jnp.dtype(compute_dtype) if compute_dtype is not None else jnp.dtype(x_nchw.dtype)

    wp = W + 2                                # one zero column each side
    step = 128 // math.gcd(wp, 128)           # hb granule keeping hb*wp % 128 == 0

    cap = _vmem_capacity_bytes()
    budget = max(16 << 20, min(64 << 20, cap - (24 << 20)))
    est = functools.partial(_vmem_tile_bytes, wp=wp, cin=Cin, cout=Cout,
                            c_size=cdt.itemsize, o_size=out_dtype.itemsize)

    # --- choose the H band size -------------------------------------------
    if block_h is not None:
        hb = min(int(block_h), H)
        if hb < H:
            hb = _round_up(max(hb, 1), step)
    else:
        if est(H) <= budget:
            hb = H
        else:
            hb = max(step, (H // step) * step)
            while hb > step and est(hb) > budget:
                hb -= step
    if hb >= H:
        hb, n_h = H, 1
    else:
        n_h = -(-H // hb)
    # Give the v7x dual TensorCore at least 2 parallel grid steps when a
    # single image would otherwise be one big step.
    if block_h is None and N * n_h == 1 and H > step:
        cand = _round_up(-(-H // 2), step)
        if cand < H and est(cand) <= budget:
            hb = cand
            n_h = -(-H // hb)

    Hr = n_h * hb
    L = hb * wp

    # --- wrapper-side data prep (one pad pass; no full-band duplication) ----
    xc = x_nchw.astype(cdt)
    x_p = jnp.pad(xc, ((0, 0), (0, 0), (0, Hr - H), (1, wp - W - 1)))
    x_main = x_p.reshape(N, Cin, Hr * wp)     # free reshape; blocks are non-overlapping

    band_ids = jnp.arange(n_h)

    def _gather_rows(idx):                    # 2 rows / band -> tiny gather
        valid = (idx >= 0) & (idx < H)
        rows = jnp.take(x_p, jnp.clip(idx, 0, Hr - 1), axis=2)   # (N,Cin,n_h,wp)
        return jnp.where(valid[None, None, :, None], rows, jnp.zeros((), cdt))

    halo = jnp.stack([_gather_rows(band_ids * hb - 1),
                      _gather_rows(band_ids * hb + hb)], axis=3)  # (N,Cin,n_h,2,wp)
    halo = jnp.transpose(halo, (0, 2, 3, 1, 4))                   # (N,n_h,2,Cin,wp)

    # (Cout, Cin, 3, 3) -> (3, 3, Cout, Cin) -> (9, Cout, Cin), tap = kh*3 + kw.
    w_taps = jnp.transpose(weight_oikk, (2, 3, 0, 1)).reshape(9, Cout, Cin).astype(cdt)

    kernel = functools.partial(_conv3x3_tap_kernel, wp=wp, activation=activation,
                               negative_slope=negative_slope)

    vmem_limit = max(24 << 20, min(int(est(hb) * 1.3) + (2 << 20), cap - (8 << 20)))

    out = pl.pallas_call(
        kernel,
        out_shape=jax.ShapeDtypeStruct((N, n_h, Cout, L), out_dtype),
        grid=(N, n_h),
        in_specs=[
            pl.BlockSpec((1, Cin, L), lambda n, t: (n, 0, t)),
            pl.BlockSpec((1, 1, 2, Cin, wp), lambda n, t: (n, t, 0, 0, 0)),
            # TODO(synk): pipeline_mode=pl.Buffered(1) would drop the redundant
            # second weight buffer (constant index_map); left default for safety.
            pl.BlockSpec((9, Cout, Cin), lambda n, t: (0, 0, 0)),
        ],
        out_specs=pl.BlockSpec((1, 1, Cout, L), lambda n, t: (n, t, 0, 0)),
        scratch_shapes=[pltpu.VMEM((Cout, L), jnp.float32)],
        compiler_params=pltpu.CompilerParams(
            dimension_semantics=("parallel", "parallel"),
            vmem_limit_bytes=int(vmem_limit),
        ),
    )(x_main, halo, w_taps)

    # (N, n_h, Cout, hb*wp) -> NCHW, dropping the W-pad and H-rounding columns.
    out = out.reshape(N, n_h, Cout, hb, wp)
    out = jnp.transpose(out, (0, 2, 1, 3, 4)).reshape(N, Cout, Hr, wp)
    return out[:, :, :H, :W]


# ---------------------------------------------------------------------------
# Self-test.
# ---------------------------------------------------------------------------
if __name__ == "__main__":
    key = jax.random.PRNGKey(0)
    kx, kw_, kh_, kx2, kw2_ = jax.random.split(key, 5)

    def conv_ref(xr, wr):
        return jax.lax.conv_general_dilated(
            xr.astype(jnp.float32), wr.astype(jnp.float32),
            window_strides=(1, 1), padding=((1, 1), (1, 1)),
            dimension_numbers=("NCHW", "OIHW", "NCHW"),
            preferred_element_type=jnp.float32)

    def leaky(v):
        return jnp.where(v >= 0, v, 0.1 * v)

    # DecoderBlock finest-level conv: 16 -> 16 channels, 3x3, LeakyReLU(0.1).
    N, Cin, Cout, H, W = 2, 16, 16, 16, 16
    x = jax.random.normal(kx, (N, Cin, H, W), dtype=jnp.float32)
    w = jax.random.normal(kw_, (Cout, Cin, 3, 3), dtype=jnp.float32) * 0.05

    # 1) exact f32 path
    out = jax.block_until_ready(
        conv2d_3x3_act(x, w, activation="leaky_relu", negative_slope=0.1,
                       compute_dtype=jnp.float32))
    ref = leaky(conv_ref(x, w))
    assert out.shape == (N, Cout, H, W)
    assert jnp.allclose(out, ref, atol=1e-3, rtol=1e-3), "f32 leaky_relu mismatch"

    # 2) default bf16 compute path (f32 accumulate, f32 output)
    out_bf = jax.block_until_ready(
        conv2d_3x3_act(x, w, activation="leaky_relu", negative_slope=0.1))
    ref_bf = leaky(conv_ref(x.astype(jnp.bfloat16), w.astype(jnp.bfloat16)))
    assert jnp.allclose(out_bf, ref_bf, atol=3e-2, rtol=3e-2), "bf16 mismatch"

    # 3) sigmoid output head: 16 -> 2 channels (output0..output3).
    wh = jax.random.normal(kh_, (2, Cin, 3, 3), dtype=jnp.float32) * 0.05
    out_sig = jax.block_until_ready(
        conv2d_3x3_act(x, wh, activation="sigmoid", compute_dtype=jnp.float32))
    ref_sig = jax.nn.sigmoid(conv_ref(x, wh))
    assert out_sig.shape == (N, 2, H, W)
    assert jnp.allclose(out_sig, ref_sig, atol=1e-3, rtol=1e-3), "sigmoid mismatch"

    # 4) multi-band path: H tiled into 64-row bands with halo rows.
    H2 = 160
    x2 = jax.random.normal(kx2, (1, Cin, H2, W), dtype=jnp.float32)
    w2 = jax.random.normal(kw2_, (Cout, Cin, 3, 3), dtype=jnp.float32) * 0.05
    out2 = jax.block_until_ready(
        conv2d_3x3_act(x2, w2, activation="leaky_relu", negative_slope=0.1,
                       compute_dtype=jnp.float32, block_h=64))
    ref2 = leaky(conv_ref(x2, w2))
    assert out2.shape == (1, Cout, H2, W)
    assert jnp.allclose(out2, ref2, atol=1e-3, rtol=1e-3), "banded path mismatch"

    print("KERNEL_OK")
</pallas_src>

<mosaic_0001>
module attributes {stable_mosaic.version = 11 : i64} {
  func.func @_conv3x3_tap_kernel(%arg0: i32, %arg1: i32, %arg2: memref<1x16x288xf32, #tpu.memory_space<vmem>>, %arg3: memref<1x1x2x16x18xf32, #tpu.memory_space<vmem>>, %arg4: memref<9x16x16xf32, #tpu.memory_space<vmem>>, %arg5: memref<1x1x16x288xf32, #tpu.memory_space<vmem>>, %arg6: memref<16x288xf32, #tpu.memory_space<vmem>>) attributes {dimension_semantics = [#tpu.dimension_semantics<parallel>, #tpu.dimension_semantics<parallel>], iteration_bounds = array<i64: 2, 1>, scalar_prefetch = 0 : i64, scratch_operands = 1 : i64, tpu.core_type = #tpu.core_type<tc>, window_params = [{transform_indices = @transform_0, window_bounds = array<i64: 1, 16, 288>}, {transform_indices = @transform_1, window_bounds = array<i64: 1, 1, 2, 16, 18>}, {pipeline_mode = #tpu.pipeline_mode<synchronous>, transform_indices = @transform_2, window_bounds = array<i64: 9, 16, 16>}, {transform_indices = @transform_3, window_bounds = array<i64: 1, 1, 16, 288>}]} {
    %c3 = arith.constant 3 : index
    %c0 = arith.constant 0 : index
    %c0_0 = arith.constant 0 : index
    %0 = vector.load %arg4[%c3, %c0, %c0_0] : memref<9x16x16xf32, #tpu.memory_space<vmem>>, vector<1x16x16xf32>
    %1 = vector.shape_cast %0 : vector<1x16x16xf32> to vector<16x16xf32>
    %c0_1 = arith.constant 0 : index
    %c0_2 = arith.constant 0 : index
    %c0_3 = arith.constant 0 : index
    %2 = vector.load %arg2[%c0_1, %c0_2, %c0_3] : memref<1x16x288xf32, #tpu.memory_space<vmem>>, vector<1x16x288xf32>
    %3 = vector.shape_cast %2 : vector<1x16x288xf32> to vector<16x288xf32>
    %cst = arith.constant dense<0.000000e+00> : vector<16x288xf32>
    %4 = tpu.matmul %1, %3, %cst {dimension_numbers = #tpu.dot_dimension_numbers<[1], [0], [0], [1], [0, 0, 1, 1], [], []>} : vector<16x16xf32>, vector<16x288xf32>, vector<16x288xf32> -> vector<16x288xf32>
    %c0_4 = arith.constant 0 : index
    %c0_5 = arith.constant 0 : index
    %5 = vector.load %arg6[%c0_4, %c0_5] : memref<16x288xf32, #tpu.memory_space<vmem>>, vector<16x288xf32>
    tpu.vector_store %arg6[%c0_4, %c0_5], %4 {strides = array<i32>} : memref<16x288xf32, #tpu.memory_space<vmem>>, vector<16x288xf32>,
    %c0_6 = arith.constant 0 : index
    %c0_7 = arith.constant 0 : index
    %6 = vector.load %arg6[%c0_6, %c0_7] : memref<16x288xf32, #tpu.memory_space<vmem>>, vector<16x287xf32>
    %c4 = arith.constant 4 : index
    %c0_8 = arith.constant 0 : index
    %c0_9 = arith.constant 0 : index
    %7 = vector.load %arg4[%c4, %c0_8, %c0_9] : memref<9x16x16xf32, #tpu.memory_space<vmem>>, vector<1x16x16xf32>
    %8 = vector.shape_cast %7 : vector<1x16x16xf32> to vector<16x16xf32>
    %c0_10 = arith.constant 0 : index
    %c0_11 = arith.constant 0 : index
    %c1 = arith.constant 1 : index
    %9 = vector.load %arg2[%c0_10, %c0_11, %c1] : memref<1x16x288xf32, #tpu.memory_space<vmem>>, vector<1x16x287xf32>
    %10 = vector.shape_cast %9 : vector<1x16x287xf32> to vector<16x287xf32>
    %cst_12 = arith.constant dense<0.000000e+00> : vector<16x287xf32>
    %11 = tpu.matmul %8, %10, %cst_12 {dimension_numbers = #tpu.dot_dimension_numbers<[1], [0], [0], [1], [0, 0, 1, 1], [], []>} : vector<16x16xf32>, vector<16x287xf32>, vector<16x287xf32> -> vector<16x287xf32>
    %12 = arith.addf %6, %11 : vector<16x287xf32>
    %c0_13 = arith.constant 0 : index
    %c0_14 = arith.constant 0 : index
    %13 = vector.load %arg6[%c0_13, %c0_14] : memref<16x288xf32, #tpu.memory_space<vmem>>, vector<16x287xf32>
    tpu.vector_store %arg6[%c0_13, %c0_14], %12 {strides = array<i32>} : memref<16x288xf32, #tpu.memory_space<vmem>>, vector<16x287xf32>,
    %c0_15 = arith.constant 0 : index
    %c0_16 = arith.constant 0 : index
    %14 = vector.load %arg6[%c0_15, %c0_16] : memref<16x288xf32, #tpu.memory_space<vmem>>, vector<16x286xf32>
    %c5 = arith.constant 5 : index
    %c0_17 = arith.constant 0 : index
    %c0_18 = arith.constant 0 : index
    %15 = vector.load %arg4[%c5, %c0_17, %c0_18] : memref<9x16x16xf32, #tpu.memory_space<vmem>>, vector<1x16x16xf32>
    %16 = vector.shape_cast %15 : vector<1x16x16xf32> to vector<16x16xf32>
    %c0_19 = arith.constant 0 : index
    %c0_20 = arith.constant 0 : index
    %c2 = arith.constant 2 : index
    %17 = vector.load %arg2[%c0_19, %c0_20, %c2] : memref<1x16x288xf32, #tpu.memory_space<vmem>>, vector<1x16x286xf32>
    %18 = vector.shape_cast %17 : vector<1x16x286xf32> to vector<16x286xf32>
    %cst_21 = arith.constant dense<0.000000e+00> : vector<16x286xf32>
    %19 = tpu.matmul %16, %18, %cst_21 {dimension_numbers = #tpu.dot_dimension_numbers<[1], [0], [0], [1], [0, 0, 1, 1], [], []>} : vector<16x16xf32>, vector<16x286xf32>, vector<16x286xf32> -> vector<16x286xf32>
    %20 = arith.addf %14, %19 : vector<16x286xf32>
    %c0_22 = arith.constant 0 : index
    %c0_23 = arith.constant 0 : index
    %21 = vector.load %arg6[%c0_22, %c0_23] : memref<16x288xf32, #tpu.memory_space<vmem>>, vector<16x286xf32>
    tpu.vector_store %arg6[%c0_22, %c0_23], %20 {strides = array<i32>} : memref<16x288xf32, #tpu.memory_space<vmem>>, vector<16x286xf32>,
    %c0_24 = arith.constant 0 : index
    %c18 = arith.constant 18 : index
    %22 = vector.load %arg6[%c0_24, %c18] : memref<16x288xf32, #tpu.memory_space<vmem>>, vector<16x270xf32>
    %c0_25 = arith.constant 0 : index
    %c0_26 = arith.constant 0 : index
    %c0_27 = arith.constant 0 : index
    %23 = vector.load %arg4[%c0_25, %c0_26, %c0_27] : memref<9x16x16xf32, #tpu.memory_space<vmem>>, vector<1x16x16xf32>
    %24 = vector.shape_cast %23 : vector<1x16x16xf32> to vector<16x16xf32>
    %c0_28 = arith.constant 0 : index
    %c0_29 = arith.constant 0 : index
    %c0_30 = arith.constant 0 : index
    %25 = vector.load %arg2[%c0_28, %c0_29, %c0_30] : memref<1x16x288xf32, #tpu.memory_space<vmem>>, vector<1x16x270xf32>
    %26 = vector.shape_cast %25 : vector<1x16x270xf32> to vector<16x270xf32>
    %cst_31 = arith.constant dense<0.000000e+00> : vector<16x270xf32>
    %27 = tpu.matmul %24, %26, %cst_31 {dimension_numbers = #tpu.dot_dimension_numbers<[1], [0], [0], [1], [0, 0, 1, 1], [], []>} : vector<16x16xf32>, vector<16x270xf32>, vector<16x270xf32> -> vector<16x270xf32>
    %28 = arith.addf %22, %27 : vector<16x270xf32>
    %c0_32 = arith.constant 0 : index
    %c18_33 = arith.constant 18 : index
    %29 = vector.load %arg6[%c0_32, %c18_33] : memref<16x288xf32, #tpu.memory_space<vmem>>, vector<16x270xf32>
    tpu.vector_store %arg6[%c0_32, %c18_33], %28 {strides = array<i32>} : memref<16x288xf32, #tpu.memory_space<vmem>>, vector<16x270xf32>,
    %c0_34 = arith.constant 0 : index
    %c18_35 = arith.constant 18 : index
    %30 = vector.load %arg6[%c0_34, %c18_35] : memref<16x288xf32, #tpu.memory_space<vmem>>, vector<16x270xf32>
    %c1_36 = arith.constant 1 : index
    %c0_37 = arith.constant 0 : index
    %c0_38 = arith.constant 0 : index
    %31 = vector.load %arg4[%c1_36, %c0_37, %c0_38] : memref<9x16x16xf32, #tpu.memory_space<vmem>>, vector<1x16x16xf32>
    %32 = vector.shape_cast %31 : vector<1x16x16xf32> to vector<16x16xf32>
    %c0_39 = arith.constant 0 : index
    %c0_40 = arith.constant 0 : index
    %c1_41 = arith.constant 1 : index
    %33 = vector.load %arg2[%c0_39, %c0_40, %c1_41] : memref<1x16x288xf32, #tpu.memory_space<vmem>>, vector<1x16x270xf32>
    %34 = vector.shape_cast %33 : vector<1x16x270xf32> to vector<16x270xf32>
    %cst_42 = arith.constant dense<0.000000e+00> : vector<16x270xf32>
    %35 = tpu.matmul %32, %34, %cst_42 {dimension_numbers = #tpu.dot_dimension_numbers<[1], [0], [0], [1], [0, 0, 1, 1], [], []>} : vector<16x16xf32>, vector<16x270xf32>, vector<16x270xf32> -> vector<16x270xf32>
    %36 = arith.addf %30, %35 : vector<16x270xf32>
    %c0_43 = arith.constant 0 : index
    %c18_44 = arith.constant 18 : index
    %37 = vector.load %arg6[%c0_43, %c18_44] : memref<16x288xf32, #tpu.memory_space<vmem>>, vector<16x270xf32>
    tpu.vector_store %arg6[%c0_43, %c18_44], %36 {strides = array<i32>} : memref<16x288xf32, #tpu.memory_space<vmem>>, vector<16x270xf32>,
    %c0_45 = arith.constant 0 : index
    %c18_46 = arith.constant 18 : index
    %38 = vector.load %arg6[%c0_45, %c18_46] : memref<16x288xf32, #tpu.memory_space<vmem>>, vector<16x270xf32>
    %c2_47 = arith.constant 2 : index
    %c0_48 = arith.constant 0 : index
    %c0_49 = arith.constant 0 : index
    %39 = vector.load %arg4[%c2_47, %c0_48, %c0_49] : memref<9x16x16xf32, #tpu.memory_space<vmem>>, vector<1x16x16xf32>
    %40 = vector.shape_cast %39 : vector<1x16x16xf32> to vector<16x16xf32>
    %c0_50 = arith.constant 0 : index
    %c0_51 = arith.constant 0 : index
    %c2_52 = arith.constant 2 : index
    %41 = vector.load %arg2[%c0_50, %c0_51, %c2_52] : memref<1x16x288xf32, #tpu.memory_space<vmem>>, vector<1x16x270xf32>
    %42 = vector.shape_cast %41 : vector<1x16x270xf32> to vector<16x270xf32>
    %cst_53 = arith.constant dense<0.000000e+00> : vector<16x270xf32>
    %43 = tpu.matmul %40, %42, %cst_53 {dimension_numbers = #tpu.dot_dimension_numbers<[1], [0], [0], [1], [0, 0, 1, 1], [], []>} : vector<16x16xf32>, vector<16x270xf32>, vector<16x270xf32> -> vector<16x270xf32>
    %44 = arith.addf %38, %43 : vector<16x270xf32>
    %c0_54 = arith.constant 0 : index
    %c18_55 = arith.constant 18 : index
    %45 = vector.load %arg6[%c0_54, %c18_55] : memref<16x288xf32, #tpu.memory_space<vmem>>, vector<16x270xf32>
    tpu.vector_store %arg6[%c0_54, %c18_55], %44 {strides = array<i32>} : memref<16x288xf32, #tpu.memory_space<vmem>>, vector<16x270xf32>,
    %c0_56 = arith.constant 0 : index
    %c0_57 = arith.constant 0 : index
    %46 = vector.load %arg6[%c0_56, %c0_57] : memref<16x288xf32, #tpu.memory_space<vmem>>, vector<16x18xf32>
    %c0_58 = arith.constant 0 : index
    %c0_59 = arith.constant 0 : index
    %c0_60 = arith.constant 0 : index
    %47 = vector.load %arg4[%c0_58, %c0_59, %c0_60] : memref<9x16x16xf32, #tpu.memory_space<vmem>>, vector<1x16x16xf32>
    %48 = vector.shape_cast %47 : vector<1x16x16xf32> to vector<16x16xf32>
    %c0_61 = arith.constant 0 : index
    %c0_62 = arith.constant 0 : index
    %c0_63 = arith.constant 0 : index
    %c0_64 = arith.constant 0 : index
    %c0_65 = arith.constant 0 : index
    %49 = vector.load %arg3[%c0_61, %c0_62, %c0_63, %c0_64, %c0_65] : memref<1x1x2x16x18xf32, #tpu.memory_space<vmem>>, vector<1x1x1x16x18xf32>
    %50 = vector.shape_cast %49 : vector<1x1x1x16x18xf32> to vector<16x18xf32>
    %cst_66 = arith.constant dense<0.000000e+00> : vector<16x18xf32>
    %51 = tpu.matmul %48, %50, %cst_66 {dimension_numbers = #tpu.dot_dimension_numbers<[1], [0], [0], [1], [0, 0, 1, 1], [], []>} : vector<16x16xf32>, vector<16x18xf32>, vector<16x18xf32> -> vector<16x18xf32>
    %52 = arith.addf %46, %51 : vector<16x18xf32>
    %c0_67 = arith.constant 0 : index
    %c0_68 = arith.constant 0 : index
    %53 = vector.load %arg6[%c0_67, %c0_68] : memref<16x288xf32, #tpu.memory_space<vmem>>, vector<16x18xf32>
    tpu.vector_store %arg6[%c0_67, %c0_68], %52 {strides = array<i32>} : memref<16x288xf32, #tpu.memory_space<vmem>>, vector<16x18xf32>,
    %c0_69 = arith.constant 0 : index
    %c0_70 = arith.constant 0 : index
    %54 = vector.load %arg6[%c0_69, %c0_70] : memref<16x288xf32, #tpu.memory_space<vmem>>, vector<16x17xf32>
    %c1_71 = arith.constant 1 : index
    %c0_72 = arith.constant 0 : index
    %c0_73 = arith.constant 0 : index
    %55 = vector.load %arg4[%c1_71, %c0_72, %c0_73] : memref<9x16x16xf32, #tpu.memory_space<vmem>>, vector<1x16x16xf32>
    %56 = vector.shape_cast %55 : vector<1x16x16xf32> to vector<16x16xf32>
    %c0_74 = arith.constant 0 : index
    %c0_75 = arith.constant 0 : index
    %c0_76 = arith.constant 0 : index
    %c0_77 = arith.constant 0 : index
    %c1_78 = arith.constant 1 : index
    %57 = vector.load %arg3[%c0_74, %c0_75, %c0_76, %c0_77, %c1_78] : memref<1x1x2x16x18xf32, #tpu.memory_space<vmem>>, vector<1x1x1x16x17xf32>
    %58 = vector.shape_cast %57 : vector<1x1x1x16x17xf32> to vector<16x17xf32>
    %cst_79 = arith.constant dense<0.000000e+00> : vector<16x17xf32>
    %59 = tpu.matmul %56, %58, %cst_79 {dimension_numbers = #tpu.dot_dimension_numbers<[1], [0], [0], [1], [0, 0, 1, 1], [], []>} : vector<16x16xf32>, vector<16x17xf32>, vector<16x17xf32> -> vector<16x17xf32>
    %60 = arith.addf %54, %59 : vector<16x17xf32>
    %c0_80 = arith.constant 0 : index
    %c0_81 = arith.constant 0 : index
    %61 = vector.load %arg6[%c0_80, %c0_81] : memref<16x288xf32, #tpu.memory_space<vmem>>, vector<16x17xf32>
    tpu.vector_store %arg6[%c0_80, %c0_81], %60 {strides = array<i32>} : memref<16x288xf32, #tpu.memory_space<vmem>>, vector<16x17xf32>,
    %c0_82 = arith.constant 0 : index
    %c0_83 = arith.constant 0 : index
    %62 = vector.load %arg6[%c0_82, %c0_83] : memref<16x288xf32, #tpu.memory_space<vmem>>, vector<16x16xf32>
    %c2_84 = arith.constant 2 : index
    %c0_85 = arith.constant 0 : index
    %c0_86 = arith.constant 0 : index
    %63 = vector.load %arg4[%c2_84, %c0_85, %c0_86] : memref<9x16x16xf32, #tpu.memory_space<vmem>>, vector<1x16x16xf32>
    %64 = vector.shape_cast %63 : vector<1x16x16xf32> to vector<16x16xf32>
    %c0_87 = arith.constant 0 : index
    %c0_88 = arith.constant 0 : index
    %c0_89 = arith.constant 0 : index
    %c0_90 = arith.constant 0 : index
    %c2_91 = arith.constant 2 : index
    %65 = vector.load %arg3[%c0_87, %c0_88, %c0_89, %c0_90, %c2_91] : memref<1x1x2x16x18xf32, #tpu.memory_space<vmem>>, vector<1x1x1x16x16xf32>
    %66 = vector.shape_cast %65 : vector<1x1x1x16x16xf32> to vector<16x16xf32>
    %cst_92 = arith.constant dense<0.000000e+00> : vector<16x16xf32>
    %67 = tpu.matmul %64, %66, %cst_92 {dimension_numbers = #tpu.dot_dimension_numbers<[1], [0], [0], [1], [0, 0, 1, 1], [], []>} : vector<16x16xf32>, vector<16x16xf32>, vector<16x16xf32> -> vector<16x16xf32>
    %68 = arith.addf %62, %67 : vector<16x16xf32>
    %c0_93 = arith.constant 0 : index
    %c0_94 = arith.constant 0 : index
    %69 = vector.load %arg6[%c0_93, %c0_94] : memref<16x288xf32, #tpu.memory_space<vmem>>, vector<16x16xf32>
    tpu.vector_store %arg6[%c0_93, %c0_94], %68 {strides = array<i32>} : memref<16x288xf32, #tpu.memory_space<vmem>>, vector<16x16xf32>,
    %c0_95 = arith.constant 0 : index
    %c0_96 = arith.constant 0 : index
    %70 = vector.load %arg6[%c0_95, %c0_96] : memref<16x288xf32, #tpu.memory_space<vmem>>, vector<16x270xf32>
    %c6 = arith.constant 6 : index
    %c0_97 = arith.constant 0 : index
    %c0_98 = arith.constant 0 : index
    %71 = vector.load %arg4[%c6, %c0_97, %c0_98] : memref<9x16x16xf32, #tpu.memory_space<vmem>>, vector<1x16x16xf32>
    %72 = vector.shape_cast %71 : vector<1x16x16xf32> to vector<16x16xf32>
    %c0_99 = arith.constant 0 : index
    %c0_100 = arith.constant 0 : index
    %c18_101 = arith.constant 18 : index
    %73 = vector.load %arg2[%c0_99, %c0_100, %c18_101] : memref<1x16x288xf32, #tpu.memory_space<vmem>>, vector<1x16x270xf32>
    %74 = vector.shape_cast %73 : vector<1x16x270xf32> to vector<16x270xf32>
    %cst_102 = arith.constant dense<0.000000e+00> : vector<16x270xf32>
    %75 = tpu.matmul %72, %74, %cst_102 {dimension_numbers = #tpu.dot_dimension_numbers<[1], [0], [0], [1], [0, 0, 1, 1], [], []>} : vector<16x16xf32>, vector<16x270xf32>, vector<16x270xf32> -> vector<16x270xf32>
    %76 = arith.addf %70, %75 : vector<16x270xf32>
    %c0_103 = arith.constant 0 : index
    %c0_104 = arith.constant 0 : index
    %77 = vector.load %arg6[%c0_103, %c0_104] : memref<16x288xf32, #tpu.memory_space<vmem>>, vector<16x270xf32>
    tpu.vector_store %arg6[%c0_103, %c0_104], %76 {strides = array<i32>} : memref<16x288xf32, #tpu.memory_space<vmem>>, vector<16x270xf32>,
    %c0_105 = arith.constant 0 : index
    %c0_106 = arith.constant 0 : index
    %78 = vector.load %arg6[%c0_105, %c0_106] : memref<16x288xf32, #tpu.memory_space<vmem>>, vector<16x269xf32>
    %c7 = arith.constant 7 : index
    %c0_107 = arith.constant 0 : index
    %c0_108 = arith.constant 0 : index
    %79 = vector.load %arg4[%c7, %c0_107, %c0_108] : memref<9x16x16xf32, #tpu.memory_space<vmem>>, vector<1x16x16xf32>
    %80 = vector.shape_cast %79 : vector<1x16x16xf32> to vector<16x16xf32>
    %c0_109 = arith.constant 0 : index
    %c0_110 = arith.constant 0 : index
    %c19 = arith.constant 19 : index
    %81 = vector.load %arg2[%c0_109, %c0_110, %c19] : memref<1x16x288xf32, #tpu.memory_space<vmem>>, vector<1x16x269xf32>
    %82 = vector.shape_cast %81 : vector<1x16x269xf32> to vector<16x269xf32>
    %cst_111 = arith.constant dense<0.000000e+00> : vector<16x269xf32>
    %83 = tpu.matmul %80, %82, %cst_111 {dimension_numbers = #tpu.dot_dimension_numbers<[1], [0], [0], [1], [0, 0, 1, 1], [], []>} : vector<16x16xf32>, vector<16x269xf32>, vector<16x269xf32> -> vector<16x269xf32>
    %84 = arith.addf %78, %83 : vector<16x269xf32>
    %c0_112 = arith.constant 0 : index
    %c0_113 = arith.constant 0 : index
    %85 = vector.load %arg6[%c0_112, %c0_113] : memref<16x288xf32, #tpu.memory_space<vmem>>, vector<16x269xf32>
    tpu.vector_store %arg6[%c0_112, %c0_113], %84 {strides = array<i32>} : memref<16x288xf32, #tpu.memory_space<vmem>>, vector<16x269xf32>,
    %c0_114 = arith.constant 0 : index
    %c0_115 = arith.constant 0 : index
    %86 = vector.load %arg6[%c0_114, %c0_115] : memref<16x288xf32, #tpu.memory_space<vmem>>, vector<16x268xf32>
    %c8 = arith.constant 8 : index
    %c0_116 = arith.constant 0 : index
    %c0_117 = arith.constant 0 : index
    %87 = vector.load %arg4[%c8, %c0_116, %c0_117] : memref<9x16x16xf32, #tpu.memory_space<vmem>>, vector<1x16x16xf32>
    %88 = vector.shape_cast %87 : vector<1x16x16xf32> to vector<16x16xf32>
    %c0_118 = arith.constant 0 : index
    %c0_119 = arith.constant 0 : index
    %c20 = arith.constant 20 : index
    %89 = vector.load %arg2[%c0_118, %c0_119, %c20] : memref<1x16x288xf32, #tpu.memory_space<vmem>>, vector<1x16x268xf32>
    %90 = vector.shape_cast %89 : vector<1x16x268xf32> to vector<16x268xf32>
    %cst_120 = arith.constant dense<0.000000e+00> : vector<16x268xf32>
    %91 = tpu.matmul %88, %90, %cst_120 {dimension_numbers = #tpu.dot_dimension_numbers<[1], [0], [0], [1], [0, 0, 1, 1], [], []>} : vector<16x16xf32>, vector<16x268xf32>, vector<16x268xf32> -> vector<16x268xf32>
    %92 = arith.addf %86, %91 : vector<16x268xf32>
    %c0_121 = arith.constant 0 : index
    %c0_122 = arith.constant 0 : index
    %93 = vector.load %arg6[%c0_121, %c0_122] : memref<16x288xf32, #tpu.memory_space<vmem>>, vector<16x268xf32>
    tpu.vector_store %arg6[%c0_121, %c0_122], %92 {strides = array<i32>} : memref<16x288xf32, #tpu.memory_space<vmem>>, vector<16x268xf32>,
    %c0_123 = arith.constant 0 : index
    %c270 = arith.constant 270 : index
    %94 = vector.load %arg6[%c0_123, %c270] : memref<16x288xf32, #tpu.memory_space<vmem>>, vector<16x18xf32>
    %c6_124 = arith.constant 6 : index
    %c0_125 = arith.constant 0 : index
    %c0_126 = arith.constant 0 : index
    %95 = vector.load %arg4[%c6_124, %c0_125, %c0_126] : memref<9x16x16xf32, #tpu.memory_space<vmem>>, vector<1x16x16xf32>
    %96 = vector.shape_cast %95 : vector<1x16x16xf32> to vector<16x16xf32>
    %c0_127 = arith.constant 0 : index
    %c0_128 = arith.constant 0 : index
    %c1_129 = arith.constant 1 : index
    %c0_130 = arith.constant 0 : index
    %c0_131 = arith.constant 0 : index
    %97 = vector.load %arg3[%c0_127, %c0_128, %c1_129, %c0_130, %c0_131] : memref<1x1x2x16x18xf32, #tpu.memory_space<vmem>>, vector<1x1x1x16x18xf32>
    %98 = vector.shape_cast %97 : vector<1x1x1x16x18xf32> to vector<16x18xf32>
    %cst_132 = arith.constant dense<0.000000e+00> : vector<16x18xf32>
    %99 = tpu.matmul %96, %98, %cst_132 {dimension_numbers = #tpu.dot_dimension_numbers<[1], [0], [0], [1], [0, 0, 1, 1], [], []>} : vector<16x16xf32>, vector<16x18xf32>, vector<16x18xf32> -> vector<16x18xf32>
    %100 = arith.addf %94, %99 : vector<16x18xf32>
    %c0_133 = arith.constant 0 : index
    %c270_134 = arith.constant 270 : index
    %101 = vector.load %arg6[%c0_133, %c270_134] : memref<16x288xf32, #tpu.memory_space<vmem>>, vector<16x18xf32>
    tpu.vector_store %arg6[%c0_133, %c270_134], %100 {strides = array<i32>} : memref<16x288xf32, #tpu.memory_space<vmem>>, vector<16x18xf32>,
    %c0_135 = arith.constant 0 : index
    %c270_136 = arith.constant 270 : index
    %102 = vector.load %arg6[%c0_135, %c270_136] : memref<16x288xf32, #tpu.memory_space<vmem>>, vector<16x17xf32>
    %c7_137 = arith.constant 7 : index
    %c0_138 = arith.constant 0 : index
    %c0_139 = arith.constant 0 : index
    %103 = vector.load %arg4[%c7_137, %c0_138, %c0_139] : memref<9x16x16xf32, #tpu.memory_space<vmem>>, vector<1x16x16xf32>
    %104 = vector.shape_cast %103 : vector<1x16x16xf32> to vector<16x16xf32>
    %c0_140 = arith.constant 0 : index
    %c0_141 = arith.constant 0 : index
    %c1_142 = arith.constant 1 : index
    %c0_143 = arith.constant 0 : index
    %c1_144 = arith.constant 1 : index
    %105 = vector.load %arg3[%c0_140, %c0_141, %c1_142, %c0_143, %c1_144] : memref<1x1x2x16x18xf32, #tpu.memory_space<vmem>>, vector<1x1x1x16x17xf32>
    %106 = vector.shape_cast %105 : vector<1x1x1x16x17xf32> to vector<16x17xf32>
    %cst_145 = arith.constant dense<0.000000e+00> : vector<16x17xf32>
    %107 = tpu.matmul %104, %106, %cst_145 {dimension_numbers = #tpu.dot_dimension_numbers<[1], [0], [0], [1], [0, 0, 1, 1], [], []>} : vector<16x16xf32>, vector<16x17xf32>, vector<16x17xf32> -> vector<16x17xf32>
    %108 = arith.addf %102, %107 : vector<16x17xf32>
    %c0_146 = arith.constant 0 : index
    %c270_147 = arith.constant 270 : index
    %109 = vector.load %arg6[%c0_146, %c270_147] : memref<16x288xf32, #tpu.memory_space<vmem>>, vector<16x17xf32>
    tpu.vector_store %arg6[%c0_146, %c270_147], %108 {strides = array<i32>} : memref<16x288xf32, #tpu.memory_space<vmem>>, vector<16x17xf32>,
    %c0_148 = arith.constant 0 : index
    %c270_149 = arith.constant 270 : index
    %110 = vector.load %arg6[%c0_148, %c270_149] : memref<16x288xf32, #tpu.memory_space<vmem>>, vector<16x16xf32>
    %c8_150 = arith.constant 8 : index
    %c0_151 = arith.constant 0 : index
    %c0_152 = arith.constant 0 : index
    %111 = vector.load %arg4[%c8_150, %c0_151, %c0_152] : memref<9x16x16xf32, #tpu.memory_space<vmem>>, vector<1x16x16xf32>
    %112 = vector.shape_cast %111 : vector<1x16x16xf32> to vector<16x16xf32>
    %c0_153 = arith.constant 0 : index
    %c0_154 = arith.constant 0 : index
    %c1_155 = arith.constant 1 : index
    %c0_156 = arith.constant 0 : index
    %c2_157 = arith.constant 2 : index
    %113 = vector.load %arg3[%c0_153, %c0_154, %c1_155, %c0_156, %c2_157] : memref<1x1x2x16x18xf32, #tpu.memory_space<vmem>>, vector<1x1x1x16x16xf32>
    %114 = vector.shape_cast %113 : vector<1x1x1x16x16xf32> to vector<16x16xf32>
    %cst_158 = arith.constant dense<0.000000e+00> : vector<16x16xf32>
    %115 = tpu.matmul %112, %114, %cst_158 {dimension_numbers = #tpu.dot_dimension_numbers<[1], [0], [0], [1], [0, 0, 1, 1], [], []>} : vector<16x16xf32>, vector<16x16xf32>, vector<16x16xf32> -> vector<16x16xf32>
    %116 = arith.addf %110, %115 : vector<16x16xf32>
    %c0_159 = arith.constant 0 : index
    %c270_160 = arith.constant 270 : index
    %117 = vector.load %arg6[%c0_159, %c270_160] : memref<16x288xf32, #tpu.memory_space<vmem>>, vector<16x16xf32>
    tpu.vector_store %arg6[%c0_159, %c270_160], %116 {strides = array<i32>} : memref<16x288xf32, #tpu.memory_space<vmem>>, vector<16x16xf32>,
    %c0_161 = arith.constant 0 : index
    %c0_162 = arith.constant 0 : index
    %118 = vector.load %arg6[%c0_161, %c0_162] : memref<16x288xf32, #tpu.memory_space<vmem>>, vector<16x288xf32>
    %cst_163 = arith.constant 0.000000e+00 : f32
    %119 = vector.broadcast %cst_163 : f32 to vector<16x288xf32>
    %120 = arith.cmpf oge, %118, %119 : vector<16x288xf32>
    %cst_164 = arith.constant 1.000000e-01 : f32
    %121 = vector.broadcast %cst_164 : f32 to vector<16x288xf32>
    %122 = arith.mulf %121, %118 : vector<16x288xf32>
    %123 = arith.select %120, %118, %122 : vector<16x288xi1>, vector<16x288xf32>
    %c0_165 = arith.constant 0 : index
    %c0_166 = arith.constant 0 : index
    %c0_167 = arith.constant 0 : index
    %c0_168 = arith.constant 0 : index
    %124 = vector.load %arg5[%c0_165, %c0_166, %c0_167, %c0_168] : memref<1x1x16x288xf32, #tpu.memory_space<vmem>>, vector<1x1x16x288xf32>
    %125 = vector.shape_cast %124 : vector<1x1x16x288xf32> to vector<16x288xf32>
    %126 = vector.shape_cast %123 : vector<16x288xf32> to vector<1x1x16x288xf32>
    tpu.vector_store %arg5[%c0_165, %c0_166, %c0_167, %c0_168], %126 {strides = array<i32>} : memref<1x1x16x288xf32, #tpu.memory_space<vmem>>, vector<1x1x16x288xf32>,
    return
  }
  func.func @transform_0(%arg0: i32, %arg1: i32) -> (i32, i32, i32) {
    %c0_i32 = arith.constant 0 : i32
    %c0_i32_0 = arith.constant 0 : i32
    return %arg0, %c0_i32, %arg1 : i32, i32, i32
  }
  func.func @transform_1(%arg0: i32, %arg1: i32) -> (i32, i32, i32, i32, i32) {
    %c0_i32 = arith.constant 0 : i32
    %c0_i32_0 = arith.constant 0 : i32
    %c0_i32_1 = arith.constant 0 : i32
    %c0_i32_2 = arith.constant 0 : i32
    return %arg0, %arg1, %c0_i32, %c0_i32_0, %c0_i32_1 : i32, i32, i32, i32, i32
  }
  func.func @transform_2(%arg0: i32, %arg1: i32) -> (i32, i32, i32) {
    %c0_i32 = arith.constant 0 : i32
    %c0_i32_0 = arith.constant 0 : i32
    %c0_i32_1 = arith.constant 0 : i32
    %c0_i32_2 = arith.constant 0 : i32
    return %c0_i32, %c0_i32_0, %c0_i32_1 : i32, i32, i32
  }
  func.func @transform_3(%arg0: i32, %arg1: i32) -> (i32, i32, i32, i32) {
    %c0_i32 = arith.constant 0 : i32
    %c0_i32_0 = arith.constant 0 : i32
    %c0_i32_1 = arith.constant 0 : i32
    return %arg0, %arg1, %c0_i32, %c0_i32_0 : i32, i32, i32, i32
  }
}

</mosaic_0001>

<llo_original>
// kernel: tpu_custom_call.1
$region0: #{tpu_custom_call.1}
  #allocation0 [shape = 'u32[]', space=smem, size = 0x4, offset = 0x4, fixed_abs, tag = 'smem constant byte address 0x4 - core index']
  #allocation1 [shape = 'u32[144,128]{1,0:T(1,128)}', space=vmem, size = 0x12000, scoped, tag = 'internal scratch']
  #allocation2 [shape = 'f32[16,288]{1,0:T(8,128)}', space=vmem, size = 0x6000, scoped, tag = 'scratch operand']
  %s0 = inlined_call_operand.hbm [shape: f32[2,16,288], index: 0, kind: input, shape index: {}]
  %s1 = inlined_call_operand.hbm [shape: f32[2,1,2,16,18], index: 1, kind: input, shape index: {}]
  %s2 = inlined_call_operand.hbm [shape: f32[9,16,16], index: 2, kind: input, shape index: {}]
  %s3 = inlined_call_operand.hbm [shape: f32[2,1,16,288], index: 3, kind: output, shape index: {}]
  %s4 = sld [smem:[#allocation0]]
  $region57: #{tpu_custom_call.1} parent=0
    _
  %s6 = ssub.s32 1, %s4
  %s7 = scalar_select 0, %s6, %s4
  $region1: #{tpu_custom_call.1} parent=0
    #allocation3 [shape = 'u8[49152]{0}', space=vmem, size = 0xc000, scoped, tag = 'input window, operand 0']
    #allocation4 [shape = 's32[2]{0}', space=sflag, size = 0x8, scoped, tag = 'scoped memory for tpu_custom_call.1']
    #allocation5 [shape = 's32[2]{0}', space=sflag, size = 0x8, scoped, tag = 'scoped memory for tpu_custom_call.1']
    #allocation6 [shape = 'u8[32768]{0}', space=vmem, size = 0x8000, scoped, tag = 'input window, operand 1']
    #allocation7 [shape = 's32[2]{0}', space=sflag, size = 0x8, scoped, tag = 'scoped memory for tpu_custom_call.1']
    #allocation8 [shape = 'u8[73728]{0}', space=vmem, size = 0x12000, scoped, tag = 'input window, operand 2, single buffered']
    #allocation9 [shape = 'u8[49152]{0}', space=vmem, size = 0xc000, scoped, tag = 'output window, operand 0']
    %8 = vsyncpa [#allocation4], 0
    %s9 = scalar_lea.sflag [#allocation4], 1
    %10 = vsyncpa %s9, 0
    %11 = vsyncpa [#allocation7], 0
    %s12 = scalar_lea.sflag [#allocation7], 1
    %13 = vsyncpa %s12, 0
    %14 = vsyncpa [#allocation5], 0
    %s15 = scalar_lea.sflag [#allocation5], 1
    %16 = vsyncpa %s15, 0
    loop: start=0, step=1, limit=4
    $region2: #{tpu_custom_call.1} parent=1 // loop_pre_header
      _
    $region3: #{tpu_custom_call.1} parent=1 // loop_header
      %s18 = sphi 0, %s22
      %p19 = scmp.ge.s32.totalorder %s18, 4
      %s25 = sphi 0, %s37
      %s26 = sphi 0, %s33
      %s27 = sphi 0, %s25
      %s28 = sphi 0, %s26
      %s29 = sphi 0, %s27
      %s30 = sphi 0, %s28
      %s42 = sphi 0, %s44
      %s45 = sphi 0, %s42
      %s46 = sphi 0, %s45
      %s62 = sphi 0, %s46
      %s70 = sphi 0, %s72
      %s73 = sphi 0, %s70
      %s74 = sphi 0, %s73
      %s90 = sphi 0, %s74
      %s94 = sphi 0, %s94
      %s96 = sphi 0, %s94
      %s97 = sphi 0, %s96
      %s111 = sphi 0, %s97
      %s119 = sphi 0, %s121
      %s122 = sphi 0, %s119
      %s123 = sphi 0, %s122
      %s139 = sphi 0, %s123
    $region4: #{tpu_custom_call.1} parent=1 // loop_header_branch
      %21 = sbr.rel (%p19) target = $region8
    $region5: #{tpu_custom_call.1} parent=1 // loop_body
      %s23 = ssub.s32 %s18, 1
      %s24 = ssub.s32 %s18, 2
      %s31 = sadd.s32 1, %s26
      %p32 = scmp.ge.s32.totalorder %s31, 1
      %s33 = scalar_select %p32, 0, %s31
      %s34 = sadd.s32 1, %s25
      %s35 = scalar_select %p32, %s34, %s25
      %p36 = scmp.ge.s32.totalorder %s35, 2
      %s37 = scalar_select %p36, 0, %s35
      %s38 = ssub.s32 %s25, %s37
      %s39 = ssub.s32 %s26, %s33
      %s40 = sor.u32 %s38, %s39
      %p41 = scmp.eq.s32.totalorder %s40, 0
      %s43 = sadd.s32 %s42, 1
      %s44 = scalar_select %p41, %s42, %s43
      %p47 = pneg %p41
      %p48 = scmp.eq.s32.totalorder %s18, 1
      %p49 = por %p47, %p48
      %p50 = scmp.ne.s32.totalorder %s42, %s45
      %p51 = scmp.eq.s32.totalorder %s18, 0
      %p52 = por %p50, %p51
      %p53 = scmp.ne.s32.totalorder %s42, %s45
      %p54 = scmp.eq.s32.totalorder %s23, 1
      %p55 = por %p53, %p54
      %p56 = scmp.ne.s32.totalorder %s45, %s46
      %p57 = scmp.eq.s32.totalorder %s23, 0
      %p58 = por %p56, %p57
      %p59 = scmp.ne.s32.totalorder %s45, %s46
      %p60 = scmp.eq.s32.totalorder %s24, 1
      %p61 = por %p59, %p60
      %p63 = scmp.ne.s32.totalorder %s46, %s62
      %p64 = scmp.eq.s32.totalorder %s24, 0
      %p65 = por %p63, %p64
      %s66 = ssub.s32 %s25, %s37
      %s67 = ssub.s32 %s26, %s33
      %s68 = sor.u32 %s66, %s67
      %p69 = scmp.eq.s32.totalorder %s68, 0
      %s71 = sadd.s32 %s70, 1
      %s72 = scalar_select %p69, %s70, %s71
      %p75 = pneg %p69
      %p76 = scmp.eq.s32.totalorder %s18, 1
      %p77 = por %p75, %p76
      %p78 = scmp.ne.s32.totalorder %s70, %s73
      %p79 = scmp.eq.s32.totalorder %s18, 0
      %p80 = por %p78, %p79
      %p81 = scmp.ne.s32.totalorder %s70, %s73
      %p82 = scmp.eq.s32.totalorder %s23, 1
      %p83 = por %p81, %p82
      %p84 = scmp.ne.s32.totalorder %s73, %s74
      %p85 = scmp.eq.s32.totalorder %s23, 0
      %p86 = por %p84, %p85
      %p87 = scmp.ne.s32.totalorder %s73, %s74
      %p88 = scmp.eq.s32.totalorder %s24, 1
      %p89 = por %p87, %p88
      %p91 = scmp.ne.s32.totalorder %s74, %s90
      %p92 = scmp.eq.s32.totalorder %s24, 0
      %p93 = por %p91, %p92
      %s95 = sadd.s32 %s94, 1
      %p98 = scmp.eq.s32.totalorder %s18, 1
      %p99 = scmp.ne.s32.totalorder %s94, %s96
      %p100 = scmp.eq.s32.totalorder %s18, 0
      %p101 = por %p99, %p100
      %p102 = scmp.ne.s32.totalorder %s94, %s96
      %p103 = scmp.eq.s32.totalorder %s23, 1
      %p104 = por %p102, %p103
      %p105 = scmp.ne.s32.totalorder %s96, %s97
      %p106 = scmp.eq.s32.totalorder %s23, 0
      %p107 = por %p105, %p106
      %p108 = scmp.ne.s32.totalorder %s96, %s97
      %p109 = scmp.eq.s32.totalorder %s24, 1
      %p110 = por %p108, %p109
      %p112 = scmp.ne.s32.totalorder %s97, %s111
      %p113 = scmp.eq.s32.totalorder %s24, 0
      %p114 = por %p112, %p113
      %s115 = ssub.s32 %s25, %s37
      %s116 = ssub.s32 %s26, %s33
      %s117 = sor.u32 %s115, %s116
      %p118 = scmp.eq.s32.totalorder %s117, 0
      %s120 = sadd.s32 %s119, 1
      %s121 = scalar_select %p118, %s119, %s120
      %p124 = pneg %p118
      %p125 = scmp.eq.s32.totalorder %s18, 1
      %p126 = por %p124, %p125
      %p127 = scmp.ne.s32.totalorder %s119, %s122
      %p128 = scmp.eq.s32.totalorder %s18, 0
      %p129 = por %p127, %p128
      %p130 = scmp.ne.s32.totalorder %s119, %s122
      %p131 = scmp.eq.s32.totalorder %s23, 1
      %p132 = por %p130, %p131
      %p133 = scmp.ne.s32.totalorder %s122, %s123
      %p134 = scmp.eq.s32.totalorder %s23, 0
      %p135 = por %p133, %p134
      %p136 = scmp.ne.s32.totalorder %s122, %s123
      %p137 = scmp.eq.s32.totalorder %s24, 1
      %p138 = por %p136, %p137
      %p140 = scmp.ne.s32.totalorder %s123, %s139
      %p141 = scmp.eq.s32.totalorder %s24, 0
      %p142 = por %p140, %p141
      %p143 = scmp.le.s32.totalorder 1, %s18
      %p144 = scmp.lt.s32.totalorder %s18, 3
      %p145 = pnand %p143, %p144
      %p146 = pneg %p145
      // Predicated region
      $region9: #{tpu_custom_call.1} parent=5 // pred_check
        _
      $region10: #{tpu_custom_call.1} parent=5 // pred_check_branch
        %148 = sbr.rel (%p145) target = $region12
      $region11: #{tpu_custom_call.1} parent=5 // pred_region
        %s149 = ssub.s32 %s18, 1
        // Predicated region
        $region13: #{tpu_custom_call.1} parent=11 // pred_check
          %p150 = pneg %p107
        $region14: #{tpu_custom_call.1} parent=11 // pred_check_branch
          %152 = sbr.rel (%p150) target = $region16
        $region15: #{tpu_custom_call.1} parent=11 // pred_region
          %s154 = ssub.s32 2304, 2304
          %155 = vsyncadd [#allocation7], %s154
          %s156 = sshll.u32 [#allocation8], 4
          %s157 = int_to_ptr.vmem [resolvable:$true] %s156
          %162 = dma.hbm_to_vmem [thread:$0]  %s2, 2304, %s157, [#allocation7], 128, 128, 8
        $region16: #{tpu_custom_call.1} parent=11 // pred_fallthru
          _
      $region12: #{tpu_custom_call.1} parent=5 // pred_fallthru
        _
      %p163 = scmp.lt.s32.totalorder %s18, 2
      // Predicated region
      $region17: #{tpu_custom_call.1} parent=5 // pred_check
        %p164 = pneg %p163
      $region18: #{tpu_custom_call.1} parent=5 // pred_check_branch
        %166 = sbr.rel (%p164) target = $region20
      $region19: #{tpu_custom_call.1} parent=5 // pred_region
        // Predicated region
        $region21: #{tpu_custom_call.1} parent=19 // pred_check
          %p167 = pneg %p52
        $region22: #{tpu_custom_call.1} parent=19 // pred_check_branch
          %169 = sbr.rel (%p167) target = $region24
        $region23: #{tpu_custom_call.1} parent=19 // pred_region
          %s170 = sand.u32 %s42, 1
          %s171 = scalar_lea.sflag [#allocation4], %s170
          %s172 = sand.u32 %s42, 1
          %s173 = smul.addr %s172, 48
          %s174 = scalar_lea.vmem [#allocation3], %s173
          %s175 = smul.u32 3, %s26
          %s177 = ssub.s32 768, 768
          %178 = vsyncadd %s171, %s177
          %s179 = smul.addr %s25, 6
          %s180 = sadd.s32 %s175, %s179
          %s181 = smul.addr %s180, 128
          %s182 = scalar_lea.hbm %s0, %s181
          %s183 = sshll.u32 %s174, 4
          %s184 = int_to_ptr.vmem [resolvable:$true] %s183
          %189 = dma.hbm_to_vmem [thread:$0]  %s182, 768, %s184, %s171, 384, 384, 24
        $region24: #{tpu_custom_call.1} parent=19 // pred_fallthru
          _
        // Predicated region
        $region25: #{tpu_custom_call.1} parent=19 // pred_check
          %p190 = pneg %p80
        $region26: #{tpu_custom_call.1} parent=19 // pred_check_branch
          %192 = sbr.rel (%p190) target = $region28
        $region27: #{tpu_custom_call.1} parent=19 // pred_region
          %s193 = sand.u32 %s18, 1
          %s194 = scalar_lea.sflag [#allocation7], %s193
          %s195 = sand.u32 %s70, 1
          %s196 = smul.addr %s195, 32
          %s197 = scalar_lea.vmem [#allocation6], %s196
          %s199 = ssub.s32 512, 512
          %200 = vsyncadd %s194, %s199
          %s201 = smul.addr %s26, 4
          %s202 = smul.addr %s25, 4
          %s203 = sadd.s32 %s201, %s202
          %s204 = smul.addr %s203, 128
          %s205 = scalar_lea.hbm %s1, %s204
          %s206 = sshll.u32 %s197, 4
          %s207 = int_to_ptr.vmem [resolvable:$true] %s206
          %212 = dma.hbm_to_vmem [thread:$0]  %s205, 512, %s207, %s194, 128, 128, 8
        $region28: #{tpu_custom_call.1} parent=19 // pred_fallthru
          _
      $region20: #{tpu_custom_call.1} parent=5 // pred_fallthru
        _
      %p213 = scmp.le.s32.totalorder 1, %s18
      %p214 = scmp.lt.s32.totalorder %s18, 3
      %p215 = pnand %p213, %p214
      %p216 = pneg %p215
      // Predicated region
      $region29: #{tpu_custom_call.1} parent=5 // pred_check
        _
      $region30: #{tpu_custom_call.1} parent=5 // pred_check_branch
        %218 = sbr.rel (%p215) target = $region32
      $region31: #{tpu_custom_call.1} parent=5 // pred_region
        %s219 = ssub.s32 %s18, 1
        %s220 = sand.u32 %s45, 1
        %s221 = scalar_lea.sflag [#allocation4], %s220
        %s222 = sand.u32 %s45, 1
        %s223 = smul.addr %s222, 48
        %s224 = scalar_lea.vmem [#allocation3], %s223
        // Predicated region
        $region33: #{tpu_custom_call.1} parent=31 // pred_check
          %p225 = pneg %p58
        $region34: #{tpu_custom_call.1} parent=31 // pred_check_branch
          %227 = sbr.rel (%p225) target = $region36
        $region35: #{tpu_custom_call.1} parent=31 // pred_region
          %228 = dma.done %s221, 768
        $region36: #{tpu_custom_call.1} parent=31 // pred_fallthru
          _
        %s229 = sand.u32 %s23, 1
        %s230 = scalar_lea.sflag [#allocation7], %s229
        %s231 = sand.u32 %s73, 1
        %s232 = smul.addr %s231, 32
        %s233 = scalar_lea.vmem [#allocation6], %s232
        // Predicated region
        $region37: #{tpu_custom_call.1} parent=31 // pred_check
          %p234 = pneg %p86
        $region38: #{tpu_custom_call.1} parent=31 // pred_check_branch
          %236 = sbr.rel (%p234) target = $region40
        $region39: #{tpu_custom_call.1} parent=31 // pred_region
          %237 = dma.done %s230, 512
        $region40: #{tpu_custom_call.1} parent=31 // pred_fallthru
          _
        // Predicated region
        $region41: #{tpu_custom_call.1} parent=31 // pred_check
          %p238 = pneg %p107
        $region42: #{tpu_custom_call.1} parent=31 // pred_check_branch
          %240 = sbr.rel (%p238) target = $region44
        $region43: #{tpu_custom_call.1} parent=31 // pred_region
          %241 = dma.done [#allocation7], 2304
        $region44: #{tpu_custom_call.1} parent=31 // pred_fallthru
          _
        %s242 = sand.u32 %s45, 1
        %s243 = scalar_lea.sflag [#allocation4], %s242
        %s244 = sand.u32 %s45, 1
        %s245 = smul.addr %s244, 48
        %s246 = scalar_lea.vmem [#allocation3], %s245
        %p247 = pneg %p58
        %p248 = pneg %p55
        %s249 = sand.u32 %s23, 1
        %s250 = scalar_lea.sflag [#allocation7], %s249
        %s251 = sand.u32 %s73, 1
        %s252 = smul.addr %s251, 32
        %s253 = scalar_lea.vmem [#allocation6], %s252
        %p254 = pneg %p86
        %p255 = pneg %p83
        %p256 = pneg %p107
        %p257 = pneg %p104
        %p258 = pneg %p135
        %p259 = pneg %p132
        %s260 = sand.u32 %s122, 1
        %s261 = scalar_lea.sflag [#allocation5], %s260
        %s262 = sand.u32 %s122, 1
        %s263 = smul.addr %s262, 48
        %s264 = scalar_lea.vmem [#allocation9], %s263
        %s265 = smul.u32 3, %s28
        %s266 = scalar_lea.vmem [#allocation8], 48
        %v267 = vld [vmem:[%s266] sm:$0xff]
        %v268 = vld [vmem:[%s266 + $0x8] sm:$0xff]
        %v269 = vld [vmem:[%s224] sm:$0xff]
        %v270 = vld [vmem:[%s224 + $0x8] sm:$0xff]
        %v271 = vld [vmem:[%s224 + $0x10] sm:$0xff]
        %v272 = vld [vmem:[%s224 + $0x18] sm:$0xff]
        %v273 = vld [vmem:[%s224 + $0x20] sm:$0xff]
        %v274 = vld [vmem:[%s224 + $0x28] sm:$0xff]
        %vm275 = vcmask 130048
        %v277 = vsel %vm275, %v267, 0
        %v280 = vsel %vm275, %v268, 0
        %282 = vmatprep.subr.mxu0 %v270
        %283 = vmatpush1.msra.mxu0 %v269
        %284 = vmatprep.subr.mxu0 %v273
        %285 = vmatpush1.msra.mxu0 %v272
        %286 = vmatprep.subr.mxu0 0.0
        %287 = vmatpush1.msra.mxu0 0.0
        %288 = vmatprep.subr.mxu0 0.0
        %289 = vmatpush1.msra.mxu0 0.0
        %290 = vmatprep.subr.mxu0 0.0
        %291 = vmatpush1.msra.mxu0 0.0
        %292 = vmatprep.subr.mxu0 0.0
        %293 = vmatpush1.msra.mxu0 0.0
        %294 = vmatprep.subr.mxu0 0.0
        %295 = vmatpush1.msra.mxu0 0.0
        %296 = vmatprep.subr.mxu0 0.0
        %297 = vmatpush1.msra.mxu0 0.0
        %298 = vmatprep.subr.mxu0 0.0
        %299 = vmatpush1.msra.mxu0 0.0
        %300 = vmatprep.subr.mxu0 0.0
        %301 = vmatpush1.msra.mxu0 0.0
        %302 = vmatprep.subr.mxu0 0.0
        %303 = vmatpush1.msra.mxu0 0.0
        %304 = vmatprep.subr.mxu0 0.0
        %305 = vmatpush1.msra.mxu0 0.0
        %306 = vmatprep.subr.mxu0 0.0
        %307 = vmatpush1.msra.mxu0 0.0
        %308 = vmatprep.subr.mxu0 0.0
        %309 = vmatpush1.msra.mxu0 0.0
        %310 = vmatprep.subr.mxu0 0.0
        %311 = vmatpush1.msra.mxu0 0.0
        %312 = vmatprep.subr.mxu0 0.0
        %313 = vmatpush1.msra.mxu0 0.0
        %314 = vmatprep.subr.mxu0 0.0
        %315 = vmatpush1.msra.mxu0 0.0
        %316 = vmatprep.subr.mxu0 0.0
        %317 = vmatpush1.msra.mxu0 0.0
        %318 = vmatprep.subr.mxu0 0.0
        %319 = vmatpush1.msra.mxu0 0.0
        %320 = vmatprep.subr.mxu0 0.0
        %321 = vmatpush1.msra.mxu0 0.0
        %322 = vmatprep.subr.mxu0 0.0
        %323 = vmatpush1.msra.mxu0 0.0
        %324 = vmatprep.subr.mxu0 0.0
        %325 = vmatpush1.msra.mxu0 0.0
        %326 = vmatprep.subr.mxu0 0.0
        %327 = vmatpush1.msra.mxu0 0.0
        %328 = vmatprep.subr.mxu0 0.0
        %329 = vmatpush1.msra.mxu0 0.0
        %330 = vmatprep.subr.mxu0 0.0
        %331 = vmatpush1.msra.mxu0 0.0
        %332 = vmatprep.subr.mxu0 0.0
        %333 = vmatpush1.msra.mxu0 0.0
        %334 = vmatprep.subr.mxu0 0.0
        %335 = vmatpush1.msra.mxu0 0.0
        %336 = vmatprep.subr.mxu0 0.0
        %337 = vmatpush1.msra.mxu0 0.0
        %338 = vmatprep.subr.mxu0 0.0
        %339 = vmatpush1.msra.mxu0 0.0
        %340 = vmatprep.subr.mxu0 0.0
        %341 = vmatpush1.msra.mxu0 0.0
        %342 = vmatprep.subr.mxu0 0.0
        %343 = vmatpush1.msra.mxu0 0.0
        %344 = vmatprep.subr.mxu0 0.0
        %345 = vmatpush1.msra.mxu0 0.0
        %346 = vmatprep.mubr.f32.mxu0 0.0
        %347 = vmatmul.mubr.f32.gmra.mrb[0].mxu0 %v277
        %v348 = vpop.f32.mrb[0].mxu0
        %v349 = vadd.f32 0.0, %v348
        %v350 = vpop.f32.mrb[0].mxu0
        %v351 = vadd.f32 0.0, %v350
        %352 = vmatprep.mubr.f32.mxu0 0.0
        %353 = vmatmul.mubr.f32.gmra.mrb[0].mxu0 %v280
        %v354 = vpop.f32.mrb[0].mxu0
        %v355 = vadd.f32 0.0, %v354
        %v356 = vpop.f32.mrb[0].mxu0
        %v357 = vadd.f32 0.0, %v356
        %358 = vdwg.mxu0
        %359 = vmatprep.subr.mxu0 0.0
        %360 = vmatpush1.msra.mxu0 %v271
        %361 = vmatprep.subr.mxu0 0.0
        %362 = vmatpush1.msra.mxu0 %v274
        %363 = vmatprep.subr.mxu0 0.0
        %364 = vmatpush1.msra.mxu0 0.0
        %365 = vmatprep.subr.mxu0 0.0
        %366 = vmatpush1.msra.mxu0 0.0
        %367 = vmatprep.subr.mxu0 0.0
        %368 = vmatpush1.msra.mxu0 0.0
        %369 = vmatprep.subr.mxu0 0.0
        %370 = vmatpush1.msra.mxu0 0.0
        %371 = vmatprep.subr.mxu0 0.0
        %372 = vmatpush1.msra.mxu0 0.0
        %373 = vmatprep.subr.mxu0 0.0
        %374 = vmatpush1.msra.mxu0 0.0
        %375 = vmatprep.subr.mxu0 0.0
        %376 = vmatpush1.msra.mxu0 0.0
        %377 = vmatprep.subr.mxu0 0.0
        %378 = vmatpush1.msra.mxu0 0.0
        %379 = vmatprep.subr.mxu0 0.0
        %380 = vmatpush1.msra.mxu0 0.0
        %381 = vmatprep.subr.mxu0 0.0
        %382 = vmatpush1.msra.mxu0 0.0
        %383 = vmatprep.subr.mxu0 0.0
        %384 = vmatpush1.msra.mxu0 0.0
        %385 = vmatprep.subr.mxu0 0.0
        %386 = vmatpush1.msra.mxu0 0.0
        %387 = vmatprep.subr.mxu0 0.0
        %388 = vmatpush1.msra.mxu0 0.0
        %389 = vmatprep.subr.mxu0 0.0
        %390 = vmatpush1.msra.mxu0 0.0
        %391 = vmatprep.subr.mxu0 0.0
        %392 = vmatpush1.msra.mxu0 0.0
        %393 = vmatprep.subr.mxu0 0.0
        %394 = vmatpush1.msra.mxu0 0.0
        %395 = vmatprep.subr.mxu0 0.0
        %396 = vmatpush1.msra.mxu0 0.0
        %397 = vmatprep.subr.mxu0 0.0
        %398 = vmatpush1.msra.mxu0 0.0
        %399 = vmatprep.subr.mxu0 0.0
        %400 = vmatpush1.msra.mxu0 0.0
        %401 = vmatprep.subr.mxu0 0.0
        %402 = vmatpush1.msra.mxu0 0.0
        %403 = vmatprep.subr.mxu0 0.0
        %404 = vmatpush1.msra.mxu0 0.0
        %405 = vmatprep.subr.mxu0 0.0
        %406 = vmatpush1.msra.mxu0 0.0
        %407 = vmatprep.subr.mxu0 0.0
        %408 = vmatpush1.msra.mxu0 0.0
        %409 = vmatprep.subr.mxu0 0.0
        %410 = vmatpush1.msra.mxu0 0.0
        %411 = vmatprep.subr.mxu0 0.0
        %412 = vmatpush1.msra.mxu0 0.0
        %413 = vmatprep.subr.mxu0 0.0
        %414 = vmatpush1.msra.mxu0 0.0
        %415 = vmatprep.subr.mxu0 0.0
        %416 = vmatpush1.msra.mxu0 0.0
        %417 = vmatprep.subr.mxu0 0.0
        %418 = vmatpush1.msra.mxu0 0.0
        %419 = vmatprep.subr.mxu0 0.0
        %420 = vmatpush1.msra.mxu0 0.0
        %421 = vmatprep.subr.mxu0 0.0
        %422 = vmatpush1.msra.mxu0 0.0
        %423 = vmatprep.mubr.f32.mxu0 0.0
        %424 = vmatmul.mubr.f32.gmra.mrb[0].mxu0 %v277
        %v425 = vpop.f32.mrb[0].mxu0
        %v426 = vadd.f32 0.0, %v425
        %v427 = vpop.f32.mrb[0].mxu0
        %428 = vmatprep.mubr.f32.mxu0 0.0
        %429 = vmatmul.mubr.f32.gmra.mrb[0].mxu0 %v280
        %v430 = vpop.f32.mrb[0].mxu0
        %v431 = vadd.f32 0.0, %v430
        %v432 = vpop.f32.mrb[0].mxu0
        %433 = vdwg.mxu0
        %434 = vst [vmem:[#allocation2] sm:$0xff] %v349
        %435 = vst [vmem:[#allocation2 + $0x8] sm:$0xff] %v351
        %vm436 = vcmask 261120
        %437 = vst.msk [vmem:[#allocation2 + $0x10] sm:$0xff] %vm436, %v426
        %438 = vst [vmem:[#allocation2 + $0x18] sm:$0xff] %v355
        %439 = vst [vmem:[#allocation2 + $0x20] sm:$0xff] %v357
        %440 = vst.msk [vmem:[#allocation2 + $0x28] sm:$0xff] %vm436, %v431
        %v441 = vld [vmem:[#allocation2] sm:$0xff]
        %v442 = vld [vmem:[#allocation2 + $0x8] sm:$0xff]
        %v443 = vld [vmem:[#allocation2 + $0x10] sm:$0xff]
        %v444 = vld [vmem:[#allocation2 + $0x18] sm:$0xff]
        %v445 = vld [vmem:[#allocation2 + $0x20] sm:$0xff]
        %v446 = vld [vmem:[#allocation2 + $0x28] sm:$0xff]
        %s447 = scalar_lea.vmem [#allocation8], 64
        %v448 = vld [vmem:[%s447] sm:$0xff]
        %v449 = vld [vmem:[%s447 + $0x8] sm:$0xff]
        %v450 = vld [vmem:[%s224] sm:$0xff]
        %v451 = vld [vmem:[%s224 + $0x8] sm:$0xff]
        %v452 = vld [vmem:[%s224 + $0x10] sm:$0xff]
        %v453 = vld [vmem:[%s224 + $0x18] sm:$0xff]
        %v454 = vld [vmem:[%s224 + $0x20] sm:$0xff]
        %v455 = vld [vmem:[%s224 + $0x28] sm:$0xff]
        %462 = vrot.lane.b32.xlu0 %v450, 127
        %v463 = vpop.permute.xlu0 %462
        %464 = vrot.lane.b32.xlu0 %v451, 127
        %v465 = vpop.permute.xlu0 %464
        %466 = vrot.lane.b32.xlu0 %v452, 127
        %v467 = vpop.permute.xlu0 %466
        %468 = vrot.lane.b32.xlu0 %v453, 127
        %v469 = vpop.permute.xlu0 %468
        %470 = vrot.lane.b32.xlu0 %v454, 127
        %v471 = vpop.permute.xlu0 %470
        %472 = vrot.lane.b32.xlu0 %v455, 127
        %v473 = vpop.permute.xlu0 %472
        %vm474 = vcmask 1039360
        %v475 = vsel %vm474, %v463, %v465
        %v476 = vsel %vm474, %v465, %v467
        %v477 = vsel %vm474, %v469, %v471
        %v478 = vsel %vm474, %v471, %v473
        %v486 = vsel %vm275, %v448, 0
        %v489 = vsel %vm275, %v449, 0
        %491 = vmatprep.subr.mxu0 %v476
        %492 = vmatpush1.msra.mxu0 %v475
        %493 = vmatprep.subr.mxu0 %v478
        %494 = vmatpush1.msra.mxu0 %v477
        %495 = vmatprep.subr.mxu0 0.0
        %496 = vmatpush1.msra.mxu0 0.0
        %497 = vmatprep.subr.mxu0 0.0
        %498 = vmatpush1.msra.mxu0 0.0
        %499 = vmatprep.subr.mxu0 0.0
        %500 = vmatpush1.msra.mxu0 0.0
        %501 = vmatprep.subr.mxu0 0.0
        %502 = vmatpush1.msra.mxu0 0.0
        %503 = vmatprep.subr.mxu0 0.0
        %504 = vmatpush1.msra.mxu0 0.0
        %505 = vmatprep.subr.mxu0 0.0
        %506 = vmatpush1.msra.mxu0 0.0
        %507 = vmatprep.subr.mxu0 0.0
        %508 = vmatpush1.msra.mxu0 0.0
        %509 = vmatprep.subr.mxu0 0.0
        %510 = vmatpush1.msra.mxu0 0.0
        %511 = vmatprep.subr.mxu0 0.0
        %512 = vmatpush1.msra.mxu0 0.0
        %513 = vmatprep.subr.mxu0 0.0
        %514 = vmatpush1.msra.mxu0 0.0
        %515 = vmatprep.subr.mxu0 0.0
        %516 = vmatpush1.msra.mxu0 0.0
        %517 = vmatprep.subr.mxu0 0.0
        %518 = vmatpush1.msra.mxu0 0.0
        %519 = vmatprep.subr.mxu0 0.0
        %520 = vmatpush1.msra.mxu0 0.0
        %521 = vmatprep.subr.mxu0 0.0
        %522 = vmatpush1.msra.mxu0 0.0
        %523 = vmatprep.subr.mxu0 0.0
        %524 = vmatpush1.msra.mxu0 0.0
        %525 = vmatprep.subr.mxu0 0.0
        %526 = vmatpush1.msra.mxu0 0.0
        %527 = vmatprep.subr.mxu0 0.0
        %528 = vmatpush1.msra.mxu0 0.0
        %529 = vmatprep.subr.mxu0 0.0
        %530 = vmatpush1.msra.mxu0 0.0
        %531 = vmatprep.subr.mxu0 0.0
        %532 = vmatpush1.msra.mxu0 0.0
        %533 = vmatprep.subr.mxu0 0.0
        %534 = vmatpush1.msra.mxu0 0.0
        %535 = vmatprep.subr.mxu0 0.0
        %536 = vmatpush1.msra.mxu0 0.0
        %537 = vmatprep.subr.mxu0 0.0
        %538 = vmatpush1.msra.mxu0 0.0
        %539 = vmatprep.subr.mxu0 0.0
        %540 = vmatpush1.msra.mxu0 0.0
        %541 = vmatprep.subr.mxu0 0.0
        %542 = vmatpush1.msra.mxu0 0.0
        %543 = vmatprep.subr.mxu0 0.0
        %544 = vmatpush1.msra.mxu0 0.0
        %545 = vmatprep.subr.mxu0 0.0
        %546 = vmatpush1.msra.mxu0 0.0
        %547 = vmatprep.subr.mxu0 0.0
        %548 = vmatpush1.msra.mxu0 0.0
        %549 = vmatprep.subr.mxu0 0.0
        %550 = vmatpush1.msra.mxu0 0.0
        %551 = vmatprep.subr.mxu0 0.0
        %552 = vmatpush1.msra.mxu0 0.0
        %553 = vmatprep.subr.mxu0 0.0
        %554 = vmatpush1.msra.mxu0 0.0
        %555 = vmatprep.mubr.f32.mxu0 0.0
        %556 = vmatmul.mubr.f32.gmra.mrb[0].mxu0 %v486
        %v557 = vpop.f32.mrb[0].mxu0
        %v558 = vadd.f32 0.0, %v557
        %v559 = vpop.f32.mrb[0].mxu0
        %v560 = vadd.f32 0.0, %v559
        %561 = vmatprep.mubr.f32.mxu0 0.0
        %562 = vmatmul.mubr.f32.gmra.mrb[0].mxu0 %v489
        %v563 = vpop.f32.mrb[0].mxu0
        %v564 = vadd.f32 0.0, %v563
        %v565 = vpop.f32.mrb[0].mxu0
        %v566 = vadd.f32 0.0, %v565
        %567 = vdwg.mxu0
        %568 = vmatprep.subr.mxu0 0.0
        %569 = vmatpush1.msra.mxu0 %v467
        %570 = vmatprep.subr.mxu0 0.0
        %571 = vmatpush1.msra.mxu0 %v473
        %572 = vmatprep.subr.mxu0 0.0
        %573 = vmatpush1.msra.mxu0 0.0
        %574 = vmatprep.subr.mxu0 0.0
        %575 = vmatpush1.msra.mxu0 0.0
        %576 = vmatprep.subr.mxu0 0.0
        %577 = vmatpush1.msra.mxu0 0.0
        %578 = vmatprep.subr.mxu0 0.0
        %579 = vmatpush1.msra.mxu0 0.0
        %580 = vmatprep.subr.mxu0 0.0
        %581 = vmatpush1.msra.mxu0 0.0
        %582 = vmatprep.subr.mxu0 0.0
        %583 = vmatpush1.msra.mxu0 0.0
        %584 = vmatprep.subr.mxu0 0.0
        %585 = vmatpush1.msra.mxu0 0.0
        %586 = vmatprep.subr.mxu0 0.0
        %587 = vmatpush1.msra.mxu0 0.0
        %588 = vmatprep.subr.mxu0 0.0
        %589 = vmatpush1.msra.mxu0 0.0
        %590 = vmatprep.subr.mxu0 0.0
        %591 = vmatpush1.msra.mxu0 0.0
        %592 = vmatprep.subr.mxu0 0.0
        %593 = vmatpush1.msra.mxu0 0.0
        %594 = vmatprep.subr.mxu0 0.0
        %595 = vmatpush1.msra.mxu0 0.0
        %596 = vmatprep.subr.mxu0 0.0
        %597 = vmatpush1.msra.mxu0 0.0
        %598 = vmatprep.subr.mxu0 0.0
        %599 = vmatpush1.msra.mxu0 0.0
        %600 = vmatprep.subr.mxu0 0.0
        %601 = vmatpush1.msra.mxu0 0.0
        %602 = vmatprep.subr.mxu0 0.0
        %603 = vmatpush1.msra.mxu0 0.0
        %604 = vmatprep.subr.mxu0 0.0
        %605 = vmatpush1.msra.mxu0 0.0
        %606 = vmatprep.subr.mxu0 0.0
        %607 = vmatpush1.msra.mxu0 0.0
        %608 = vmatprep.subr.mxu0 0.0
        %609 = vmatpush1.msra.mxu0 0.0
        %610 = vmatprep.subr.mxu0 0.0
        %611 = vmatpush1.msra.mxu0 0.0
        %612 = vmatprep.subr.mxu0 0.0
        %613 = vmatpush1.msra.mxu0 0.0
        %614 = vmatprep.subr.mxu0 0.0
        %615 = vmatpush1.msra.mxu0 0.0
        %616 = vmatprep.subr.mxu0 0.0
        %617 = vmatpush1.msra.mxu0 0.0
        %618 = vmatprep.subr.mxu0 0.0
        %619 = vmatpush1.msra.mxu0 0.0
        %620 = vmatprep.subr.mxu0 0.0
        %621 = vmatpush1.msra.mxu0 0.0
        %622 = vmatprep.subr.mxu0 0.0
        %623 = vmatpush1.msra.mxu0 0.0
        %624 = vmatprep.subr.mxu0 0.0
        %625 = vmatpush1.msra.mxu0 0.0
        %626 = vmatprep.subr.mxu0 0.0
        %627 = vmatpush1.msra.mxu0 0.0
        %628 = vmatprep.subr.mxu0 0.0
        %629 = vmatpush1.msra.mxu0 0.0
        %630 = vmatprep.subr.mxu0 0.0
        %631 = vmatpush1.msra.mxu0 0.0
        %632 = vmatprep.mubr.f32.mxu0 0.0
        %633 = vmatmul.mubr.f32.gmra.mrb[0].mxu0 %v486
        %v634 = vpop.f32.mrb[0].mxu0
        %v635 = vadd.f32 0.0, %v634
        %v636 = vpop.f32.mrb[0].mxu0
        %637 = vmatprep.mubr.f32.mxu0 0.0
        %638 = vmatmul.mubr.f32.gmra.mrb[0].mxu0 %v489
        %v639 = vpop.f32.mrb[0].mxu0
        %v640 = vadd.f32 0.0, %v639
        %v641 = vpop.f32.mrb[0].mxu0
        %642 = vdwg.mxu0
        %v643 = vadd.f32 %v441, %v558
        %v644 = vadd.f32 %v442, %v560
        %v645 = vadd.f32 %v443, %v635
        %v646 = vadd.f32 %v444, %v564
        %v647 = vadd.f32 %v445, %v566
        %v648 = vadd.f32 %v446, %v640
        %649 = vst [vmem:[#allocation2] sm:$0xff] %v643
        %650 = vst [vmem:[#allocation2 + $0x8] sm:$0xff] %v644
        %vm651 = vcmask 252928
        %652 = vst.msk [vmem:[#allocation2 + $0x10] sm:$0xff] %vm651, %v645
        %653 = vst [vmem:[#allocation2 + $0x18] sm:$0xff] %v646
        %654 = vst [vmem:[#allocation2 + $0x20] sm:$0xff] %v647
        %655 = vst.msk [vmem:[#allocation2 + $0x28] sm:$0xff] %vm651, %v648
        %v656 = vld [vmem:[#allocation2] sm:$0xff]
        %v657 = vld [vmem:[#allocation2 + $0x8] sm:$0xff]
        %v658 = vld [vmem:[#allocation2 + $0x10] sm:$0xff]
        %v659 = vld [vmem:[#allocation2 + $0x18] sm:$0xff]
        %v660 = vld [vmem:[#allocation2 + $0x20] sm:$0xff]
        %v661 = vld [vmem:[#allocation2 + $0x28] sm:$0xff]
        %s662 = scalar_lea.vmem [#allocation8], 80
        %v663 = vld [vmem:[%s662] sm:$0xff]
        %v664 = vld [vmem:[%s662 + $0x8] sm:$0xff]
        %v665 = vld [vmem:[%s224] sm:$0xff]
        %v666 = vld [vmem:[%s224 + $0x8] sm:$0xff]
        %v667 = vld [vmem:[%s224 + $0x10] sm:$0xff]
        %v668 = vld [vmem:[%s224 + $0x18] sm:$0xff]
        %v669 = vld [vmem:[%s224 + $0x20] sm:$0xff]
        %v670 = vld [vmem:[%s224 + $0x28] sm:$0xff]
        %677 = vrot.lane.b32.xlu0 %v665, 126
        %v678 = vpop.permute.xlu0 %677
        %679 = vrot.lane.b32.xlu0 %v666, 126
        %v680 = vpop.permute.xlu0 %679
        %681 = vrot.lane.b32.xlu0 %v667, 126
        %v682 = vpop.permute.xlu0 %681
        %683 = vrot.lane.b32.xlu0 %v668, 126
        %v684 = vpop.permute.xlu0 %683
        %685 = vrot.lane.b32.xlu0 %v669, 126
        %v686 = vpop.permute.xlu0 %685
        %687 = vrot.lane.b32.xlu0 %v670, 126
        %v688 = vpop.permute.xlu0 %687
        %vm689 = vcmask 1031168
        %v690 = vsel %vm689, %v678, %v680
        %v691 = vsel %vm689, %v680, %v682
        %v692 = vsel %vm689, %v684, %v686
        %v693 = vsel %vm689, %v686, %v688
        %v701 = vsel %vm275, %v663, 0
        %v704 = vsel %vm275, %v664, 0
        %706 = vmatprep.subr.mxu0 %v691
        %707 = vmatpush1.msra.mxu0 %v690
        %708 = vmatprep.subr.mxu0 %v693
        %709 = vmatpush1.msra.mxu0 %v692
        %710 = vmatprep.subr.mxu0 0.0
        %711 = vmatpush1.msra.mxu0 0.0
        %712 = vmatprep.subr.mxu0 0.0
        %713 = vmatpush1.msra.mxu0 0.0
        %714 = vmatprep.subr.mxu0 0.0
        %715 = vmatpush1.msra.mxu0 0.0
        %716 = vmatprep.subr.mxu0 0.0
        %717 = vmatpush1.msra.mxu0 0.0
        %718 = vmatprep.subr.mxu0 0.0
        %719 = vmatpush1.msra.mxu0 0.0
        %720 = vmatprep.subr.mxu0 0.0
        %721 = vmatpush1.msra.mxu0 0.0
        %722 = vmatprep.subr.mxu0 0.0
        %723 = vmatpush1.msra.mxu0 0.0
        %724 = vmatprep.subr.mxu0 0.0
        %725 = vmatpush1.msra.mxu0 0.0
        %726 = vmatprep.subr.mxu0 0.0
        %727 = vmatpush1.msra.mxu0 0.0
        %728 = vmatprep.subr.mxu0 0.0
        %729 = vmatpush1.msra.mxu0 0.0
        %730 = vmatprep.subr.mxu0 0.0
        %731 = vmatpush1.msra.mxu0 0.0
        %732 = vmatprep.subr.mxu0 0.0
        %733 = vmatpush1.msra.mxu0 0.0
        %734 = vmatprep.subr.mxu0 0.0
        %735 = vmatpush1.msra.mxu0 0.0
        %736 = vmatprep.subr.mxu0 0.0
        %737 = vmatpush1.msra.mxu0 0.0
        %738 = vmatprep.subr.mxu0 0.0
        %739 = vmatpush1.msra.mxu0 0.0
        %740 = vmatprep.subr.mxu0 0.0
        %741 = vmatpush1.msra.mxu0 0.0
        %742 = vmatprep.subr.mxu0 0.0
        %743 = vmatpush1.msra.mxu0 0.0
        %744 = vmatprep.subr.mxu0 0.0
        %745 = vmatpush1.msra.mxu0 0.0
        %746 = vmatprep.subr.mxu0 0.0
        %747 = vmatpush1.msra.mxu0 0.0
        %748 = vmatprep.subr.mxu0 0.0
        %749 = vmatpush1.msra.mxu0 0.0
        %750 = vmatprep.subr.mxu0 0.0
        %751 = vmatpush1.msra.mxu0 0.0
        %752 = vmatprep.subr.mxu0 0.0
        %753 = vmatpush1.msra.mxu0 0.0
        %754 = vmatprep.subr.mxu0 0.0
        %755 = vmatpush1.msra.mxu0 0.0
        %756 = vmatprep.subr.mxu0 0.0
        %757 = vmatpush1.msra.mxu0 0.0
        %758 = vmatprep.subr.mxu0 0.0
        %759 = vmatpush1.msra.mxu0 0.0
        %760 = vmatprep.subr.mxu0 0.0
        %761 = vmatpush1.msra.mxu0 0.0
        %762 = vmatprep.subr.mxu0 0.0
        %763 = vmatpush1.msra.mxu0 0.0
        %764 = vmatprep.subr.mxu0 0.0
        %765 = vmatpush1.msra.mxu0 0.0
        %766 = vmatprep.subr.mxu0 0.0
        %767 = vmatpush1.msra.mxu0 0.0
        %768 = vmatprep.subr.mxu0 0.0
        %769 = vmatpush1.msra.mxu0 0.0
        %770 = vmatprep.mubr.f32.mxu0 0.0
        %771 = vmatmul.mubr.f32.gmra.mrb[0].mxu0 %v701
        %v772 = vpop.f32.mrb[0].mxu0
        %v773 = vadd.f32 0.0, %v772
        %v774 = vpop.f32.mrb[0].mxu0
        %v775 = vadd.f32 0.0, %v774
        %776 = vmatprep.mubr.f32.mxu0 0.0
        %777 = vmatmul.mubr.f32.gmra.mrb[0].mxu0 %v704
        %v778 = vpop.f32.mrb[0].mxu0
        %v779 = vadd.f32 0.0, %v778
        %v780 = vpop.f32.mrb[0].mxu0
        %v781 = vadd.f32 0.0, %v780
        %782 = vdwg.mxu0
        %783 = vmatprep.subr.mxu0 0.0
        %784 = vmatpush1.msra.mxu0 %v682
        %785 = vmatprep.subr.mxu0 0.0
        %786 = vmatpush1.msra.mxu0 %v688
        %787 = vmatprep.subr.mxu0 0.0
        %788 = vmatpush1.msra.mxu0 0.0
        %789 = vmatprep.subr.mxu0 0.0
        %790 = vmatpush1.msra.mxu0 0.0
        %791 = vmatprep.subr.mxu0 0.0
        %792 = vmatpush1.msra.mxu0 0.0
        %793 = vmatprep.subr.mxu0 0.0
        %794 = vmatpush1.msra.mxu0 0.0
        %795 = vmatprep.subr.mxu0 0.0
        %796 = vmatpush1.msra.mxu0 0.0
        %797 = vmatprep.subr.mxu0 0.0
        %798 = vmatpush1.msra.mxu0 0.0
        %799 = vmatprep.subr.mxu0 0.0
        %800 = vmatpush1.msra.mxu0 0.0
        %801 = vmatprep.subr.mxu0 0.0
        %802 = vmatpush1.msra.mxu0 0.0
        %803 = vmatprep.subr.mxu0 0.0
        %804 = vmatpush1.msra.mxu0 0.0
        %805 = vmatprep.subr.mxu0 0.0
        %806 = vmatpush1.msra.mxu0 0.0
        %807 = vmatprep.subr.mxu0 0.0
        %808 = vmatpush1.msra.mxu0 0.0
        %809 = vmatprep.subr.mxu0 0.0
        %810 = vmatpush1.msra.mxu0 0.0
        %811 = vmatprep.subr.mxu0 0.0
        %812 = vmatpush1.msra.mxu0 0.0
        %813 = vmatprep.subr.mxu0 0.0
        %814 = vmatpush1.msra.mxu0 0.0
        %815 = vmatprep.subr.mxu0 0.0
        %816 = vmatpush1.msra.mxu0 0.0
        %817 = vmatprep.subr.mxu0 0.0
        %818 = vmatpush1.msra.mxu0 0.0
        %819 = vmatprep.subr.mxu0 0.0
        %820 = vmatpush1.msra.mxu0 0.0
        %821 = vmatprep.subr.mxu0 0.0
        %822 = vmatpush1.msra.mxu0 0.0
        %823 = vmatprep.subr.mxu0 0.0
        %824 = vmatpush1.msra.mxu0 0.0
        %825 = vmatprep.subr.mxu0 0.0
        %826 = vmatpush1.msra.mxu0 0.0
        %827 = vmatprep.subr.mxu0 0.0
        %828 = vmatpush1.msra.mxu0 0.0
        %829 = vmatprep.subr.mxu0 0.0
        %830 = vmatpush1.msra.mxu0 0.0
        %831 = vmatprep.subr.mxu0 0.0
        %832 = vmatpush1.msra.mxu0 0.0
        %833 = vmatprep.subr.mxu0 0.0
        %834 = vmatpush1.msra.mxu0 0.0
        %835 = vmatprep.subr.mxu0 0.0
        %836 = vmatpush1.msra.mxu0 0.0
        %837 = vmatprep.subr.mxu0 0.0
        %838 = vmatpush1.msra.mxu0 0.0
        %839 = vmatprep.subr.mxu0 0.0
        %840 = vmatpush1.msra.mxu0 0.0
        %841 = vmatprep.subr.mxu0 0.0
        %842 = vmatpush1.msra.mxu0 0.0
        %843 = vmatprep.subr.mxu0 0.0
        %844 = vmatpush1.msra.mxu0 0.0
        %845 = vmatprep.subr.mxu0 0.0
        %846 = vmatpush1.msra.mxu0 0.0
        %847 = vmatprep.mubr.f32.mxu0 0.0
        %848 = vmatmul.mubr.f32.gmra.mrb[0].mxu0 %v701
        %v849 = vpop.f32.mrb[0].mxu0
        %v850 = vadd.f32 0.0, %v849
        %v851 = vpop.f32.mrb[0].mxu0
        %852 = vmatprep.mubr.f32.mxu0 0.0
        %853 = vmatmul.mubr.f32.gmra.mrb[0].mxu0 %v704
        %v854 = vpop.f32.mrb[0].mxu0
        %v855 = vadd.f32 0.0, %v854
        %v856 = vpop.f32.mrb[0].mxu0
        %857 = vdwg.mxu0
        %v858 = vadd.f32 %v656, %v773
        %v859 = vadd.f32 %v657, %v775
        %v860 = vadd.f32 %v658, %v850
        %v861 = vadd.f32 %v659, %v779
        %v862 = vadd.f32 %v660, %v781
        %v863 = vadd.f32 %v661, %v855
        %864 = vst [vmem:[#allocation2] sm:$0xff] %v858
        %865 = vst [vmem:[#allocation2 + $0x8] sm:$0xff] %v859
        %vm866 = vcmask 244736
        %867 = vst.msk [vmem:[#allocation2 + $0x10] sm:$0xff] %vm866, %v860
        %868 = vst [vmem:[#allocation2 + $0x18] sm:$0xff] %v861
        %869 = vst [vmem:[#allocation2 + $0x20] sm:$0xff] %v862
        %870 = vst.msk [vmem:[#allocation2 + $0x28] sm:$0xff] %vm866, %v863
        %v871 = vld [vmem:[#allocation2] sm:$0xff]
        %v872 = vld [vmem:[#allocation2 + $0x8] sm:$0xff]
        %v873 = vld [vmem:[#allocation2 + $0x10] sm:$0xff]
        %v874 = vld [vmem:[#allocation2 + $0x18] sm:$0xff]
        %v875 = vld [vmem:[#allocation2 + $0x20] sm:$0xff]
        %v876 = vld [vmem:[#allocation2 + $0x28] sm:$0xff]
        %v877 = vld [vmem:[#allocation8] sm:$0xff]
        %v878 = vld [vmem:[#allocation8 + $0x8] sm:$0xff]
        %v879 = vld [vmem:[%s224] sm:$0xff]
        %v880 = vld [vmem:[%s224 + $0x8] sm:$0xff]
        %v881 = vld [vmem:[%s224 + $0x10] sm:$0xff]
        %v882 = vld [vmem:[%s224 + $0x18] sm:$0xff]
        %v883 = vld [vmem:[%s224 + $0x20] sm:$0xff]
        %v884 = vld [vmem:[%s224 + $0x28] sm:$0xff]
        %v886 = vsel %vm275, %v877, 0
        %v889 = vsel %vm275, %v878, 0
        %891 = vmatprep.subr.mxu0 %v880
        %892 = vmatpush1.msra.mxu0 %v879
        %893 = vmatprep.subr.mxu0 %v883
        %894 = vmatpush1.msra.mxu0 %v882
        %895 = vmatprep.subr.mxu0 0.0
        %896 = vmatpush1.msra.mxu0 0.0
        %897 = vmatprep.subr.mxu0 0.0
        %898 = vmatpush1.msra.mxu0 0.0
        %899 = vmatprep.subr.mxu0 0.0
        %900 = vmatpush1.msra.mxu0 0.0
        %901 = vmatprep.subr.mxu0 0.0
        %902 = vmatpush1.msra.mxu0 0.0
        %903 = vmatprep.subr.mxu0 0.0
        %904 = vmatpush1.msra.mxu0 0.0
        %905 = vmatprep.subr.mxu0 0.0
        %906 = vmatpush1.msra.mxu0 0.0
        %907 = vmatprep.subr.mxu0 0.0
        %908 = vmatpush1.msra.mxu0 0.0
        %909 = vmatprep.subr.mxu0 0.0
        %910 = vmatpush1.msra.mxu0 0.0
        %911 = vmatprep.subr.mxu0 0.0
        %912 = vmatpush1.msra.mxu0 0.0
        %913 = vmatprep.subr.mxu0 0.0
        %914 = vmatpush1.msra.mxu0 0.0
        %915 = vmatprep.subr.mxu0 0.0
        %916 = vmatpush1.msra.mxu0 0.0
        %917 = vmatprep.subr.mxu0 0.0
        %918 = vmatpush1.msra.mxu0 0.0
        %919 = vmatprep.subr.mxu0 0.0
        %920 = vmatpush1.msra.mxu0 0.0
        %921 = vmatprep.subr.mxu0 0.0
        %922 = vmatpush1.msra.mxu0 0.0
        %923 = vmatprep.subr.mxu0 0.0
        %924 = vmatpush1.msra.mxu0 0.0
        %925 = vmatprep.subr.mxu0 0.0
        %926 = vmatpush1.msra.mxu0 0.0
        %927 = vmatprep.subr.mxu0 0.0
        %928 = vmatpush1.msra.mxu0 0.0
        %929 = vmatprep.subr.mxu0 0.0
        %930 = vmatpush1.msra.mxu0 0.0
        %931 = vmatprep.subr.mxu0 0.0
        %932 = vmatpush1.msra.mxu0 0.0
        %933 = vmatprep.subr.mxu0 0.0
        %934 = vmatpush1.msra.mxu0 0.0
        %935 = vmatprep.subr.mxu0 0.0
        %936 = vmatpush1.msra.mxu0 0.0
        %937 = vmatprep.subr.mxu0 0.0
        %938 = vmatpush1.msra.mxu0 0.0
        %939 = vmatprep.subr.mxu0 0.0
        %940 = vmatpush1.msra.mxu0 0.0
        %941 = vmatprep.subr.mxu0 0.0
        %942 = vmatpush1.msra.mxu0 0.0
        %943 = vmatprep.subr.mxu0 0.0
        %944 = vmatpush1.msra.mxu0 0.0
        %945 = vmatprep.subr.mxu0 0.0
        %946 = vmatpush1.msra.mxu0 0.0
        %947 = vmatprep.subr.mxu0 0.0
        %948 = vmatpush1.msra.mxu0 0.0
        %949 = vmatprep.subr.mxu0 0.0
        %950 = vmatpush1.msra.mxu0 0.0
        %951 = vmatprep.subr.mxu0 0.0
        %952 = vmatpush1.msra.mxu0 0.0
        %953 = vmatprep.subr.mxu0 0.0
        %954 = vmatpush1.msra.mxu0 0.0
        %955 = vmatprep.mubr.f32.mxu0 0.0
        %956 = vmatmul.mubr.f32.gmra.mrb[0].mxu0 %v886
        %v957 = vpop.f32.mrb[0].mxu0
        %v958 = vadd.f32 0.0, %v957
        %v959 = vpop.f32.mrb[0].mxu0
        %v960 = vadd.f32 0.0, %v959
        %961 = vmatprep.mubr.f32.mxu0 0.0
        %962 = vmatmul.mubr.f32.gmra.mrb[0].mxu0 %v889
        %v963 = vpop.f32.mrb[0].mxu0
        %v964 = vadd.f32 0.0, %v963
        %v965 = vpop.f32.mrb[0].mxu0
        %v966 = vadd.f32 0.0, %v965
        %967 = vdwg.mxu0
        %968 = vmatprep.subr.mxu0 0.0
        %969 = vmatpush1.msra.mxu0 %v881
        %970 = vmatprep.subr.mxu0 0.0
        %971 = vmatpush1.msra.mxu0 %v884
        %972 = vmatprep.subr.mxu0 0.0
        %973 = vmatpush1.msra.mxu0 0.0
        %974 = vmatprep.subr.mxu0 0.0
        %975 = vmatpush1.msra.mxu0 0.0
        %976 = vmatprep.subr.mxu0 0.0
        %977 = vmatpush1.msra.mxu0 0.0
        %978 = vmatprep.subr.mxu0 0.0
        %979 = vmatpush1.msra.mxu0 0.0
        %980 = vmatprep.subr.mxu0 0.0
        %981 = vmatpush1.msra.mxu0 0.0
        %982 = vmatprep.subr.mxu0 0.0
        %983 = vmatpush1.msra.mxu0 0.0
        %984 = vmatprep.subr.mxu0 0.0
        %985 = vmatpush1.msra.mxu0 0.0
        %986 = vmatprep.subr.mxu0 0.0
        %987 = vmatpush1.msra.mxu0 0.0
        %988 = vmatprep.subr.mxu0 0.0
        %989 = vmatpush1.msra.mxu0 0.0
        %990 = vmatprep.subr.mxu0 0.0
        %991 = vmatpush1.msra.mxu0 0.0
        %992 = vmatprep.subr.mxu0 0.0
        %993 = vmatpush1.msra.mxu0 0.0
        %994 = vmatprep.subr.mxu0 0.0
        %995 = vmatpush1.msra.mxu0 0.0
        %996 = vmatprep.subr.mxu0 0.0
        %997 = vmatpush1.msra.mxu0 0.0
        %998 = vmatprep.subr.mxu0 0.0
        %999 = vmatpush1.msra.mxu0 0.0
        %1000 = vmatprep.subr.mxu0 0.0
        %1001 = vmatpush1.msra.mxu0 0.0
        %1002 = vmatprep.subr.mxu0 0.0
        %1003 = vmatpush1.msra.mxu0 0.0
        %1004 = vmatprep.subr.mxu0 0.0
        %1005 = vmatpush1.msra.mxu0 0.0
        %1006 = vmatprep.subr.mxu0 0.0
        %1007 = vmatpush1.msra.mxu0 0.0
        %1008 = vmatprep.subr.mxu0 0.0
        %1009 = vmatpush1.msra.mxu0 0.0
        %1010 = vmatprep.subr.mxu0 0.0
        %1011 = vmatpush1.msra.mxu0 0.0
        %1012 = vmatprep.subr.mxu0 0.0
        %1013 = vmatpush1.msra.mxu0 0.0
        %1014 = vmatprep.subr.mxu0 0.0
        %1015 = vmatpush1.msra.mxu0 0.0
        %1016 = vmatprep.subr.mxu0 0.0
        %1017 = vmatpush1.msra.mxu0 0.0
        %1018 = vmatprep.subr.mxu0 0.0
        %1019 = vmatpush1.msra.mxu0 0.0
        %1020 = vmatprep.subr.mxu0 0.0
        %1021 = vmatpush1.msra.mxu0 0.0
        %1022 = vmatprep.subr.mxu0 0.0
        %1023 = vmatpush1.msra.mxu0 0.0
        %1024 = vmatprep.subr.mxu0 0.0
        %1025 = vmatpush1.msra.mxu0 0.0
        %1026 = vmatprep.subr.mxu0 0.0
        %1027 = vmatpush1.msra.mxu0 0.0
        %1028 = vmatprep.subr.mxu0 0.0
        %1029 = vmatpush1.msra.mxu0 0.0
        %1030 = vmatprep.subr.mxu0 0.0
        %1031 = vmatpush1.msra.mxu0 0.0
        %1032 = vmatprep.mubr.f32.mxu0 0.0
        %1033 = vmatmul.mubr.f32.gmra.mrb[0].mxu0 %v886
        %v1034 = vpop.f32.mrb[0].mxu0
        %v1035 = vadd.f32 0.0, %v1034
        %v1036 = vpop.f32.mrb[0].mxu0
        %1037 = vmatprep.mubr.f32.mxu0 0.0
        %1038 = vmatmul.mubr.f32.gmra.mrb[0].mxu0 %v889
        %v1039 = vpop.f32.mrb[0].mxu0
        %v1040 = vadd.f32 0.0, %v1039
        %v1041 = vpop.f32.mrb[0].mxu0
        %1042 = vdwg.mxu0
        %1049 = vrot.lane.b32.xlu0 %v958, 18
        %v1050 = vpop.permute.xlu0 %1049
        %1051 = vrot.lane.b32.xlu0 %v960, 18
        %v1052 = vpop.permute.xlu0 %1051
        %1053 = vrot.lane.b32.xlu0 %v1035, 18
        %v1054 = vpop.permute.xlu0 %1053
        %1055 = vrot.lane.b32.xlu0 %v964, 18
        %v1056 = vpop.permute.xlu0 %1055
        %1057 = vrot.lane.b32.xlu0 %v966, 18
        %v1058 = vpop.permute.xlu0 %1057
        %1059 = vrot.lane.b32.xlu0 %v1040, 18
        %v1060 = vpop.permute.xlu0 %1059
        %vm1061 = vcmask 146432
        %v1062 = vsel %vm1061, %v1050, %v1052
        %v1063 = vsel %vm1061, %v1052, %v1054
        %v1064 = vsel %vm1061, %v1056, %v1058
        %v1065 = vsel %vm1061, %v1058, %v1060
        %v1072 = vadd.f32 %v871, %v1050
        %v1073 = vadd.f32 %v872, %v1062
        %v1074 = vadd.f32 %v873, %v1063
        %v1075 = vadd.f32 %v874, %v1056
        %v1076 = vadd.f32 %v875, %v1064
        %v1077 = vadd.f32 %v876, %v1065
        %vm1078 = vcmask 1047696
        %1079 = vst.msk [vmem:[#allocation2] sm:$0xff] %vm1078, %v1072
        %1080 = vst [vmem:[#allocation2 + $0x8] sm:$0xff] %v1073
        %1081 = vst.msk [vmem:[#allocation2 + $0x10] sm:$0xff] %vm436, %v1074
        %1082 = vst.msk [vmem:[#allocation2 + $0x18] sm:$0xff] %vm1078, %v1075
        %1083 = vst [vmem:[#allocation2 + $0x20] sm:$0xff] %v1076
        %1084 = vst.msk [vmem:[#allocation2 + $0x28] sm:$0xff] %vm436, %v1077
        %v1085 = vld [vmem:[#allocation2] sm:$0xff]
        %v1086 = vld [vmem:[#allocation2 + $0x8] sm:$0xff]
        %v1087 = vld [vmem:[#allocation2 + $0x10] sm:$0xff]
        %v1088 = vld [vmem:[#allocation2 + $0x18] sm:$0xff]
        %v1089 = vld [vmem:[#allocation2 + $0x20] sm:$0xff]
        %v1090 = vld [vmem:[#allocation2 + $0x28] sm:$0xff]
        %s1091 = scalar_lea.vmem [#allocation8], 16
        %v1092 = vld [vmem:[%s1091] sm:$0xff]
        %v1093 = vld [vmem:[%s1091 + $0x8] sm:$0xff]
        %v1094 = vld [vmem:[%s224] sm:$0xff]
        %v1095 = vld [vmem:[%s224 + $0x8] sm:$0xff]
        %v1096 = vld [vmem:[%s224 + $0x10] sm:$0xff]
        %v1097 = vld [vmem:[%s224 + $0x18] sm:$0xff]
        %v1098 = vld [vmem:[%s224 + $0x20] sm:$0xff]
        %v1099 = vld [vmem:[%s224 + $0x28] sm:$0xff]
        %1106 = vrot.lane.b32.xlu0 %v1094, 127
        %v1107 = vpop.permute.xlu0 %1106
        %1108 = vrot.lane.b32.xlu0 %v1095, 127
        %v1109 = vpop.permute.xlu0 %1108
        %1110 = vrot.lane.b32.xlu0 %v1096, 127
        %v1111 = vpop.permute.xlu0 %1110
        %1112 = vrot.lane.b32.xlu0 %v1097, 127
        %v1113 = vpop.permute.xlu0 %1112
        %1114 = vrot.lane.b32.xlu0 %v1098, 127
        %v1115 = vpop.permute.xlu0 %1114
        %1116 = vrot.lane.b32.xlu0 %v1099, 127
        %v1117 = vpop.permute.xlu0 %1116
        %v1118 = vsel %vm474, %v1107, %v1109
        %v1119 = vsel %vm474, %v1109, %v1111
        %v1120 = vsel %vm474, %v1113, %v1115
        %v1121 = vsel %vm474, %v1115, %v1117
        %v1129 = vsel %vm275, %v1092, 0
        %v1132 = vsel %vm275, %v1093, 0
        %1134 = vmatprep.subr.mxu0 %v1119
        %1135 = vmatpush1.msra.mxu0 %v1118
        %1136 = vmatprep.subr.mxu0 %v1121
        %1137 = vmatpush1.msra.mxu0 %v1120
        %1138 = vmatprep.subr.mxu0 0.0
        %1139 = vmatpush1.msra.mxu0 0.0
        %1140 = vmatprep.subr.mxu0 0.0
        %1141 = vmatpush1.msra.mxu0 0.0
        %1142 = vmatprep.subr.mxu0 0.0
        %1143 = vmatpush1.msra.mxu0 0.0
        %1144 = vmatprep.subr.mxu0 0.0
        %1145 = vmatpush1.msra.mxu0 0.0
        %1146 = vmatprep.subr.mxu0 0.0
        %1147 = vmatpush1.msra.mxu0 0.0
        %1148 = vmatprep.subr.mxu0 0.0
        %1149 = vmatpush1.msra.mxu0 0.0
        %1150 = vmatprep.subr.mxu0 0.0
        %1151 = vmatpush1.msra.mxu0 0.0
        %1152 = vmatprep.subr.mxu0 0.0
        %1153 = vmatpush1.msra.mxu0 0.0
        %1154 = vmatprep.subr.mxu0 0.0
        %1155 = vmatpush1.msra.mxu0 0.0
        %1156 = vmatprep.subr.mxu0 0.0
        %1157 = vmatpush1.msra.mxu0 0.0
        %1158 = vmatprep.subr.mxu0 0.0
        %1159 = vmatpush1.msra.mxu0 0.0
        %1160 = vmatprep.subr.mxu0 0.0
        %1161 = vmatpush1.msra.mxu0 0.0
        %1162 = vmatprep.subr.mxu0 0.0
        %1163 = vmatpush1.msra.mxu0 0.0
        %1164 = vmatprep.subr.mxu0 0.0
        %1165 = vmatpush1.msra.mxu0 0.0
        %1166 = vmatprep.subr.mxu0 0.0
        %1167 = vmatpush1.msra.mxu0 0.0
        %1168 = vmatprep.subr.mxu0 0.0
        %1169 = vmatpush1.msra.mxu0 0.0
        %1170 = vmatprep.subr.mxu0 0.0
        %1171 = vmatpush1.msra.mxu0 0.0
        %1172 = vmatprep.subr.mxu0 0.0
        %1173 = vmatpush1.msra.mxu0 0.0
        %1174 = vmatprep.subr.mxu0 0.0
        %1175 = vmatpush1.msra.mxu0 0.0
        %1176 = vmatprep.subr.mxu0 0.0
        %1177 = vmatpush1.msra.mxu0 0.0
        %1178 = vmatprep.subr.mxu0 0.0
        %1179 = vmatpush1.msra.mxu0 0.0
        %1180 = vmatprep.subr.mxu0 0.0
        %1181 = vmatpush1.msra.mxu0 0.0
        %1182 = vmatprep.subr.mxu0 0.0
        %1183 = vmatpush1.msra.mxu0 0.0
        %1184 = vmatprep.subr.mxu0 0.0
        %1185 = vmatpush1.msra.mxu0 0.0
        %1186 = vmatprep.subr.mxu0 0.0
        %1187 = vmatpush1.msra.mxu0 0.0
        %1188 = vmatprep.subr.mxu0 0.0
        %1189 = vmatpush1.msra.mxu0 0.0
        %1190 = vmatprep.subr.mxu0 0.0
        %1191 = vmatpush1.msra.mxu0 0.0
        %1192 = vmatprep.subr.mxu0 0.0
        %1193 = vmatpush1.msra.mxu0 0.0
        %1194 = vmatprep.subr.mxu0 0.0
        %1195 = vmatpush1.msra.mxu0 0.0
        %1196 = vmatprep.subr.mxu0 0.0
        %1197 = vmatpush1.msra.mxu0 0.0
        %1198 = vmatprep.mubr.f32.mxu0 0.0
        %1199 = vmatmul.mubr.f32.gmra.mrb[0].mxu0 %v1129
        %v1200 = vpop.f32.mrb[0].mxu0
        %v1201 = vadd.f32 0.0, %v1200
        %v1202 = vpop.f32.mrb[0].mxu0
        %v1203 = vadd.f32 0.0, %v1202
        %1204 = vmatprep.mubr.f32.mxu0 0.0
        %1205 = vmatmul.mubr.f32.gmra.mrb[0].mxu0 %v1132
        %v1206 = vpop.f32.mrb[0].mxu0
        %v1207 = vadd.f32 0.0, %v1206
        %v1208 = vpop.f32.mrb[0].mxu0
        %v1209 = vadd.f32 0.0, %v1208
        %1210 = vdwg.mxu0
        %1211 = vmatprep.subr.mxu0 0.0
        %1212 = vmatpush1.msra.mxu0 %v1111
        %1213 = vmatprep.subr.mxu0 0.0
        %1214 = vmatpush1.msra.mxu0 %v1117
        %1215 = vmatprep.subr.mxu0 0.0
        %1216 = vmatpush1.msra.mxu0 0.0
        %1217 = vmatprep.subr.mxu0 0.0
        %1218 = vmatpush1.msra.mxu0 0.0
        %1219 = vmatprep.subr.mxu0 0.0
        %1220 = vmatpush1.msra.mxu0 0.0
        %1221 = vmatprep.subr.mxu0 0.0
        %1222 = vmatpush1.msra.mxu0 0.0
        %1223 = vmatprep.subr.mxu0 0.0
        %1224 = vmatpush1.msra.mxu0 0.0
        %1225 = vmatprep.subr.mxu0 0.0
        %1226 = vmatpush1.msra.mxu0 0.0
        %1227 = vmatprep.subr.mxu0 0.0
        %1228 = vmatpush1.msra.mxu0 0.0
        %1229 = vmatprep.subr.mxu0 0.0
        %1230 = vmatpush1.msra.mxu0 0.0
        %1231 = vmatprep.subr.mxu0 0.0
        %1232 = vmatpush1.msra.mxu0 0.0
        %1233 = vmatprep.subr.mxu0 0.0
        %1234 = vmatpush1.msra.mxu0 0.0
        %1235 = vmatprep.subr.mxu0 0.0
        %1236 = vmatpush1.msra.mxu0 0.0
        %1237 = vmatprep.subr.mxu0 0.0
        %1238 = vmatpush1.msra.mxu0 0.0
        %1239 = vmatprep.subr.mxu0 0.0
        %1240 = vmatpush1.msra.mxu0 0.0
        %1241 = vmatprep.subr.mxu0 0.0
        %1242 = vmatpush1.msra.mxu0 0.0
        %1243 = vmatprep.subr.mxu0 0.0
        %1244 = vmatpush1.msra.mxu0 0.0
        %1245 = vmatprep.subr.mxu0 0.0
        %1246 = vmatpush1.msra.mxu0 0.0
        %1247 = vmatprep.subr.mxu0 0.0
        %1248 = vmatpush1.msra.mxu0 0.0
        %1249 = vmatprep.subr.mxu0 0.0
        %1250 = vmatpush1.msra.mxu0 0.0
        %1251 = vmatprep.subr.mxu0 0.0
        %1252 = vmatpush1.msra.mxu0 0.0
        %1253 = vmatprep.subr.mxu0 0.0
        %1254 = vmatpush1.msra.mxu0 0.0
        %1255 = vmatprep.subr.mxu0 0.0
        %1256 = vmatpush1.msra.mxu0 0.0
        %1257 = vmatprep.subr.mxu0 0.0
        %1258 = vmatpush1.msra.mxu0 0.0
        %1259 = vmatprep.subr.mxu0 0.0
        %1260 = vmatpush1.msra.mxu0 0.0
        %1261 = vmatprep.subr.mxu0 0.0
        %1262 = vmatpush1.msra.mxu0 0.0
        %1263 = vmatprep.subr.mxu0 0.0
        %1264 = vmatpush1.msra.mxu0 0.0
        %1265 = vmatprep.subr.mxu0 0.0
        %1266 = vmatpush1.msra.mxu0 0.0
        %1267 = vmatprep.subr.mxu0 0.0
        %1268 = vmatpush1.msra.mxu0 0.0
        %1269 = vmatprep.subr.mxu0 0.0
        %1270 = vmatpush1.msra.mxu0 0.0
        %1271 = vmatprep.subr.mxu0 0.0
        %1272 = vmatpush1.msra.mxu0 0.0
        %1273 = vmatprep.subr.mxu0 0.0
        %1274 = vmatpush1.msra.mxu0 0.0
        %1275 = vmatprep.mubr.f32.mxu0 0.0
        %1276 = vmatmul.mubr.f32.gmra.mrb[0].mxu0 %v1129
        %v1277 = vpop.f32.mrb[0].mxu0
        %v1278 = vadd.f32 0.0, %v1277
        %v1279 = vpop.f32.mrb[0].mxu0
        %1280 = vmatprep.mubr.f32.mxu0 0.0
        %1281 = vmatmul.mubr.f32.gmra.mrb[0].mxu0 %v1132
        %v1282 = vpop.f32.mrb[0].mxu0
        %v1283 = vadd.f32 0.0, %v1282
        %v1284 = vpop.f32.mrb[0].mxu0
        %1285 = vdwg.mxu0
        %1292 = vrot.lane.b32.xlu0 %v1201, 18
        %v1293 = vpop.permute.xlu0 %1292
        %1294 = vrot.lane.b32.xlu0 %v1203, 18
        %v1295 = vpop.permute.xlu0 %1294
        %1296 = vrot.lane.b32.xlu0 %v1278, 18
        %v1297 = vpop.permute.xlu0 %1296
        %1298 = vrot.lane.b32.xlu0 %v1207, 18
        %v1299 = vpop.permute.xlu0 %1298
        %1300 = vrot.lane.b32.xlu0 %v1209, 18
        %v1301 = vpop.permute.xlu0 %1300
        %1302 = vrot.lane.b32.xlu0 %v1283, 18
        %v1303 = vpop.permute.xlu0 %1302
        %v1304 = vsel %vm1061, %v1293, %v1295
        %v1305 = vsel %vm1061, %v1295, %v1297
        %v1306 = vsel %vm1061, %v1299, %v1301
        %v1307 = vsel %vm1061, %v1301, %v1303
        %v1314 = vadd.f32 %v1085, %v1293
        %v1315 = vadd.f32 %v1086, %v1304
        %v1316 = vadd.f32 %v1087, %v1305
        %v1317 = vadd.f32 %v1088, %v1299
        %v1318 = vadd.f32 %v1089, %v1306
        %v1319 = vadd.f32 %v1090, %v1307
        %1320 = vst.msk [vmem:[#allocation2] sm:$0xff] %vm1078, %v1314
        %1321 = vst [vmem:[#allocation2 + $0x8] sm:$0xff] %v1315
        %1322 = vst.msk [vmem:[#allocation2 + $0x10] sm:$0xff] %vm436, %v1316
        %1323 = vst.msk [vmem:[#allocation2 + $0x18] sm:$0xff] %vm1078, %v1317
        %1324 = vst [vmem:[#allocation2 + $0x20] sm:$0xff] %v1318
        %1325 = vst.msk [vmem:[#allocation2 + $0x28] sm:$0xff] %vm436, %v1319
        %v1326 = vld [vmem:[#allocation2] sm:$0xff]
        %v1327 = vld [vmem:[#allocation2 + $0x8] sm:$0xff]
        %v1328 = vld [vmem:[#allocation2 + $0x10] sm:$0xff]
        %v1329 = vld [vmem:[#allocation2 + $0x18] sm:$0xff]
        %v1330 = vld [vmem:[#allocation2 + $0x20] sm:$0xff]
        %v1331 = vld [vmem:[#allocation2 + $0x28] sm:$0xff]
        %s1332 = scalar_lea.vmem [#allocation8], 32
        %v1333 = vld [vmem:[%s1332] sm:$0xff]
        %v1334 = vld [vmem:[%s1332 + $0x8] sm:$0xff]
        %v1335 = vld [vmem:[%s224] sm:$0xff]
        %v1336 = vld [vmem:[%s224 + $0x8] sm:$0xff]
        %v1337 = vld [vmem:[%s224 + $0x10] sm:$0xff]
        %v1338 = vld [vmem:[%s224 + $0x18] sm:$0xff]
        %v1339 = vld [vmem:[%s224 + $0x20] sm:$0xff]
        %v1340 = vld [vmem:[%s224 + $0x28] sm:$0xff]
        %1347 = vrot.lane.b32.xlu0 %v1335, 126
        %v1348 = vpop.permute.xlu0 %1347
        %1349 = vrot.lane.b32.xlu0 %v1336, 126
        %v1350 = vpop.permute.xlu0 %1349
        %1351 = vrot.lane.b32.xlu0 %v1337, 126
        %v1352 = vpop.permute.xlu0 %1351
        %1353 = vrot.lane.b32.xlu0 %v1338, 126
        %v1354 = vpop.permute.xlu0 %1353
        %1355 = vrot.lane.b32.xlu0 %v1339, 126
        %v1356 = vpop.permute.xlu0 %1355
        %1357 = vrot.lane.b32.xlu0 %v1340, 126
        %v1358 = vpop.permute.xlu0 %1357
        %v1359 = vsel %vm689, %v1348, %v1350
        %v1360 = vsel %vm689, %v1350, %v1352
        %v1361 = vsel %vm689, %v1354, %v1356
        %v1362 = vsel %vm689, %v1356, %v1358
        %v1370 = vsel %vm275, %v1333, 0
        %v1373 = vsel %vm275, %v1334, 0
        %1375 = vmatprep.subr.mxu0 %v1360
        %1376 = vmatpush1.msra.mxu0 %v1359
        %1377 = vmatprep.subr.mxu0 %v1362
        %1378 = vmatpush1.msra.mxu0 %v1361
        %1379 = vmatprep.subr.mxu0 0.0
        %1380 = vmatpush1.msra.mxu0 0.0
        %1381 = vmatprep.subr.mxu0 0.0
        %1382 = vmatpush1.msra.mxu0 0.0
        %1383 = vmatprep.subr.mxu0 0.0
        %1384 = vmatpush1.msra.mxu0 0.0
        %1385 = vmatprep.subr.mxu0 0.0
        %1386 = vmatpush1.msra.mxu0 0.0
        %1387 = vmatprep.subr.mxu0 0.0
        %1388 = vmatpush1.msra.mxu0 0.0
        %1389 = vmatprep.subr.mxu0 0.0
        %1390 = vmatpush1.msra.mxu0 0.0
        %1391 = vmatprep.subr.mxu0 0.0
        %1392 = vmatpush1.msra.mxu0 0.0
        %1393 = vmatprep.subr.mxu0 0.0
        %1394 = vmatpush1.msra.mxu0 0.0
        %1395 = vmatprep.subr.mxu0 0.0
        %1396 = vmatpush1.msra.mxu0 0.0
        %1397 = vmatprep.subr.mxu0 0.0
        %1398 = vmatpush1.msra.mxu0 0.0
        %1399 = vmatprep.subr.mxu0 0.0
        %1400 = vmatpush1.msra.mxu0 0.0
        %1401 = vmatprep.subr.mxu0 0.0
        %1402 = vmatpush1.msra.mxu0 0.0
        %1403 = vmatprep.subr.mxu0 0.0
        %1404 = vmatpush1.msra.mxu0 0.0
        %1405 = vmatprep.subr.mxu0 0.0
        %1406 = vmatpush1.msra.mxu0 0.0
        %1407 = vmatprep.subr.mxu0 0.0
        %1408 = vmatpush1.msra.mxu0 0.0
        %1409 = vmatprep.subr.mxu0 0.0
        %1410 = vmatpush1.msra.mxu0 0.0
        %1411 = vmatprep.subr.mxu0 0.0
        %1412 = vmatpush1.msra.mxu0 0.0
        %1413 = vmatprep.subr.mxu0 0.0
        %1414 = vmatpush1.msra.mxu0 0.0
        %1415 = vmatprep.subr.mxu0 0.0
        %1416 = vmatpush1.msra.mxu0 0.0
        %1417 = vmatprep.subr.mxu0 0.0
        %1418 = vmatpush1.msra.mxu0 0.0
        %1419 = vmatprep.subr.mxu0 0.0
        %1420 = vmatpush1.msra.mxu0 0.0
        %1421 = vmatprep.subr.mxu0 0.0
        %1422 = vmatpush1.msra.mxu0 0.0
        %1423 = vmatprep.subr.mxu0 0.0
        %1424 = vmatpush1.msra.mxu0 0.0
        %1425 = vmatprep.subr.mxu0 0.0
        %1426 = vmatpush1.msra.mxu0 0.0
        %1427 = vmatprep.subr.mxu0 0.0
        %1428 = vmatpush1.msra.mxu0 0.0
        %1429 = vmatprep.subr.mxu0 0.0
        %1430 = vmatpush1.msra.mxu0 0.0
        %1431 = vmatprep.subr.mxu0 0.0
        %1432 = vmatpush1.msra.mxu0 0.0
        %1433 = vmatprep.subr.mxu0 0.0
        %1434 = vmatpush1.msra.mxu0 0.0
        %1435 = vmatprep.subr.mxu0 0.0
        %1436 = vmatpush1.msra.mxu0 0.0
        %1437 = vmatprep.subr.mxu0 0.0
        %1438 = vmatpush1.msra.mxu0 0.0
        %1439 = vmatprep.mubr.f32.mxu0 0.0
        %1440 = vmatmul.mubr.f32.gmra.mrb[0].mxu0 %v1370
        %v1441 = vpop.f32.mrb[0].mxu0
        %v1442 = vadd.f32 0.0, %v1441
        %v1443 = vpop.f32.mrb[0].mxu0
        %v1444 = vadd.f32 0.0, %v1443
        %1445 = vmatprep.mubr.f32.mxu0 0.0
        %1446 = vmatmul.mubr.f32.gmra.mrb[0].mxu0 %v1373
        %v1447 = vpop.f32.mrb[0].mxu0
        %v1448 = vadd.f32 0.0, %v1447
        %v1449 = vpop.f32.mrb[0].mxu0
        %v1450 = vadd.f32 0.0, %v1449
        %1451 = vdwg.mxu0
        %1452 = vmatprep.subr.mxu0 0.0
        %1453 = vmatpush1.msra.mxu0 %v1352
        %1454 = vmatprep.subr.mxu0 0.0
        %1455 = vmatpush1.msra.mxu0 %v1358
        %1456 = vmatprep.subr.mxu0 0.0
        %1457 = vmatpush1.msra.mxu0 0.0
        %1458 = vmatprep.subr.mxu0 0.0
        %1459 = vmatpush1.msra.mxu0 0.0
        %1460 = vmatprep.subr.mxu0 0.0
        %1461 = vmatpush1.msra.mxu0 0.0
        %1462 = vmatprep.subr.mxu0 0.0
        %1463 = vmatpush1.msra.mxu0 0.0
        %1464 = vmatprep.subr.mxu0 0.0
        %1465 = vmatpush1.msra.mxu0 0.0
        %1466 = vmatprep.subr.mxu0 0.0
        %1467 = vmatpush1.msra.mxu0 0.0
        %1468 = vmatprep.subr.mxu0 0.0
        %1469 = vmatpush1.msra.mxu0 0.0
        %1470 = vmatprep.subr.mxu0 0.0
        %1471 = vmatpush1.msra.mxu0 0.0
        %1472 = vmatprep.subr.mxu0 0.0
        %1473 = vmatpush1.msra.mxu0 0.0
        %1474 = vmatprep.subr.mxu0 0.0
        %1475 = vmatpush1.msra.mxu0 0.0
        %1476 = vmatprep.subr.mxu0 0.0
        %1477 = vmatpush1.msra.mxu0 0.0
        %1478 = vmatprep.subr.mxu0 0.0
        %1479 = vmatpush1.msra.mxu0 0.0
        %1480 = vmatprep.subr.mxu0 0.0
        %1481 = vmatpush1.msra.mxu0 0.0
        %1482 = vmatprep.subr.mxu0 0.0
        %1483 = vmatpush1.msra.mxu0 0.0
        %1484 = vmatprep.subr.mxu0 0.0
        %1485 = vmatpush1.msra.mxu0 0.0
        %1486 = vmatprep.subr.mxu0 0.0
        %1487 = vmatpush1.msra.mxu0 0.0
        %1488 = vmatprep.subr.mxu0 0.0
        %1489 = vmatpush1.msra.mxu0 0.0
        %1490 = vmatprep.subr.mxu0 0.0
        %1491 = vmatpush1.msra.mxu0 0.0
        %1492 = vmatprep.subr.mxu0 0.0
        %1493 = vmatpush1.msra.mxu0 0.0
        %1494 = vmatprep.subr.mxu0 0.0
        %1495 = vmatpush1.msra.mxu0 0.0
        %1496 = vmatprep.subr.mxu0 0.0
        %1497 = vmatpush1.msra.mxu0 0.0
        %1498 = vmatprep.subr.mxu0 0.0
        %1499 = vmatpush1.msra.mxu0 0.0
        %1500 = vmatprep.subr.mxu0 0.0
        %1501 = vmatpush1.msra.mxu0 0.0
        %1502 = vmatprep.subr.mxu0 0.0
        %1503 = vmatpush1.msra.mxu0 0.0
        %1504 = vmatprep.subr.mxu0 0.0
        %1505 = vmatpush1.msra.mxu0 0.0
        %1506 = vmatprep.subr.mxu0 0.0
        %1507 = vmatpush1.msra.mxu0 0.0
        %1508 = vmatprep.subr.mxu0 0.0
        %1509 = vmatpush1.msra.mxu0 0.0
        %1510 = vmatprep.subr.mxu0 0.0
        %1511 = vmatpush1.msra.mxu0 0.0
        %1512 = vmatprep.subr.mxu0 0.0
        %1513 = vmatpush1.msra.mxu0 0.0
        %1514 = vmatprep.subr.mxu0 0.0
        %1515 = vmatpush1.msra.mxu0 0.0
        %1516 = vmatprep.mubr.f32.mxu0 0.0
        %1517 = vmatmul.mubr.f32.gmra.mrb[0].mxu0 %v1370
        %v1518 = vpop.f32.mrb[0].mxu0
        %v1519 = vadd.f32 0.0, %v1518
        %v1520 = vpop.f32.mrb[0].mxu0
        %1521 = vmatprep.mubr.f32.mxu0 0.0
        %1522 = vmatmul.mubr.f32.gmra.mrb[0].mxu0 %v1373
        %v1523 = vpop.f32.mrb[0].mxu0
        %v1524 = vadd.f32 0.0, %v1523
        %v1525 = vpop.f32.mrb[0].mxu0
        %1526 = vdwg.mxu0
        %1533 = vrot.lane.b32.xlu0 %v1442, 18
        %v1534 = vpop.permute.xlu0 %1533
        %1535 = vrot.lane.b32.xlu0 %v1444, 18
        %v1536 = vpop.permute.xlu0 %1535
        %1537 = vrot.lane.b32.xlu0 %v1519, 18
        %v1538 = vpop.permute.xlu0 %1537
        %1539 = vrot.lane.b32.xlu0 %v1448, 18
        %v1540 = vpop.permute.xlu0 %1539
        %1541 = vrot.lane.b32.xlu0 %v1450, 18
        %v1542 = vpop.permute.xlu0 %1541
        %1543 = vrot.lane.b32.xlu0 %v1524, 18
        %v1544 = vpop.permute.xlu0 %1543
        %v1545 = vsel %vm1061, %v1534, %v1536
        %v1546 = vsel %vm1061, %v1536, %v1538
        %v1547 = vsel %vm1061, %v1540, %v1542
        %v1548 = vsel %vm1061, %v1542, %v1544
        %v1555 = vadd.f32 %v1326, %v1534
        %v1556 = vadd.f32 %v1327, %v1545
        %v1557 = vadd.f32 %v1328, %v1546
        %v1558 = vadd.f32 %v1329, %v1540
        %v1559 = vadd.f32 %v1330, %v1547
        %v1560 = vadd.f32 %v1331, %v1548
        %1561 = vst.msk [vmem:[#allocation2] sm:$0xff] %vm1078, %v1555
        %1562 = vst [vmem:[#allocation2 + $0x8] sm:$0xff] %v1556
        %1563 = vst.msk [vmem:[#allocation2 + $0x10] sm:$0xff] %vm436, %v1557
        %1564 = vst.msk [vmem:[#allocation2 + $0x18] sm:$0xff] %vm1078, %v1558
        %1565 = vst [vmem:[#allocation2 + $0x20] sm:$0xff] %v1559
        %1566 = vst.msk [vmem:[#allocation2 + $0x28] sm:$0xff] %vm436, %v1560
        %v1567 = vld [vmem:[#allocation2] sm:$0xff]
        %v1568 = vld [vmem:[#allocation2 + $0x18] sm:$0xff]
        %v1569 = vld [vmem:[#allocation8] sm:$0xff]
        %v1570 = vld [vmem:[#allocation8 + $0x8] sm:$0xff]
        %v1571 = vld [vmem:[%s233] sm:$0xff]
        %v1572 = vld [vmem:[%s233 + $0x8] sm:$0xff]
        %v1574 = vsel %vm275, %v1569, 0
        %v1577 = vsel %vm275, %v1570, 0
        %1579 = vmatprep.subr.mxu0 0.0
        %1580 = vmatpush1.msra.mxu0 %v1571
        %1581 = vmatprep.subr.mxu0 0.0
        %1582 = vmatpush1.msra.mxu0 %v1572
        %1583 = vmatprep.subr.mxu0 0.0
        %1584 = vmatpush1.msra.mxu0 0.0
        %1585 = vmatprep.subr.mxu0 0.0
        %1586 = vmatpush1.msra.mxu0 0.0
        %1587 = vmatprep.subr.mxu0 0.0
        %1588 = vmatpush1.msra.mxu0 0.0
        %1589 = vmatprep.subr.mxu0 0.0
        %1590 = vmatpush1.msra.mxu0 0.0
        %1591 = vmatprep.subr.mxu0 0.0
        %1592 = vmatpush1.msra.mxu0 0.0
        %1593 = vmatprep.subr.mxu0 0.0
        %1594 = vmatpush1.msra.mxu0 0.0
        %1595 = vmatprep.subr.mxu0 0.0
        %1596 = vmatpush1.msra.mxu0 0.0
        %1597 = vmatprep.subr.mxu0 0.0
        %1598 = vmatpush1.msra.mxu0 0.0
        %1599 = vmatprep.subr.mxu0 0.0
        %1600 = vmatpush1.msra.mxu0 0.0
        %1601 = vmatprep.subr.mxu0 0.0
        %1602 = vmatpush1.msra.mxu0 0.0
        %1603 = vmatprep.subr.mxu0 0.0
        %1604 = vmatpush1.msra.mxu0 0.0
        %1605 = vmatprep.subr.mxu0 0.0
        %1606 = vmatpush1.msra.mxu0 0.0
        %1607 = vmatprep.subr.mxu0 0.0
        %1608 = vmatpush1.msra.mxu0 0.0
        %1609 = vmatprep.subr.mxu0 0.0
        %1610 = vmatpush1.msra.mxu0 0.0
        %1611 = vmatprep.subr.mxu0 0.0
        %1612 = vmatpush1.msra.mxu0 0.0
        %1613 = vmatprep.subr.mxu0 0.0
        %1614 = vmatpush1.msra.mxu0 0.0
        %1615 = vmatprep.subr.mxu0 0.0
        %1616 = vmatpush1.msra.mxu0 0.0
        %1617 = vmatprep.subr.mxu0 0.0
        %1618 = vmatpush1.msra.mxu0 0.0
        %1619 = vmatprep.subr.mxu0 0.0
        %1620 = vmatpush1.msra.mxu0 0.0
        %1621 = vmatprep.subr.mxu0 0.0
        %1622 = vmatpush1.msra.mxu0 0.0
        %1623 = vmatprep.subr.mxu0 0.0
        %1624 = vmatpush1.msra.mxu0 0.0
        %1625 = vmatprep.subr.mxu0 0.0
        %1626 = vmatpush1.msra.mxu0 0.0
        %1627 = vmatprep.subr.mxu0 0.0
        %1628 = vmatpush1.msra.mxu0 0.0
        %1629 = vmatprep.subr.mxu0 0.0
        %1630 = vmatpush1.msra.mxu0 0.0
        %1631 = vmatprep.subr.mxu0 0.0
        %1632 = vmatpush1.msra.mxu0 0.0
        %1633 = vmatprep.subr.mxu0 0.0
        %1634 = vmatpush1.msra.mxu0 0.0
        %1635 = vmatprep.subr.mxu0 0.0
        %1636 = vmatpush1.msra.mxu0 0.0
        %1637 = vmatprep.subr.mxu0 0.0
        %1638 = vmatpush1.msra.mxu0 0.0
        %1639 = vmatprep.subr.mxu0 0.0
        %1640 = vmatpush1.msra.mxu0 0.0
        %1641 = vmatprep.subr.mxu0 0.0
        %1642 = vmatpush1.msra.mxu0 0.0
        %1643 = vmatprep.mubr.f32.mxu0 0.0
        %1644 = vmatmul.mubr.f32.gmra.mrb[0].mxu0 %v1574
        %v1645 = vpop.f32.mrb[0].mxu0
        %v1646 = vadd.f32 0.0, %v1645
        %v1647 = vpop.f32.mrb[0].mxu0
        %1648 = vmatprep.mubr.f32.mxu0 0.0
        %1649 = vmatmul.mubr.f32.gmra.mrb[0].mxu0 %v1577
        %v1650 = vpop.f32.mrb[0].mxu0
        %v1651 = vadd.f32 0.0, %v1650
        %v1652 = vpop.f32.mrb[0].mxu0
        %1653 = vdwg.mxu0
        %v1654 = vadd.f32 %v1567, %v1646
        %v1655 = vadd.f32 %v1568, %v1651
        %1656 = vst.msk [vmem:[#allocation2] sm:$0xff] %vm1061, %v1654
        %1657 = vst.msk [vmem:[#allocation2 + $0x18] sm:$0xff] %vm1061, %v1655
        %v1658 = vld [vmem:[#allocation2] sm:$0xff]
        %v1659 = vld [vmem:[#allocation2 + $0x18] sm:$0xff]
        %v1660 = vld [vmem:[%s1091] sm:$0xff]
        %v1661 = vld [vmem:[%s1091 + $0x8] sm:$0xff]
        %v1662 = vld [vmem:[%s233] sm:$0xff]
        %v1663 = vld [vmem:[%s233 + $0x8] sm:$0xff]
        %1666 = vrot.lane.b32.xlu0 %v1662, 127
        %v1667 = vpop.permute.xlu0 %1666
        %1668 = vrot.lane.b32.xlu0 %v1663, 127
        %v1669 = vpop.permute.xlu0 %1668
        %v1673 = vsel %vm275, %v1660, 0
        %v1676 = vsel %vm275, %v1661, 0
        %1678 = vmatprep.subr.mxu0 0.0
        %1679 = vmatpush1.msra.mxu0 %v1667
        %1680 = vmatprep.subr.mxu0 0.0
        %1681 = vmatpush1.msra.mxu0 %v1669
        %1682 = vmatprep.subr.mxu0 0.0
        %1683 = vmatpush1.msra.mxu0 0.0
        %1684 = vmatprep.subr.mxu0 0.0
        %1685 = vmatpush1.msra.mxu0 0.0
        %1686 = vmatprep.subr.mxu0 0.0
        %1687 = vmatpush1.msra.mxu0 0.0
        %1688 = vmatprep.subr.mxu0 0.0
        %1689 = vmatpush1.msra.mxu0 0.0
        %1690 = vmatprep.subr.mxu0 0.0
        %1691 = vmatpush1.msra.mxu0 0.0
        %1692 = vmatprep.subr.mxu0 0.0
        %1693 = vmatpush1.msra.mxu0 0.0
        %1694 = vmatprep.subr.mxu0 0.0
        %1695 = vmatpush1.msra.mxu0 0.0
        %1696 = vmatprep.subr.mxu0 0.0
        %1697 = vmatpush1.msra.mxu0 0.0
        %1698 = vmatprep.subr.mxu0 0.0
        %1699 = vmatpush1.msra.mxu0 0.0
        %1700 = vmatprep.subr.mxu0 0.0
        %1701 = vmatpush1.msra.mxu0 0.0
        %1702 = vmatprep.subr.mxu0 0.0
        %1703 = vmatpush1.msra.mxu0 0.0
        %1704 = vmatprep.subr.mxu0 0.0
        %1705 = vmatpush1.msra.mxu0 0.0
        %1706 = vmatprep.subr.mxu0 0.0
        %1707 = vmatpush1.msra.mxu0 0.0
        %1708 = vmatprep.subr.mxu0 0.0
        %1709 = vmatpush1.msra.mxu0 0.0
        %1710 = vmatprep.subr.mxu0 0.0
        %1711 = vmatpush1.msra.mxu0 0.0
        %1712 = vmatprep.subr.mxu0 0.0
        %1713 = vmatpush1.msra.mxu0 0.0
        %1714 = vmatprep.subr.mxu0 0.0
        %1715 = vmatpush1.msra.mxu0 0.0
        %1716 = vmatprep.subr.mxu0 0.0
        %1717 = vmatpush1.msra.mxu0 0.0
        %1718 = vmatprep.subr.mxu0 0.0
        %1719 = vmatpush1.msra.mxu0 0.0
        %1720 = vmatprep.subr.mxu0 0.0
        %1721 = vmatpush1.msra.mxu0 0.0
        %1722 = vmatprep.subr.mxu0 0.0
        %1723 = vmatpush1.msra.mxu0 0.0
        %1724 = vmatprep.subr.mxu0 0.0
        %1725 = vmatpush1.msra.mxu0 0.0
        %1726 = vmatprep.subr.mxu0 0.0
        %1727 = vmatpush1.msra.mxu0 0.0
        %1728 = vmatprep.subr.mxu0 0.0
        %1729 = vmatpush1.msra.mxu0 0.0
        %1730 = vmatprep.subr.mxu0 0.0
        %1731 = vmatpush1.msra.mxu0 0.0
        %1732 = vmatprep.subr.mxu0 0.0
        %1733 = vmatpush1.msra.mxu0 0.0
        %1734 = vmatprep.subr.mxu0 0.0
        %1735 = vmatpush1.msra.mxu0 0.0
        %1736 = vmatprep.subr.mxu0 0.0
        %1737 = vmatpush1.msra.mxu0 0.0
        %1738 = vmatprep.subr.mxu0 0.0
        %1739 = vmatpush1.msra.mxu0 0.0
        %1740 = vmatprep.subr.mxu0 0.0
        %1741 = vmatpush1.msra.mxu0 0.0
        %1742 = vmatprep.mubr.f32.mxu0 0.0
        %1743 = vmatmul.mubr.f32.gmra.mrb[0].mxu0 %v1673
        %v1744 = vpop.f32.mrb[0].mxu0
        %v1745 = vadd.f32 0.0, %v1744
        %v1746 = vpop.f32.mrb[0].mxu0
        %1747 = vmatprep.mubr.f32.mxu0 0.0
        %1748 = vmatmul.mubr.f32.gmra.mrb[0].mxu0 %v1676
        %v1749 = vpop.f32.mrb[0].mxu0
        %v1750 = vadd.f32 0.0, %v1749
        %v1751 = vpop.f32.mrb[0].mxu0
        %1752 = vdwg.mxu0
        %v1753 = vadd.f32 %v1658, %v1745
        %v1754 = vadd.f32 %v1659, %v1750
        %vm1755 = vcmask 138240
        %1756 = vst.msk [vmem:[#allocation2] sm:$0xff] %vm1755, %v1753
        %1757 = vst.msk [vmem:[#allocation2 + $0x18] sm:$0xff] %vm1755, %v1754
        %v1758 = vld [vmem:[#allocation2] sm:$0xff]
        %v1759 = vld [vmem:[#allocation2 + $0x18] sm:$0xff]
        %v1760 = vld [vmem:[%s1332] sm:$0xff]
        %v1761 = vld [vmem:[%s1332 + $0x8] sm:$0xff]
        %v1762 = vld [vmem:[%s233] sm:$0xff]
        %v1763 = vld [vmem:[%s233 + $0x8] sm:$0xff]
        %1766 = vrot.lane.b32.xlu0 %v1762, 126
        %v1767 = vpop.permute.xlu0 %1766
        %1768 = vrot.lane.b32.xlu0 %v1763, 126
        %v1769 = vpop.permute.xlu0 %1768
        %v1773 = vsel %vm275, %v1760, 0
        %v1776 = vsel %vm275, %v1761, 0
        %1778 = vmatprep.subr.mxu0 0.0
        %1779 = vmatpush1.msra.mxu0 %v1767
        %1780 = vmatprep.subr.mxu0 0.0
        %1781 = vmatpush1.msra.mxu0 %v1769
        %1782 = vmatprep.subr.mxu0 0.0
        %1783 = vmatpush1.msra.mxu0 0.0
        %1784 = vmatprep.subr.mxu0 0.0
        %1785 = vmatpush1.msra.mxu0 0.0
        %1786 = vmatprep.subr.mxu0 0.0
        %1787 = vmatpush1.msra.mxu0 0.0
        %1788 = vmatprep.subr.mxu0 0.0
        %1789 = vmatpush1.msra.mxu0 0.0
        %1790 = vmatprep.subr.mxu0 0.0
        %1791 = vmatpush1.msra.mxu0 0.0
        %1792 = vmatprep.subr.mxu0 0.0
        %1793 = vmatpush1.msra.mxu0 0.0
        %1794 = vmatprep.subr.mxu0 0.0
        %1795 = vmatpush1.msra.mxu0 0.0
        %1796 = vmatprep.subr.mxu0 0.0
        %1797 = vmatpush1.msra.mxu0 0.0
        %1798 = vmatprep.subr.mxu0 0.0
        %1799 = vmatpush1.msra.mxu0 0.0
        %1800 = vmatprep.subr.mxu0 0.0
        %1801 = vmatpush1.msra.mxu0 0.0
        %1802 = vmatprep.subr.mxu0 0.0
        %1803 = vmatpush1.msra.mxu0 0.0
        %1804 = vmatprep.subr.mxu0 0.0
        %1805 = vmatpush1.msra.mxu0 0.0
        %1806 = vmatprep.subr.mxu0 0.0
        %1807 = vmatpush1.msra.mxu0 0.0
        %1808 = vmatprep.subr.mxu0 0.0
        %1809 = vmatpush1.msra.mxu0 0.0
        %1810 = vmatprep.subr.mxu0 0.0
        %1811 = vmatpush1.msra.mxu0 0.0
        %1812 = vmatprep.subr.mxu0 0.0
        %1813 = vmatpush1.msra.mxu0 0.0
        %1814 = vmatprep.subr.mxu0 0.0
        %1815 = vmatpush1.msra.mxu0 0.0
        %1816 = vmatprep.subr.mxu0 0.0
        %1817 = vmatpush1.msra.mxu0 0.0
        %1818 = vmatprep.subr.mxu0 0.0
        %1819 = vmatpush1.msra.mxu0 0.0
        %1820 = vmatprep.subr.mxu0 0.0
        %1821 = vmatpush1.msra.mxu0 0.0
        %1822 = vmatprep.subr.mxu0 0.0
        %1823 = vmatpush1.msra.mxu0 0.0
        %1824 = vmatprep.subr.mxu0 0.0
        %1825 = vmatpush1.msra.mxu0 0.0
        %1826 = vmatprep.subr.mxu0 0.0
        %1827 = vmatpush1.msra.mxu0 0.0
        %1828 = vmatprep.subr.mxu0 0.0
        %1829 = vmatpush1.msra.mxu0 0.0
        %1830 = vmatprep.subr.mxu0 0.0
        %1831 = vmatpush1.msra.mxu0 0.0
        %1832 = vmatprep.subr.mxu0 0.0
        %1833 = vmatpush1.msra.mxu0 0.0
        %1834 = vmatprep.subr.mxu0 0.0
        %1835 = vmatpush1.msra.mxu0 0.0
        %1836 = vmatprep.subr.mxu0 0.0
        %1837 = vmatpush1.msra.mxu0 0.0
        %1838 = vmatprep.subr.mxu0 0.0
        %1839 = vmatpush1.msra.mxu0 0.0
        %1840 = vmatprep.subr.mxu0 0.0
        %1841 = vmatpush1.msra.mxu0 0.0
        %1842 = vmatprep.mubr.f32.mxu0 0.0
        %1843 = vmatmul.mubr.f32.gmra.mrb[0].mxu0 %v1773
        %v1844 = vpop.f32.mrb[0].mxu0
        %v1845 = vadd.f32 0.0, %v1844
        %v1846 = vpop.f32.mrb[0].mxu0
        %1847 = vmatprep.mubr.f32.mxu0 0.0
        %1848 = vmatmul.mubr.f32.gmra.mrb[0].mxu0 %v1776
        %v1849 = vpop.f32.mrb[0].mxu0
        %v1850 = vadd.f32 0.0, %v1849
        %v1851 = vpop.f32.mrb[0].mxu0
        %1852 = vdwg.mxu0
        %v1853 = vadd.f32 %v1758, %v1845
        %v1854 = vadd.f32 %v1759, %v1850
        %1855 = vst.msk [vmem:[#allocation2] sm:$0xff] %vm275, %v1853
        %1856 = vst.msk [vmem:[#allocation2 + $0x18] sm:$0xff] %vm275, %v1854
        %v1857 = vld [vmem:[#allocation2] sm:$0xff]
        %v1858 = vld [vmem:[#allocation2 + $0x8] sm:$0xff]
        %v1859 = vld [vmem:[#allocation2 + $0x10] sm:$0xff]
        %v1860 = vld [vmem:[#allocation2 + $0x18] sm:$0xff]
        %v1861 = vld [vmem:[#allocation2 + $0x20] sm:$0xff]
        %v1862 = vld [vmem:[#allocation2 + $0x28] sm:$0xff]
        %s1863 = scalar_lea.vmem [#allocation8], 96
        %v1864 = vld [vmem:[%s1863] sm:$0xff]
        %v1865 = vld [vmem:[%s1863 + $0x8] sm:$0xff]
        %v1866 = vld [vmem:[%s224] sm:$0xff]
        %v1867 = vld [vmem:[%s224 + $0x8] sm:$0xff]
        %v1868 = vld [vmem:[%s224 + $0x10] sm:$0xff]
        %v1869 = vld [vmem:[%s224 + $0x18] sm:$0xff]
        %v1870 = vld [vmem:[%s224 + $0x20] sm:$0xff]
        %v1871 = vld [vmem:[%s224 + $0x28] sm:$0xff]
        %1878 = vrot.lane.b32.xlu0 %v1866, 110
        %v1879 = vpop.permute.xlu0 %1878
        %1880 = vrot.lane.b32.xlu0 %v1867, 110
        %v1881 = vpop.permute.xlu0 %1880
        %1882 = vrot.lane.b32.xlu0 %v1868, 110
        %v1883 = vpop.permute.xlu0 %1882
        %1884 = vrot.lane.b32.xlu0 %v1869, 110
        %v1885 = vpop.permute.xlu0 %1884
        %1886 = vrot.lane.b32.xlu0 %v1870, 110
        %v1887 = vpop.permute.xlu0 %1886
        %1888 = vrot.lane.b32.xlu0 %v1871, 110
        %v1889 = vpop.permute.xlu0 %1888
        %vm1890 = vcmask 900096
        %v1891 = vsel %vm1890, %v1879, %v1881
        %v1892 = vsel %vm1890, %v1881, %v1883
        %v1893 = vsel %vm1890, %v1885, %v1887
        %v1894 = vsel %vm1890, %v1887, %v1889
        %v1902 = vsel %vm275, %v1864, 0
        %v1905 = vsel %vm275, %v1865, 0
        %1907 = vmatprep.subr.mxu0 %v1892
        %1908 = vmatpush1.msra.mxu0 %v1891
        %1909 = vmatprep.subr.mxu0 %v1894
        %1910 = vmatpush1.msra.mxu0 %v1893
        %1911 = vmatprep.subr.mxu0 0.0
        %1912 = vmatpush1.msra.mxu0 0.0
        %1913 = vmatprep.subr.mxu0 0.0
        %1914 = vmatpush1.msra.mxu0 0.0
        %1915 = vmatprep.subr.mxu0 0.0
        %1916 = vmatpush1.msra.mxu0 0.0
        %1917 = vmatprep.subr.mxu0 0.0
        %1918 = vmatpush1.msra.mxu0 0.0
        %1919 = vmatprep.subr.mxu0 0.0
        %1920 = vmatpush1.msra.mxu0 0.0
        %1921 = vmatprep.subr.mxu0 0.0
        %1922 = vmatpush1.msra.mxu0 0.0
        %1923 = vmatprep.subr.mxu0 0.0
        %1924 = vmatpush1.msra.mxu0 0.0
        %1925 = vmatprep.subr.mxu0 0.0
        %1926 = vmatpush1.msra.mxu0 0.0
        %1927 = vmatprep.subr.mxu0 0.0
        %1928 = vmatpush1.msra.mxu0 0.0
        %1929 = vmatprep.subr.mxu0 0.0
        %1930 = vmatpush1.msra.mxu0 0.0
        %1931 = vmatprep.subr.mxu0 0.0
        %1932 = vmatpush1.msra.mxu0 0.0
        %1933 = vmatprep.subr.mxu0 0.0
        %1934 = vmatpush1.msra.mxu0 0.0
        %1935 = vmatprep.subr.mxu0 0.0
        %1936 = vmatpush1.msra.mxu0 0.0
        %1937 = vmatprep.subr.mxu0 0.0
        %1938 = vmatpush1.msra.mxu0 0.0
        %1939 = vmatprep.subr.mxu0 0.0
        %1940 = vmatpush1.msra.mxu0 0.0
        %1941 = vmatprep.subr.mxu0 0.0
        %1942 = vmatpush1.msra.mxu0 0.0
        %1943 = vmatprep.subr.mxu0 0.0
        %1944 = vmatpush1.msra.mxu0 0.0
        %1945 = vmatprep.subr.mxu0 0.0
        %1946 = vmatpush1.msra.mxu0 0.0
        %1947 = vmatprep.subr.mxu0 0.0
        %1948 = vmatpush1.msra.mxu0 0.0
        %1949 = vmatprep.subr.mxu0 0.0
        %1950 = vmatpush1.msra.mxu0 0.0
        %1951 = vmatprep.subr.mxu0 0.0
        %1952 = vmatpush1.msra.mxu0 0.0
        %1953 = vmatprep.subr.mxu0 0.0
        %1954 = vmatpush1.msra.mxu0 0.0
        %1955 = vmatprep.subr.mxu0 0.0
        %1956 = vmatpush1.msra.mxu0 0.0
        %1957 = vmatprep.subr.mxu0 0.0
        %1958 = vmatpush1.msra.mxu0 0.0
        %1959 = vmatprep.subr.mxu0 0.0
        %1960 = vmatpush1.msra.mxu0 0.0
        %1961 = vmatprep.subr.mxu0 0.0
        %1962 = vmatpush1.msra.mxu0 0.0
        %1963 = vmatprep.subr.mxu0 0.0
        %1964 = vmatpush1.msra.mxu0 0.0
        %1965 = vmatprep.subr.mxu0 0.0
        %1966 = vmatpush1.msra.mxu0 0.0
        %1967 = vmatprep.subr.mxu0 0.0
        %1968 = vmatpush1.msra.mxu0 0.0
        %1969 = vmatprep.subr.mxu0 0.0
        %1970 = vmatpush1.msra.mxu0 0.0
        %1971 = vmatprep.mubr.f32.mxu0 0.0
        %1972 = vmatmul.mubr.f32.gmra.mrb[0].mxu0 %v1902
        %v1973 = vpop.f32.mrb[0].mxu0
        %v1974 = vadd.f32 0.0, %v1973
        %v1975 = vpop.f32.mrb[0].mxu0
        %v1976 = vadd.f32 0.0, %v1975
        %1977 = vmatprep.mubr.f32.mxu0 0.0
        %1978 = vmatmul.mubr.f32.gmra.mrb[0].mxu0 %v1905
        %v1979 = vpop.f32.mrb[0].mxu0
        %v1980 = vadd.f32 0.0, %v1979
        %v1981 = vpop.f32.mrb[0].mxu0
        %v1982 = vadd.f32 0.0, %v1981
        %1983 = vdwg.mxu0
        %1984 = vmatprep.subr.mxu0 0.0
        %1985 = vmatpush1.msra.mxu0 %v1883
        %1986 = vmatprep.subr.mxu0 0.0
        %1987 = vmatpush1.msra.mxu0 %v1889
        %1988 = vmatprep.subr.mxu0 0.0
        %1989 = vmatpush1.msra.mxu0 0.0
        %1990 = vmatprep.subr.mxu0 0.0
        %1991 = vmatpush1.msra.mxu0 0.0
        %1992 = vmatprep.subr.mxu0 0.0
        %1993 = vmatpush1.msra.mxu0 0.0
        %1994 = vmatprep.subr.mxu0 0.0
        %1995 = vmatpush1.msra.mxu0 0.0
        %1996 = vmatprep.subr.mxu0 0.0
        %1997 = vmatpush1.msra.mxu0 0.0
        %1998 = vmatprep.subr.mxu0 0.0
        %1999 = vmatpush1.msra.mxu0 0.0
        %2000 = vmatprep.subr.mxu0 0.0
        %2001 = vmatpush1.msra.mxu0 0.0
        %2002 = vmatprep.subr.mxu0 0.0
        %2003 = vmatpush1.msra.mxu0 0.0
        %2004 = vmatprep.subr.mxu0 0.0
        %2005 = vmatpush1.msra.mxu0 0.0
        %2006 = vmatprep.subr.mxu0 0.0
        %2007 = vmatpush1.msra.mxu0 0.0
        %2008 = vmatprep.subr.mxu0 0.0
        %2009 = vmatpush1.msra.mxu0 0.0
        %2010 = vmatprep.subr.mxu0 0.0
        %2011 = vmatpush1.msra.mxu0 0.0
        %2012 = vmatprep.subr.mxu0 0.0
        %2013 = vmatpush1.msra.mxu0 0.0
        %2014 = vmatprep.subr.mxu0 0.0
        %2015 = vmatpush1.msra.mxu0 0.0
        %2016 = vmatprep.subr.mxu0 0.0
        %2017 = vmatpush1.msra.mxu0 0.0
        %2018 = vmatprep.subr.mxu0 0.0
        %2019 = vmatpush1.msra.mxu0 0.0
        %2020 = vmatprep.subr.mxu0 0.0
        %2021 = vmatpush1.msra.mxu0 0.0
        %2022 = vmatprep.subr.mxu0 0.0
        %2023 = vmatpush1.msra.mxu0 0.0
        %2024 = vmatprep.subr.mxu0 0.0
        %2025 = vmatpush1.msra.mxu0 0.0
        %2026 = vmatprep.subr.mxu0 0.0
        %2027 = vmatpush1.msra.mxu0 0.0
        %2028 = vmatprep.subr.mxu0 0.0
        %2029 = vmatpush1.msra.mxu0 0.0
        %2030 = vmatprep.subr.mxu0 0.0
        %2031 = vmatpush1.msra.mxu0 0.0
        %2032 = vmatprep.subr.mxu0 0.0
        %2033 = vmatpush1.msra.mxu0 0.0
        %2034 = vmatprep.subr.mxu0 0.0
        %2035 = vmatpush1.msra.mxu0 0.0
        %2036 = vmatprep.subr.mxu0 0.0
        %2037 = vmatpush1.msra.mxu0 0.0
        %2038 = vmatprep.subr.mxu0 0.0
        %2039 = vmatpush1.msra.mxu0 0.0
        %2040 = vmatprep.subr.mxu0 0.0
        %2041 = vmatpush1.msra.mxu0 0.0
        %2042 = vmatprep.subr.mxu0 0.0
        %2043 = vmatpush1.msra.mxu0 0.0
        %2044 = vmatprep.subr.mxu0 0.0
        %2045 = vmatpush1.msra.mxu0 0.0
        %2046 = vmatprep.subr.mxu0 0.0
        %2047 = vmatpush1.msra.mxu0 0.0
        %2048 = vmatprep.mubr.f32.mxu0 0.0
        %2049 = vmatmul.mubr.f32.gmra.mrb[0].mxu0 %v1902
        %v2050 = vpop.f32.mrb[0].mxu0
        %v2051 = vadd.f32 0.0, %v2050
        %v2052 = vpop.f32.mrb[0].mxu0
        %2053 = vmatprep.mubr.f32.mxu0 0.0
        %2054 = vmatmul.mubr.f32.gmra.mrb[0].mxu0 %v1905
        %v2055 = vpop.f32.mrb[0].mxu0
        %v2056 = vadd.f32 0.0, %v2055
        %v2057 = vpop.f32.mrb[0].mxu0
        %2058 = vdwg.mxu0
        %v2059 = vadd.f32 %v1857, %v1974
        %v2060 = vadd.f32 %v1858, %v1976
        %v2061 = vadd.f32 %v1859, %v2051
        %v2062 = vadd.f32 %v1860, %v1980
        %v2063 = vadd.f32 %v1861, %v1982
        %v2064 = vadd.f32 %v1862, %v2056
        %2065 = vst [vmem:[#allocation2] sm:$0xff] %v2059
        %2066 = vst [vmem:[#allocation2 + $0x8] sm:$0xff] %v2060
        %vm2067 = vcmask 113664
        %2068 = vst.msk [vmem:[#allocation2 + $0x10] sm:$0xff] %vm2067, %v2061
        %2069 = vst [vmem:[#allocation2 + $0x18] sm:$0xff] %v2062
        %2070 = vst [vmem:[#allocation2 + $0x20] sm:$0xff] %v2063
        %2071 = vst.msk [vmem:[#allocation2 + $0x28] sm:$0xff] %vm2067, %v2064
        %v2072 = vld [vmem:[#allocation2] sm:$0xff]
        %v2073 = vld [vmem:[#allocation2 + $0x8] sm:$0xff]
        %v2074 = vld [vmem:[#allocation2 + $0x10] sm:$0xff]
        %v2075 = vld [vmem:[#allocation2 + $0x18] sm:$0xff]
        %v2076 = vld [vmem:[#allocation2 + $0x20] sm:$0xff]
        %v2077 = vld [vmem:[#allocation2 + $0x28] sm:$0xff]
        %s2078 = scalar_lea.vmem [#allocation8], 112
        %v2079 = vld [vmem:[%s2078] sm:$0xff]
        %v2080 = vld [vmem:[%s2078 + $0x8] sm:$0xff]
        %v2081 = vld [vmem:[%s224] sm:$0xff]
        %v2082 = vld [vmem:[%s224 + $0x8] sm:$0xff]
        %v2083 = vld [vmem:[%s224 + $0x10] sm:$0xff]
        %v2084 = vld [vmem:[%s224 + $0x18] sm:$0xff]
        %v2085 = vld [vmem:[%s224 + $0x20] sm:$0xff]
        %v2086 = vld [vmem:[%s224 + $0x28] sm:$0xff]
        %2093 = vrot.lane.b32.xlu0 %v2081, 109
        %v2094 = vpop.permute.xlu0 %2093
        %2095 = vrot.lane.b32.xlu0 %v2082, 109
        %v2096 = vpop.permute.xlu0 %2095
        %2097 = vrot.lane.b32.xlu0 %v2083, 109
        %v2098 = vpop.permute.xlu0 %2097
        %2099 = vrot.lane.b32.xlu0 %v2084, 109
        %v2100 = vpop.permute.xlu0 %2099
        %2101 = vrot.lane.b32.xlu0 %v2085, 109
        %v2102 = vpop.permute.xlu0 %2101
        %2103 = vrot.lane.b32.xlu0 %v2086, 109
        %v2104 = vpop.permute.xlu0 %2103
        %vm2105 = vcmask 891904
        %v2106 = vsel %vm2105, %v2094, %v2096
        %v2107 = vsel %vm2105, %v2096, %v2098
        %v2108 = vsel %vm2105, %v2100, %v2102
        %v2109 = vsel %vm2105, %v2102, %v2104
        %v2117 = vsel %vm275, %v2079, 0
        %v2120 = vsel %vm275, %v2080, 0
        %2122 = vmatprep.subr.mxu0 %v2107
        %2123 = vmatpush1.msra.mxu0 %v2106
        %2124 = vmatprep.subr.mxu0 %v2109
        %2125 = vmatpush1.msra.mxu0 %v2108
        %2126 = vmatprep.subr.mxu0 0.0
        %2127 = vmatpush1.msra.mxu0 0.0
        %2128 = vmatprep.subr.mxu0 0.0
        %2129 = vmatpush1.msra.mxu0 0.0
        %2130 = vmatprep.subr.mxu0 0.0
        %2131 = vmatpush1.msra.mxu0 0.0
        %2132 = vmatprep.subr.mxu0 0.0
        %2133 = vmatpush1.msra.mxu0 0.0
        %2134 = vmatprep.subr.mxu0 0.0
        %2135 = vmatpush1.msra.mxu0 0.0
        %2136 = vmatprep.subr.mxu0 0.0
        %2137 = vmatpush1.msra.mxu0 0.0
        %2138 = vmatprep.subr.mxu0 0.0
        %2139 = vmatpush1.msra.mxu0 0.0
        %2140 = vmatprep.subr.mxu0 0.0
        %2141 = vmatpush1.msra.mxu0 0.0
        %2142 = vmatprep.subr.mxu0 0.0
        %2143 = vmatpush1.msra.mxu0 0.0
        %2144 = vmatprep.subr.mxu0 0.0
        %2145 = vmatpush1.msra.mxu0 0.0
        %2146 = vmatprep.subr.mxu0 0.0
        %2147 = vmatpush1.msra.mxu0 0.0
        %2148 = vmatprep.subr.mxu0 0.0
        %2149 = vmatpush1.msra.mxu0 0.0
        %2150 = vmatprep.subr.mxu0 0.0
        %2151 = vmatpush1.msra.mxu0 0.0
        %2152 = vmatprep.subr.mxu0 0.0
        %2153 = vmatpush1.msra.mxu0 0.0
        %2154 = vmatprep.subr.mxu0 0.0
        %2155 = vmatpush1.msra.mxu0 0.0
        %2156 = vmatprep.subr.mxu0 0.0
        %2157 = vmatpush1.msra.mxu0 0.0
        %2158 = vmatprep.subr.mxu0 0.0
        %2159 = vmatpush1.msra.mxu0 0.0
        %2160 = vmatprep.subr.mxu0 0.0
        %2161 = vmatpush1.msra.mxu0 0.0
        %2162 = vmatprep.subr.mxu0 0.0
        %2163 = vmatpush1.msra.mxu0 0.0
        %2164 = vmatprep.subr.mxu0 0.0
        %2165 = vmatpush1.msra.mxu0 0.0
        %2166 = vmatprep.subr.mxu0 0.0
        %2167 = vmatpush1.msra.mxu0 0.0
        %2168 = vmatprep.subr.mxu0 0.0
        %2169 = vmatpush1.msra.mxu0 0.0
        %2170 = vmatprep.subr.mxu0 0.0
        %2171 = vmatpush1.msra.mxu0 0.0
        %2172 = vmatprep.subr.mxu0 0.0
        %2173 = vmatpush1.msra.mxu0 0.0
        %2174 = vmatprep.subr.mxu0 0.0
        %2175 = vmatpush1.msra.mxu0 0.0
        %2176 = vmatprep.subr.mxu0 0.0
        %2177 = vmatpush1.msra.mxu0 0.0
        %2178 = vmatprep.subr.mxu0 0.0
        %2179 = vmatpush1.msra.mxu0 0.0
        %2180 = vmatprep.subr.mxu0 0.0
        %2181 = vmatpush1.msra.mxu0 0.0
        %2182 = vmatprep.subr.mxu0 0.0
        %2183 = vmatpush1.msra.mxu0 0.0
        %2184 = vmatprep.subr.mxu0 0.0
        %2185 = vmatpush1.msra.mxu0 0.0
        %2186 = vmatprep.mubr.f32.mxu0 0.0
        %2187 = vmatmul.mubr.f32.gmra.mrb[0].mxu0 %v2117
        %v2188 = vpop.f32.mrb[0].mxu0
        %v2189 = vadd.f32 0.0, %v2188
        %v2190 = vpop.f32.mrb[0].mxu0
        %v2191 = vadd.f32 0.0, %v2190
        %2192 = vmatprep.mubr.f32.mxu0 0.0
        %2193 = vmatmul.mubr.f32.gmra.mrb[0].mxu0 %v2120
        %v2194 = vpop.f32.mrb[0].mxu0
        %v2195 = vadd.f32 0.0, %v2194
        %v2196 = vpop.f32.mrb[0].mxu0
        %v2197 = vadd.f32 0.0, %v2196
        %2198 = vdwg.mxu0
        %2199 = vmatprep.subr.mxu0 0.0
        %2200 = vmatpush1.msra.mxu0 %v2098
        %2201 = vmatprep.subr.mxu0 0.0
        %2202 = vmatpush1.msra.mxu0 %v2104
        %2203 = vmatprep.subr.mxu0 0.0
        %2204 = vmatpush1.msra.mxu0 0.0
        %2205 = vmatprep.subr.mxu0 0.0
        %2206 = vmatpush1.msra.mxu0 0.0
        %2207 = vmatprep.subr.mxu0 0.0
        %2208 = vmatpush1.msra.mxu0 0.0
        %2209 = vmatprep.subr.mxu0 0.0
        %2210 = vmatpush1.msra.mxu0 0.0
        %2211 = vmatprep.subr.mxu0 0.0
        %2212 = vmatpush1.msra.mxu0 0.0
        %2213 = vmatprep.subr.mxu0 0.0
        %2214 = vmatpush1.msra.mxu0 0.0
        %2215 = vmatprep.subr.mxu0 0.0
        %2216 = vmatpush1.msra.mxu0 0.0
        %2217 = vmatprep.subr.mxu0 0.0
        %2218 = vmatpush1.msra.mxu0 0.0
        %2219 = vmatprep.subr.mxu0 0.0
        %2220 = vmatpush1.msra.mxu0 0.0
        %2221 = vmatprep.subr.mxu0 0.0
        %2222 = vmatpush1.msra.mxu0 0.0
        %2223 = vmatprep.subr.mxu0 0.0
        %2224 = vmatpush1.msra.mxu0 0.0
        %2225 = vmatprep.subr.mxu0 0.0
        %2226 = vmatpush1.msra.mxu0 0.0
        %2227 = vmatprep.subr.mxu0 0.0
        %2228 = vmatpush1.msra.mxu0 0.0
        %2229 = vmatprep.subr.mxu0 0.0
        %2230 = vmatpush1.msra.mxu0 0.0
        %2231 = vmatprep.subr.mxu0 0.0
        %2232 = vmatpush1.msra.mxu0 0.0
        %2233 = vmatprep.subr.mxu0 0.0
        %2234 = vmatpush1.msra.mxu0 0.0
        %2235 = vmatprep.subr.mxu0 0.0
        %2236 = vmatpush1.msra.mxu0 0.0
        %2237 = vmatprep.subr.mxu0 0.0
        %2238 = vmatpush1.msra.mxu0 0.0
        %2239 = vmatprep.subr.mxu0 0.0
        %2240 = vmatpush1.msra.mxu0 0.0
        %2241 = vmatprep.subr.mxu0 0.0
        %2242 = vmatpush1.msra.mxu0 0.0
        %2243 = vmatprep.subr.mxu0 0.0
        %2244 = vmatpush1.msra.mxu0 0.0
        %2245 = vmatprep.subr.mxu0 0.0
        %2246 = vmatpush1.msra.mxu0 0.0
        %2247 = vmatprep.subr.mxu0 0.0
        %2248 = vmatpush1.msra.mxu0 0.0
        %2249 = vmatprep.subr.mxu0 0.0
        %2250 = vmatpush1.msra.mxu0 0.0
        %2251 = vmatprep.subr.mxu0 0.0
        %2252 = vmatpush1.msra.mxu0 0.0
        %2253 = vmatprep.subr.mxu0 0.0
        %2254 = vmatpush1.msra.mxu0 0.0
        %2255 = vmatprep.subr.mxu0 0.0
        %2256 = vmatpush1.msra.mxu0 0.0
        %2257 = vmatprep.subr.mxu0 0.0
        %2258 = vmatpush1.msra.mxu0 0.0
        %2259 = vmatprep.subr.mxu0 0.0
        %2260 = vmatpush1.msra.mxu0 0.0
        %2261 = vmatprep.subr.mxu0 0.0
        %2262 = vmatpush1.msra.mxu0 0.0
        %2263 = vmatprep.mubr.f32.mxu0 0.0
        %2264 = vmatmul.mubr.f32.gmra.mrb[0].mxu0 %v2117
        %v2265 = vpop.f32.mrb[0].mxu0
        %v2266 = vadd.f32 0.0, %v2265
        %v2267 = vpop.f32.mrb[0].mxu0
        %2268 = vmatprep.mubr.f32.mxu0 0.0
        %2269 = vmatmul.mubr.f32.gmra.mrb[0].mxu0 %v2120
        %v2270 = vpop.f32.mrb[0].mxu0
        %v2271 = vadd.f32 0.0, %v2270
        %v2272 = vpop.f32.mrb[0].mxu0
        %2273 = vdwg.mxu0
        %v2274 = vadd.f32 %v2072, %v2189
        %v2275 = vadd.f32 %v2073, %v2191
        %v2276 = vadd.f32 %v2074, %v2266
        %v2277 = vadd.f32 %v2075, %v2195
        %v2278 = vadd.f32 %v2076, %v2197
        %v2279 = vadd.f32 %v2077, %v2271
        %2280 = vst [vmem:[#allocation2] sm:$0xff] %v2274
        %2281 = vst [vmem:[#allocation2 + $0x8] sm:$0xff] %v2275
        %vm2282 = vcmask 105472
        %2283 = vst.msk [vmem:[#allocation2 + $0x10] sm:$0xff] %vm2282, %v2276
        %2284 = vst [vmem:[#allocation2 + $0x18] sm:$0xff] %v2277
        %2285 = vst [vmem:[#allocation2 + $0x20] sm:$0xff] %v2278
        %2286 = vst.msk [vmem:[#allocation2 + $0x28] sm:$0xff] %vm2282, %v2279
        %v2287 = vld [vmem:[#allocation2] sm:$0xff]
        %v2288 = vld [vmem:[#allocation2 + $0x8] sm:$0xff]
        %v2289 = vld [vmem:[#allocation2 + $0x10] sm:$0xff]
        %v2290 = vld [vmem:[#allocation2 + $0x18] sm:$0xff]
        %v2291 = vld [vmem:[#allocation2 + $0x20] sm:$0xff]
        %v2292 = vld [vmem:[#allocation2 + $0x28] sm:$0xff]
        %s2293 = scalar_lea.vmem [#allocation8], 128
        %v2294 = vld [vmem:[%s2293] sm:$0xff]
        %v2295 = vld [vmem:[%s2293 + $0x8] sm:$0xff]
        %v2296 = vld [vmem:[%s224] sm:$0xff]
        %v2297 = vld [vmem:[%s224 + $0x8] sm:$0xff]
        %v2298 = vld [vmem:[%s224 + $0x10] sm:$0xff]
        %v2299 = vld [vmem:[%s224 + $0x18] sm:$0xff]
        %v2300 = vld [vmem:[%s224 + $0x20] sm:$0xff]
        %v2301 = vld [vmem:[%s224 + $0x28] sm:$0xff]
        %2308 = vrot.lane.b32.xlu0 %v2296, 108
        %v2309 = vpop.permute.xlu0 %2308
        %2310 = vrot.lane.b32.xlu0 %v2297, 108
        %v2311 = vpop.permute.xlu0 %2310
        %2312 = vrot.lane.b32.xlu0 %v2298, 108
        %v2313 = vpop.permute.xlu0 %2312
        %2314 = vrot.lane.b32.xlu0 %v2299, 108
        %v2315 = vpop.permute.xlu0 %2314
        %2316 = vrot.lane.b32.xlu0 %v2300, 108
        %v2317 = vpop.permute.xlu0 %2316
        %2318 = vrot.lane.b32.xlu0 %v2301, 108
        %v2319 = vpop.permute.xlu0 %2318
        %vm2320 = vcmask 883712
        %v2321 = vsel %vm2320, %v2309, %v2311
        %v2322 = vsel %vm2320, %v2311, %v2313
        %v2323 = vsel %vm2320, %v2315, %v2317
        %v2324 = vsel %vm2320, %v2317, %v2319
        %v2332 = vsel %vm275, %v2294, 0
        %v2335 = vsel %vm275, %v2295, 0
        %2337 = vmatprep.subr.mxu0 %v2322
        %2338 = vmatpush1.msra.mxu0 %v2321
        %2339 = vmatprep.subr.mxu0 %v2324
        %2340 = vmatpush1.msra.mxu0 %v2323
        %2341 = vmatprep.subr.mxu0 0.0
        %2342 = vmatpush1.msra.mxu0 0.0
        %2343 = vmatprep.subr.mxu0 0.0
        %2344 = vmatpush1.msra.mxu0 0.0
        %2345 = vmatprep.subr.mxu0 0.0
        %2346 = vmatpush1.msra.mxu0 0.0
        %2347 = vmatprep.subr.mxu0 0.0
        %2348 = vmatpush1.msra.mxu0 0.0
        %2349 = vmatprep.subr.mxu0 0.0
        %2350 = vmatpush1.msra.mxu0 0.0
        %2351 = vmatprep.subr.mxu0 0.0
        %2352 = vmatpush1.msra.mxu0 0.0
        %2353 = vmatprep.subr.mxu0 0.0
        %2354 = vmatpush1.msra.mxu0 0.0
        %2355 = vmatprep.subr.mxu0 0.0
        %2356 = vmatpush1.msra.mxu0 0.0
        %2357 = vmatprep.subr.mxu0 0.0
        %2358 = vmatpush1.msra.mxu0 0.0
        %2359 = vmatprep.subr.mxu0 0.0
        %2360 = vmatpush1.msra.mxu0 0.0
        %2361 = vmatprep.subr.mxu0 0.0
        %2362 = vmatpush1.msra.mxu0 0.0
        %2363 = vmatprep.subr.mxu0 0.0
        %2364 = vmatpush1.msra.mxu0 0.0
        %2365 = vmatprep.subr.mxu0 0.0
        %2366 = vmatpush1.msra.mxu0 0.0
        %2367 = vmatprep.subr.mxu0 0.0
        %2368 = vmatpush1.msra.mxu0 0.0
        %2369 = vmatprep.subr.mxu0 0.0
        %2370 = vmatpush1.msra.mxu0 0.0
        %2371 = vmatprep.subr.mxu0 0.0
        %2372 = vmatpush1.msra.mxu0 0.0
        %2373 = vmatprep.subr.mxu0 0.0
        %2374 = vmatpush1.msra.mxu0 0.0
        %2375 = vmatprep.subr.mxu0 0.0
        %2376 = vmatpush1.msra.mxu0 0.0
        %2377 = vmatprep.subr.mxu0 0.0
        %2378 = vmatpush1.msra.mxu0 0.0
        %2379 = vmatprep.subr.mxu0 0.0
        %2380 = vmatpush1.msra.mxu0 0.0
        %2381 = vmatprep.subr.mxu0 0.0
        %2382 = vmatpush1.msra.mxu0 0.0
        %2383 = vmatprep.subr.mxu0 0.0
        %2384 = vmatpush1.msra.mxu0 0.0
        %2385 = vmatprep.subr.mxu0 0.0
        %2386 = vmatpush1.msra.mxu0 0.0
        %2387 = vmatprep.subr.mxu0 0.0
        %2388 = vmatpush1.msra.mxu0 0.0
        %2389 = vmatprep.subr.mxu0 0.0
        %2390 = vmatpush1.msra.mxu0 0.0
        %2391 = vmatprep.subr.mxu0 0.0
        %2392 = vmatpush1.msra.mxu0 0.0
        %2393 = vmatprep.subr.mxu0 0.0
        %2394 = vmatpush1.msra.mxu0 0.0
        %2395 = vmatprep.subr.mxu0 0.0
        %2396 = vmatpush1.msra.mxu0 0.0
        %2397 = vmatprep.subr.mxu0 0.0
        %2398 = vmatpush1.msra.mxu0 0.0
        %2399 = vmatprep.subr.mxu0 0.0
        %2400 = vmatpush1.msra.mxu0 0.0
        %2401 = vmatprep.mubr.f32.mxu0 0.0
        %2402 = vmatmul.mubr.f32.gmra.mrb[0].mxu0 %v2332
        %v2403 = vpop.f32.mrb[0].mxu0
        %v2404 = vadd.f32 0.0, %v2403
        %v2405 = vpop.f32.mrb[0].mxu0
        %v2406 = vadd.f32 0.0, %v2405
        %2407 = vmatprep.mubr.f32.mxu0 0.0
        %2408 = vmatmul.mubr.f32.gmra.mrb[0].mxu0 %v2335
        %v2409 = vpop.f32.mrb[0].mxu0
        %v2410 = vadd.f32 0.0, %v2409
        %v2411 = vpop.f32.mrb[0].mxu0
        %v2412 = vadd.f32 0.0, %v2411
        %2413 = vdwg.mxu0
        %2414 = vmatprep.subr.mxu0 0.0
        %2415 = vmatpush1.msra.mxu0 %v2313
        %2416 = vmatprep.subr.mxu0 0.0
        %2417 = vmatpush1.msra.mxu0 %v2319
        %2418 = vmatprep.subr.mxu0 0.0
        %2419 = vmatpush1.msra.mxu0 0.0
        %2420 = vmatprep.subr.mxu0 0.0
        %2421 = vmatpush1.msra.mxu0 0.0
        %2422 = vmatprep.subr.mxu0 0.0
        %2423 = vmatpush1.msra.mxu0 0.0
        %2424 = vmatprep.subr.mxu0 0.0
        %2425 = vmatpush1.msra.mxu0 0.0
        %2426 = vmatprep.subr.mxu0 0.0
        %2427 = vmatpush1.msra.mxu0 0.0
        %2428 = vmatprep.subr.mxu0 0.0
        %2429 = vmatpush1.msra.mxu0 0.0
        %2430 = vmatprep.subr.mxu0 0.0
        %2431 = vmatpush1.msra.mxu0 0.0
        %2432 = vmatprep.subr.mxu0 0.0
        %2433 = vmatpush1.msra.mxu0 0.0
        %2434 = vmatprep.subr.mxu0 0.0
        %2435 = vmatpush1.msra.mxu0 0.0
        %2436 = vmatprep.subr.mxu0 0.0
        %2437 = vmatpush1.msra.mxu0 0.0
        %2438 = vmatprep.subr.mxu0 0.0
        %2439 = vmatpush1.msra.mxu0 0.0
        %2440 = vmatprep.subr.mxu0 0.0
        %2441 = vmatpush1.msra.mxu0 0.0
        %2442 = vmatprep.subr.mxu0 0.0
        %2443 = vmatpush1.msra.mxu0 0.0
        %2444 = vmatprep.subr.mxu0 0.0
        %2445 = vmatpush1.msra.mxu0 0.0
        %2446 = vmatprep.subr.mxu0 0.0
        %2447 = vmatpush1.msra.mxu0 0.0
        %2448 = vmatprep.subr.mxu0 0.0
        %2449 = vmatpush1.msra.mxu0 0.0
        %2450 = vmatprep.subr.mxu0 0.0
        %2451 = vmatpush1.msra.mxu0 0.0
        %2452 = vmatprep.subr.mxu0 0.0
        %2453 = vmatpush1.msra.mxu0 0.0
        %2454 = vmatprep.subr.mxu0 0.0
        %2455 = vmatpush1.msra.mxu0 0.0
        %2456 = vmatprep.subr.mxu0 0.0
        %2457 = vmatpush1.msra.mxu0 0.0
        %2458 = vmatprep.subr.mxu0 0.0
        %2459 = vmatpush1.msra.mxu0 0.0
        %2460 = vmatprep.subr.mxu0 0.0
        %2461 = vmatpush1.msra.mxu0 0.0
        %2462 = vmatprep.subr.mxu0 0.0
        %2463 = vmatpush1.msra.mxu0 0.0
        %2464 = vmatprep.subr.mxu0 0.0
        %2465 = vmatpush1.msra.mxu0 0.0
        %2466 = vmatprep.subr.mxu0 0.0
        %2467 = vmatpush1.msra.mxu0 0.0
        %2468 = vmatprep.subr.mxu0 0.0
        %2469 = vmatpush1.msra.mxu0 0.0
        %2470 = vmatprep.subr.mxu0 0.0
        %2471 = vmatpush1.msra.mxu0 0.0
        %2472 = vmatprep.subr.mxu0 0.0
        %2473 = vmatpush1.msra.mxu0 0.0
        %2474 = vmatprep.subr.mxu0 0.0
        %2475 = vmatpush1.msra.mxu0 0.0
        %2476 = vmatprep.subr.mxu0 0.0
        %2477 = vmatpush1.msra.mxu0 0.0
        %2478 = vmatprep.mubr.f32.mxu0 0.0
        %2479 = vmatmul.mubr.f32.gmra.mrb[0].mxu0 %v2332
        %v2480 = vpop.f32.mrb[0].mxu0
        %v2481 = vadd.f32 0.0, %v2480
        %v2482 = vpop.f32.mrb[0].mxu0
        %2483 = vmatprep.mubr.f32.mxu0 0.0
        %2484 = vmatmul.mubr.f32.gmra.mrb[0].mxu0 %v2335
        %v2485 = vpop.f32.mrb[0].mxu0
        %v2486 = vadd.f32 0.0, %v2485
        %v2487 = vpop.f32.mrb[0].mxu0
        %2488 = vdwg.mxu0
        %v2489 = vadd.f32 %v2287, %v2404
        %v2490 = vadd.f32 %v2288, %v2406
        %v2491 = vadd.f32 %v2289, %v2481
        %v2492 = vadd.f32 %v2290, %v2410
        %v2493 = vadd.f32 %v2291, %v2412
        %v2494 = vadd.f32 %v2292, %v2486
        %2495 = vst [vmem:[#allocation2] sm:$0xff] %v2489
        %2496 = vst [vmem:[#allocation2 + $0x8] sm:$0xff] %v2490
        %vm2497 = vcmask 97280
        %2498 = vst.msk [vmem:[#allocation2 + $0x10] sm:$0xff] %vm2497, %v2491
        %2499 = vst [vmem:[#allocation2 + $0x18] sm:$0xff] %v2492
        %2500 = vst [vmem:[#allocation2 + $0x20] sm:$0xff] %v2493
        %2501 = vst.msk [vmem:[#allocation2 + $0x28] sm:$0xff] %vm2497, %v2494
        %v2502 = vld [vmem:[#allocation2 + $0x10] sm:$0xff]
        %v2503 = vld [vmem:[#allocation2 + $0x28] sm:$0xff]
        %v2504 = vld [vmem:[%s1863] sm:$0xff]
        %v2505 = vld [vmem:[%s1863 + $0x8] sm:$0xff]
        %s2506 = scalar_lea.vmem %s233, 16 [#allocation6]
        %v2507 = vld [vmem:[%s2506] sm:$0xff]
        %v2508 = vld [vmem:[%s2506 + $0x8] sm:$0xff]
        %v2510 = vsel %vm275, %v2504, 0
        %v2513 = vsel %vm275, %v2505, 0
        %2515 = vmatprep.subr.mxu0 0.0
        %2516 = vmatpush1.msra.mxu0 %v2507
        %2517 = vmatprep.subr.mxu0 0.0
        %2518 = vmatpush1.msra.mxu0 %v2508
        %2519 = vmatprep.subr.mxu0 0.0
        %2520 = vmatpush1.msra.mxu0 0.0
        %2521 = vmatprep.subr.mxu0 0.0
        %2522 = vmatpush1.msra.mxu0 0.0
        %2523 = vmatprep.subr.mxu0 0.0
        %2524 = vmatpush1.msra.mxu0 0.0
        %2525 = vmatprep.subr.mxu0 0.0
        %2526 = vmatpush1.msra.mxu0 0.0
        %2527 = vmatprep.subr.mxu0 0.0
        %2528 = vmatpush1.msra.mxu0 0.0
        %2529 = vmatprep.subr.mxu0 0.0
        %2530 = vmatpush1.msra.mxu0 0.0
        %2531 = vmatprep.subr.mxu0 0.0
        %2532 = vmatpush1.msra.mxu0 0.0
        %2533 = vmatprep.subr.mxu0 0.0
        %2534 = vmatpush1.msra.mxu0 0.0
        %2535 = vmatprep.subr.mxu0 0.0
        %2536 = vmatpush1.msra.mxu0 0.0
        %2537 = vmatprep.subr.mxu0 0.0
        %2538 = vmatpush1.msra.mxu0 0.0
        %2539 = vmatprep.subr.mxu0 0.0
        %2540 = vmatpush1.msra.mxu0 0.0
        %2541 = vmatprep.subr.mxu0 0.0
        %2542 = vmatpush1.msra.mxu0 0.0
        %2543 = vmatprep.subr.mxu0 0.0
        %2544 = vmatpush1.msra.mxu0 0.0
        %2545 = vmatprep.subr.mxu0 0.0
        %2546 = vmatpush1.msra.mxu0 0.0
        %2547 = vmatprep.subr.mxu0 0.0
        %2548 = vmatpush1.msra.mxu0 0.0
        %2549 = vmatprep.subr.mxu0 0.0
        %2550 = vmatpush1.msra.mxu0 0.0
        %2551 = vmatprep.subr.mxu0 0.0
        %2552 = vmatpush1.msra.mxu0 0.0
        %2553 = vmatprep.subr.mxu0 0.0
        %2554 = vmatpush1.msra.mxu0 0.0
        %2555 = vmatprep.subr.mxu0 0.0
        %2556 = vmatpush1.msra.mxu0 0.0
        %2557 = vmatprep.subr.mxu0 0.0
        %2558 = vmatpush1.msra.mxu0 0.0
        %2559 = vmatprep.subr.mxu0 0.0
        %2560 = vmatpush1.msra.mxu0 0.0
        %2561 = vmatprep.subr.mxu0 0.0
        %2562 = vmatpush1.msra.mxu0 0.0
        %2563 = vmatprep.subr.mxu0 0.0
        %2564 = vmatpush1.msra.mxu0 0.0
        %2565 = vmatprep.subr.mxu0 0.0
        %2566 = vmatpush1.msra.mxu0 0.0
        %2567 = vmatprep.subr.mxu0 0.0
        %2568 = vmatpush1.msra.mxu0 0.0
        %2569 = vmatprep.subr.mxu0 0.0
        %2570 = vmatpush1.msra.mxu0 0.0
        %2571 = vmatprep.subr.mxu0 0.0
        %2572 = vmatpush1.msra.mxu0 0.0
        %2573 = vmatprep.subr.mxu0 0.0
        %2574 = vmatpush1.msra.mxu0 0.0
        %2575 = vmatprep.subr.mxu0 0.0
        %2576 = vmatpush1.msra.mxu0 0.0
        %2577 = vmatprep.subr.mxu0 0.0
        %2578 = vmatpush1.msra.mxu0 0.0
        %2579 = vmatprep.mubr.f32.mxu0 0.0
        %2580 = vmatmul.mubr.f32.gmra.mrb[0].mxu0 %v2510
        %v2581 = vpop.f32.mrb[0].mxu0
        %v2582 = vadd.f32 0.0, %v2581
        %v2583 = vpop.f32.mrb[0].mxu0
        %2584 = vmatprep.mubr.f32.mxu0 0.0
        %2585 = vmatmul.mubr.f32.gmra.mrb[0].mxu0 %v2513
        %v2586 = vpop.f32.mrb[0].mxu0
        %v2587 = vadd.f32 0.0, %v2586
        %v2588 = vpop.f32.mrb[0].mxu0
        %2589 = vdwg.mxu0
        %2592 = vrot.lane.b32.xlu0 %v2582, 14
        %v2593 = vpop.permute.xlu0 %2592
        %2594 = vrot.lane.b32.xlu0 %v2587, 14
        %v2595 = vpop.permute.xlu0 %2594
        %v2598 = vadd.f32 %v2502, %v2593
        %v2599 = vadd.f32 %v2503, %v2595
        %vm2600 = vcmask 261232
        %2601 = vst.msk [vmem:[#allocation2 + $0x10] sm:$0xff] %vm2600, %v2598
        %2602 = vst.msk [vmem:[#allocation2 + $0x28] sm:$0xff] %vm2600, %v2599
        %v2603 = vld [vmem:[#allocation2 + $0x10] sm:$0xff]
        %v2604 = vld [vmem:[#allocation2 + $0x28] sm:$0xff]
        %v2605 = vld [vmem:[%s2078] sm:$0xff]
        %v2606 = vld [vmem:[%s2078 + $0x8] sm:$0xff]
        %v2607 = vld [vmem:[%s2506] sm:$0xff]
        %v2608 = vld [vmem:[%s2506 + $0x8] sm:$0xff]
        %2611 = vrot.lane.b32.xlu0 %v2607, 127
        %v2612 = vpop.permute.xlu0 %2611
        %2613 = vrot.lane.b32.xlu0 %v2608, 127
        %v2614 = vpop.permute.xlu0 %2613
        %v2618 = vsel %vm275, %v2605, 0
        %v2621 = vsel %vm275, %v2606, 0
        %2623 = vmatprep.subr.mxu0 0.0
        %2624 = vmatpush1.msra.mxu0 %v2612
        %2625 = vmatprep.subr.mxu0 0.0
        %2626 = vmatpush1.msra.mxu0 %v2614
        %2627 = vmatprep.subr.mxu0 0.0
        %2628 = vmatpush1.msra.mxu0 0.0
        %2629 = vmatprep.subr.mxu0 0.0
        %2630 = vmatpush1.msra.mxu0 0.0
        %2631 = vmatprep.subr.mxu0 0.0
        %2632 = vmatpush1.msra.mxu0 0.0
        %2633 = vmatprep.subr.mxu0 0.0
        %2634 = vmatpush1.msra.mxu0 0.0
        %2635 = vmatprep.subr.mxu0 0.0
        %2636 = vmatpush1.msra.mxu0 0.0
        %2637 = vmatprep.subr.mxu0 0.0
        %2638 = vmatpush1.msra.mxu0 0.0
        %2639 = vmatprep.subr.mxu0 0.0
        %2640 = vmatpush1.msra.mxu0 0.0
        %2641 = vmatprep.subr.mxu0 0.0
        %2642 = vmatpush1.msra.mxu0 0.0
        %2643 = vmatprep.subr.mxu0 0.0
        %2644 = vmatpush1.msra.mxu0 0.0
        %2645 = vmatprep.subr.mxu0 0.0
        %2646 = vmatpush1.msra.mxu0 0.0
        %2647 = vmatprep.subr.mxu0 0.0
        %2648 = vmatpush1.msra.mxu0 0.0
        %2649 = vmatprep.subr.mxu0 0.0
        %2650 = vmatpush1.msra.mxu0 0.0
        %2651 = vmatprep.subr.mxu0 0.0
        %2652 = vmatpush1.msra.mxu0 0.0
        %2653 = vmatprep.subr.mxu0 0.0
        %2654 = vmatpush1.msra.mxu0 0.0
        %2655 = vmatprep.subr.mxu0 0.0
        %2656 = vmatpush1.msra.mxu0 0.0
        %2657 = vmatprep.subr.mxu0 0.0
        %2658 = vmatpush1.msra.mxu0 0.0
        %2659 = vmatprep.subr.mxu0 0.0
        %2660 = vmatpush1.msra.mxu0 0.0
        %2661 = vmatprep.subr.mxu0 0.0
        %2662 = vmatpush1.msra.mxu0 0.0
        %2663 = vmatprep.subr.mxu0 0.0
        %2664 = vmatpush1.msra.mxu0 0.0
        %2665 = vmatprep.subr.mxu0 0.0
        %2666 = vmatpush1.msra.mxu0 0.0
        %2667 = vmatprep.subr.mxu0 0.0
        %2668 = vmatpush1.msra.mxu0 0.0
        %2669 = vmatprep.subr.mxu0 0.0
        %2670 = vmatpush1.msra.mxu0 0.0
        %2671 = vmatprep.subr.mxu0 0.0
        %2672 = vmatpush1.msra.mxu0 0.0
        %2673 = vmatprep.subr.mxu0 0.0
        %2674 = vmatpush1.msra.mxu0 0.0
        %2675 = vmatprep.subr.mxu0 0.0
        %2676 = vmatpush1.msra.mxu0 0.0
        %2677 = vmatprep.subr.mxu0 0.0
        %2678 = vmatpush1.msra.mxu0 0.0
        %2679 = vmatprep.subr.mxu0 0.0
        %2680 = vmatpush1.msra.mxu0 0.0
        %2681 = vmatprep.subr.mxu0 0.0
        %2682 = vmatpush1.msra.mxu0 0.0
        %2683 = vmatprep.subr.mxu0 0.0
        %2684 = vmatpush1.msra.mxu0 0.0
        %2685 = vmatprep.subr.mxu0 0.0
        %2686 = vmatpush1.msra.mxu0 0.0
        %2687 = vmatprep.mubr.f32.mxu0 0.0
        %2688 = vmatmul.mubr.f32.gmra.mrb[0].mxu0 %v2618
        %v2689 = vpop.f32.mrb[0].mxu0
        %v2690 = vadd.f32 0.0, %v2689
        %v2691 = vpop.f32.mrb[0].mxu0
        %2692 = vmatprep.mubr.f32.mxu0 0.0
        %2693 = vmatmul.mubr.f32.gmra.mrb[0].mxu0 %v2621
        %v2694 = vpop.f32.mrb[0].mxu0
        %v2695 = vadd.f32 0.0, %v2694
        %v2696 = vpop.f32.mrb[0].mxu0
        %2697 = vdwg.mxu0
        %2700 = vrot.lane.b32.xlu0 %v2690, 14
        %v2701 = vpop.permute.xlu0 %2700
        %2702 = vrot.lane.b32.xlu0 %v2695, 14
        %v2703 = vpop.permute.xlu0 %2702
        %v2706 = vadd.f32 %v2603, %v2701
        %v2707 = vadd.f32 %v2604, %v2703
        %vm2708 = vcmask 253040
        %2709 = vst.msk [vmem:[#allocation2 + $0x10] sm:$0xff] %vm2708, %v2706
        %2710 = vst.msk [vmem:[#allocation2 + $0x28] sm:$0xff] %vm2708, %v2707
        %v2711 = vld [vmem:[#allocation2 + $0x10] sm:$0xff]
        %v2712 = vld [vmem:[#allocation2 + $0x28] sm:$0xff]
        %v2713 = vld [vmem:[%s2293] sm:$0xff]
        %v2714 = vld [vmem:[%s2293 + $0x8] sm:$0xff]
        %v2715 = vld [vmem:[%s2506] sm:$0xff]
        %v2716 = vld [vmem:[%s2506 + $0x8] sm:$0xff]
        %2719 = vrot.lane.b32.xlu0 %v2715, 126
        %v2720 = vpop.permute.xlu0 %2719
        %2721 = vrot.lane.b32.xlu0 %v2716, 126
        %v2722 = vpop.permute.xlu0 %2721
        %v2726 = vsel %vm275, %v2713, 0
        %v2729 = vsel %vm275, %v2714, 0
        %2731 = vmatprep.subr.mxu0 0.0
        %2732 = vmatpush1.msra.mxu0 %v2720
        %2733 = vmatprep.subr.mxu0 0.0
        %2734 = vmatpush1.msra.mxu0 %v2722
        %2735 = vmatprep.subr.mxu0 0.0
        %2736 = vmatpush1.msra.mxu0 0.0
        %2737 = vmatprep.subr.mxu0 0.0
        %2738 = vmatpush1.msra.mxu0 0.0
        %2739 = vmatprep.subr.mxu0 0.0
        %2740 = vmatpush1.msra.mxu0 0.0
        %2741 = vmatprep.subr.mxu0 0.0
        %2742 = vmatpush1.msra.mxu0 0.0
        %2743 = vmatprep.subr.mxu0 0.0
        %2744 = vmatpush1.msra.mxu0 0.0
        %2745 = vmatprep.subr.mxu0 0.0
        %2746 = vmatpush1.msra.mxu0 0.0
        %2747 = vmatprep.subr.mxu0 0.0
        %2748 = vmatpush1.msra.mxu0 0.0
        %2749 = vmatprep.subr.mxu0 0.0
        %2750 = vmatpush1.msra.mxu0 0.0
        %2751 = vmatprep.subr.mxu0 0.0
        %2752 = vmatpush1.msra.mxu0 0.0
        %2753 = vmatprep.subr.mxu0 0.0
        %2754 = vmatpush1.msra.mxu0 0.0
        %2755 = vmatprep.subr.mxu0 0.0
        %2756 = vmatpush1.msra.mxu0 0.0
        %2757 = vmatprep.subr.mxu0 0.0
        %2758 = vmatpush1.msra.mxu0 0.0
        %2759 = vmatprep.subr.mxu0 0.0
        %2760 = vmatpush1.msra.mxu0 0.0
        %2761 = vmatprep.subr.mxu0 0.0
        %2762 = vmatpush1.msra.mxu0 0.0
        %2763 = vmatprep.subr.mxu0 0.0
        %2764 = vmatpush1.msra.mxu0 0.0
        %2765 = vmatprep.subr.mxu0 0.0
        %2766 = vmatpush1.msra.mxu0 0.0
        %2767 = vmatprep.subr.mxu0 0.0
        %2768 = vmatpush1.msra.mxu0 0.0
        %2769 = vmatprep.subr.mxu0 0.0
        %2770 = vmatpush1.msra.mxu0 0.0
        %2771 = vmatprep.subr.mxu0 0.0
        %2772 = vmatpush1.msra.mxu0 0.0
        %2773 = vmatprep.subr.mxu0 0.0
        %2774 = vmatpush1.msra.mxu0 0.0
        %2775 = vmatprep.subr.mxu0 0.0
        %2776 = vmatpush1.msra.mxu0 0.0
        %2777 = vmatprep.subr.mxu0 0.0
        %2778 = vmatpush1.msra.mxu0 0.0
        %2779 = vmatprep.subr.mxu0 0.0
        %2780 = vmatpush1.msra.mxu0 0.0
        %2781 = vmatprep.subr.mxu0 0.0
        %2782 = vmatpush1.msra.mxu0 0.0
        %2783 = vmatprep.subr.mxu0 0.0
        %2784 = vmatpush1.msra.mxu0 0.0
        %2785 = vmatprep.subr.mxu0 0.0
        %2786 = vmatpush1.msra.mxu0 0.0
        %2787 = vmatprep.subr.mxu0 0.0
        %2788 = vmatpush1.msra.mxu0 0.0
        %2789 = vmatprep.subr.mxu0 0.0
        %2790 = vmatpush1.msra.mxu0 0.0
        %2791 = vmatprep.subr.mxu0 0.0
        %2792 = vmatpush1.msra.mxu0 0.0
        %2793 = vmatprep.subr.mxu0 0.0
        %2794 = vmatpush1.msra.mxu0 0.0
        %2795 = vmatprep.mubr.f32.mxu0 0.0
        %2796 = vmatmul.mubr.f32.gmra.mrb[0].mxu0 %v2726
        %v2797 = vpop.f32.mrb[0].mxu0
        %v2798 = vadd.f32 0.0, %v2797
        %v2799 = vpop.f32.mrb[0].mxu0
        %2800 = vmatprep.mubr.f32.mxu0 0.0
        %2801 = vmatmul.mubr.f32.gmra.mrb[0].mxu0 %v2729
        %v2802 = vpop.f32.mrb[0].mxu0
        %v2803 = vadd.f32 0.0, %v2802
        %v2804 = vpop.f32.mrb[0].mxu0
        %2805 = vdwg.mxu0
        %2808 = vrot.lane.b32.xlu0 %v2798, 14
        %v2809 = vpop.permute.xlu0 %2808
        %2810 = vrot.lane.b32.xlu0 %v2803, 14
        %v2811 = vpop.permute.xlu0 %2810
        %v2814 = vadd.f32 %v2711, %v2809
        %v2815 = vadd.f32 %v2712, %v2811
        %vm2816 = vcmask 244848
        %2817 = vst.msk [vmem:[#allocation2 + $0x10] sm:$0xff] %vm2816, %v2814
        %2818 = vst.msk [vmem:[#allocation2 + $0x28] sm:$0xff] %vm2816, %v2815
        %v2819 = vld [vmem:[#allocation2] sm:$0xff]
        %v2820 = vld [vmem:[#allocation2 + $0x8] sm:$0xff]
        %v2821 = vld [vmem:[#allocation2 + $0x10] sm:$0xff]
        %v2822 = vld [vmem:[#allocation2 + $0x18] sm:$0xff]
        %v2823 = vld [vmem:[#allocation2 + $0x20] sm:$0xff]
        %v2824 = vld [vmem:[#allocation2 + $0x28] sm:$0xff]
        %vm2825 = vcmp.ge.f32.partialorder %v2819, 0.0
        %vm2826 = vcmp.ge.f32.partialorder %v2820, 0.0
        %vm2827 = vcmp.ge.f32.partialorder %v2821, 0.0
        %vm2828 = vcmp.ge.f32.partialorder %v2822, 0.0
        %vm2829 = vcmp.ge.f32.partialorder %v2823, 0.0
        %vm2830 = vcmp.ge.f32.partialorder %v2824, 0.0
        %v2831 = vmul.f32 %v2819, 0.1
        %v2832 = vmul.f32 %v2820, 0.1
        %v2833 = vmul.f32 %v2821, 0.1
        %v2834 = vmul.f32 %v2822, 0.1
        %v2835 = vmul.f32 %v2823, 0.1
        %v2836 = vmul.f32 %v2824, 0.1
        %v2837 = vsel %vm2825, %v2819, %v2831
        %v2838 = vsel %vm2826, %v2820, %v2832
        %v2839 = vsel %vm2827, %v2821, %v2833
        %v2840 = vsel %vm2828, %v2822, %v2834
        %v2841 = vsel %vm2829, %v2823, %v2835
        %v2842 = vsel %vm2830, %v2824, %v2836
        %2843 = vst [vmem:[%s264] sm:$0xff] %v2837
        %2844 = vst [vmem:[%s264 + $0x8] sm:$0xff] %v2838
        %2845 = vst.msk [vmem:[%s264 + $0x10] sm:$0xff] %vm436, %v2839
        %2846 = vst [vmem:[%s264 + $0x18] sm:$0xff] %v2840
        %2847 = vst [vmem:[%s264 + $0x20] sm:$0xff] %v2841
        %2848 = vst.msk [vmem:[%s264 + $0x28] sm:$0xff] %vm436, %v2842
        %s2849 = sand.u32 %s122, 1
        %s2850 = scalar_lea.sflag [#allocation5], %s2849
        %s2851 = sand.u32 %s122, 1
        %s2852 = smul.addr %s2851, 48
        %s2853 = scalar_lea.vmem [#allocation9], %s2852
        // Predicated region
        $region45: #{tpu_custom_call.1} parent=31 // pred_check
          %p2854 = pneg %p132
        $region46: #{tpu_custom_call.1} parent=31 // pred_check_branch
          %2856 = sbr.rel (%p2854) target = $region48
        $region47: #{tpu_custom_call.1} parent=31 // pred_region
          %s2858 = ssub.s32 768, 768
          %2859 = vsyncadd %s2850, %s2858
          %s2860 = smul.addr %s28, 6
          %s2861 = smul.addr %s27, 6
          %s2862 = sadd.s32 %s2860, %s2861
          %s2863 = smul.addr %s2862, 128
          %s2864 = scalar_lea.hbm %s3, %s2863
          %s2865 = sshll.u32 %s2853, 4
          %s2866 = int_to_ptr.vmem [resolvable:$true] %s2865
          %2871 = dma.vmem_to_hbm [thread:$0]  %s2866, 768, %s2864, %s2850, 384, 384, 24
        $region48: #{tpu_custom_call.1} parent=31 // pred_fallthru
          _
      $region32: #{tpu_custom_call.1} parent=5 // pred_fallthru
        _
      %p2872 = scmp.le.s32.totalorder 2, %s18
      // Predicated region
      $region49: #{tpu_custom_call.1} parent=5 // pred_check
        %p2873 = pneg %p2872
      $region50: #{tpu_custom_call.1} parent=5 // pred_check_branch
        %2875 = sbr.rel (%p2873) target = $region52
      $region51: #{tpu_custom_call.1} parent=5 // pred_region
        %s2876 = ssub.s32 %s18, 2
        // Predicated region
        $region53: #{tpu_custom_call.1} parent=51 // pred_check
          %p2877 = pneg %p138
        $region54: #{tpu_custom_call.1} parent=51 // pred_check_branch
          %2879 = sbr.rel (%p2877) target = $region56
        $region55: #{tpu_custom_call.1} parent=51 // pred_region
          %s2880 = sand.u32 %s123, 1
          %s2881 = scalar_lea.sflag [#allocation5], %s2880
          %s2882 = sand.u32 %s123, 1
          %s2883 = smul.addr %s2882, 48
          %s2884 = scalar_lea.vmem [#allocation9], %s2883
          %2885 = dma.done %s2881, 768
        $region56: #{tpu_custom_call.1} parent=51 // pred_fallthru
          _
      $region52: #{tpu_custom_call.1} parent=5 // pred_fallthru
        _
    $region6: #{tpu_custom_call.1} parent=1 // loop_footer
      %s22 = sadd.s32 1, %s18
    $region7: #{tpu_custom_call.1} parent=1 // loop_footer_branch
      %17 = sbr.rel target = $region3
    $region8: #{tpu_custom_call.1} parent=1 // loop_exit
      _
    %2886 = vsyncpa [#allocation4], 1
    %s2887 = scalar_lea.sflag [#allocation4], 1
    %2888 = vsyncpa %s2887, 1
    %2889 = vsyncpa [#allocation7], 1
    %s2890 = scalar_lea.sflag [#allocation7], 1
    %2891 = vsyncpa %s2890, 1
    %2892 = vsyncpa [#allocation5], 1
    %s2893 = scalar_lea.sflag [#allocation5], 1
    %2894 = vsyncpa %s2893, 1

</llo_original>
